<compile_context>
chip_gen: v7x
topology: tpu7x:2x2x1
jax: 0.10.0
libtpu: 0.0.40
codegen_flags: <defaults>
</compile_context>

<pallas_src>
import functools

import jax
import jax.numpy as jnp
from jax import lax
from jax.experimental import pallas as pl
from jax.experimental.pallas import tpu as pltpu


def _round_up(x, m):
    return ((x + m - 1) // m) * m


def _pack_weight(w_oihw, c_pad):
    """OIHW conv weight -> (C_out, 9*c_pad) im2col matrix.

    Column index = (kd*3 + kt)*c_pad + c; columns for the zero-padded input
    channels (c >= C_in) are zero."""
    c_out, c_in, kd, kt = w_oihw.shape
    w = jnp.transpose(w_oihw, (0, 2, 3, 1)).reshape(c_out, kd * kt, c_in)
    w = jnp.pad(w, ((0, 0), (0, 0), (0, c_pad - c_in)))
    return w.reshape(c_out, kd * kt * c_pad).astype(jnp.float32)


def _fused_maskconv_kernel(lengths_ref, col_ref, x_ref,
                           w1_ref, b1_ref, w2_ref, b2_ref, o_ref,
                           xpad_scr, act_scr, slab_scr, *,
                           BB, D, T, T_pad, lead, segN, N_comp, n_lanes,
                           C_in, c_in_pad, C_mid, c_mid_pad,
                           min_val, max_val):
    """Fused [3x3 'same' Conv2d + Hardtanh + time-mask] x 2 for BB batch rows.

    Refs:
      lengths_ref: (B_pad,) int32 in SMEM (scalar prefetch)
      col_ref:     (1, D*T_pad) int32 within-row time index
      x_ref:       (BB, C_in, D*T_pad)   -- T already zero-padded to T_pad
      w{1,2}_ref:  (Cout, 9*c_pad) im2col weight matrices
      b{1,2}_ref:  (Cout, 1)
      o_ref:       (BB, C_out, D*T_pad)  -- padded layout, wrapper slices [:T]
      xpad_scr:    (c_in_pad,  n_lanes) VMEM, zero-halo'd layer-1 input
      act_scr:     (c_mid_pad, n_lanes) VMEM, zero-halo'd layer-1 output
      slab_scr:    (9*max(c_pad), BB*(D+1)*T_pad) VMEM im2col slab (reused)

    Lane layout per batch row inside the scratches:
      [ D data rows of T_pad lanes (cols >= T are zero) | 1 zero separator row ]
    preceded by a `lead` zero halo and followed by a zero tail, so every tap
    (kd, kt) of the 'same' conv is just the lane slice starting at
    lead + (kd-1)*T_pad + (kt-1).
    """
    f32 = jnp.float32
    base = pl.program_id(0) * BB
    ND = D * T_pad                         # data lanes per batch image

    # Per-batch MaskConv keep-masks, hoisted: col < min(length, T).  The min
    # with T also zeroes the T..T_pad gap lanes so the zero halo stays clean.
    col = col_ref[...]                                        # (1, ND) int32
    keeps = [col < jnp.minimum(lengths_ref[base + b], T) for b in range(BB)]

    # ---- zero ONLY halo / separator / channel-pad lanes -------------------
    # (data interiors are fully overwritten below; done every grid step so it
    #  stays per-core-safe when the grid axis is "parallel")
    if C_in < c_in_pad:
        xpad_scr[C_in:, :] = jnp.zeros((c_in_pad - C_in, n_lanes), f32)
    if C_mid < c_mid_pad:
        act_scr[C_mid:, :] = jnp.zeros((c_mid_pad - C_mid, n_lanes), f32)
    tail = n_lanes - lead - N_comp
    xpad_scr[:C_in, :lead] = jnp.zeros((C_in, lead), f32)
    act_scr[:C_mid, :lead] = jnp.zeros((C_mid, lead), f32)
    xpad_scr[:C_in, lead + N_comp:] = jnp.zeros((C_in, tail), f32)
    act_scr[:C_mid, lead + N_comp:] = jnp.zeros((C_mid, tail), f32)
    for b in range(BB):
        sep = lead + b * segN + ND                       # inter-batch zero row
        xpad_scr[:C_in, sep:sep + T_pad] = jnp.zeros((C_in, T_pad), f32)
        act_scr[:C_mid, sep:sep + T_pad] = jnp.zeros((C_mid, T_pad), f32)

    # ---- stage the BB input rows (aligned, lane-dense copies) -------------
    for b in range(BB):
        off = lead + b * segN
        xpad_scr[:C_in, off:off + ND] = x_ref[b]

    def conv_layer(src_scr, c_pad, w_ref, b_ref):
        # im2col: 9 sublane-aligned, lane-shifted copies -> (9*c_pad, N_comp)
        for kd in range(3):
            for kt in range(3):
                tap = kd * 3 + kt
                off = lead + (kd - 1) * T_pad + (kt - 1)
                slab_scr[tap * c_pad:(tap + 1) * c_pad, :] = (
                    src_scr[:c_pad, off:off + N_comp])
        # ONE fat MXU contraction per layer: (Cout, 9*c_pad) @ (9*c_pad, N)
        acc = jnp.dot(w_ref[...], slab_scr[:9 * c_pad, :],
                      preferred_element_type=jnp.float32)
        acc = acc + b_ref[...]                               # (Cout, 1) bcast
        return jnp.clip(acc, min_val, max_val)               # Hardtanh(0, 20)

    # Layer 1: conv + hardtanh; mask + stage straight into the padded layer-2
    # input (the intermediate activation never leaves VMEM).
    a1 = conv_layer(xpad_scr, c_in_pad, w1_ref, b1_ref)      # (C_mid, N_comp)
    for b in range(BB):
        off = lead + b * segN
        act_scr[:C_mid, off:off + ND] = jnp.where(
            keeps[b], a1[:, b * segN:b * segN + ND], 0.0)

    # Layer 2: conv + hardtanh + mask, lane-dense (C_out, D*T_pad) stores.
    a2 = conv_layer(act_scr, c_mid_pad, w2_ref, b2_ref)      # (C_out, N_comp)
    for b in range(BB):
        o_ref[b] = jnp.where(keeps[b], a2[:, b * segN:b * segN + ND],
                             0.0).astype(o_ref.dtype)


def mask_conv_forward(x_nchw, lengths, params, *, min_val=0.0, max_val=20.0):
    """MaskConv.forward for the 2x [Conv2d(3x3, stride 1, pad 1) + Hardtanh]
    DeepSpeech stack, fused into one pallas_call.

    x_nchw: (B, C, D, T) f32; lengths: (B,) int; params: two (w_oihw, bias)
    pairs in PyTorch Conv2d layout.  Returns (out_nchw, lengths)."""
    # TODO(synk): seq_module is arbitrary in PyTorch; this kernel covers the
    # Conv2d+Hardtanh stack only (BatchNorm2d omitted, as before).
    assert len(params) == 2, "fused kernel expects the 2-conv DeepSpeech stack"
    (w1, b1), (w2, b2) = params
    B, C_in, D, T = x_nchw.shape
    C_mid, C_out = w1.shape[0], w2.shape[0]
    assert w1.shape == (C_mid, C_in, 3, 3) and w2.shape == (C_out, C_mid, 3, 3)

    c_in_pad = _round_up(C_in, 8)
    c_mid_pad = _round_up(C_mid, 8)

    # Per-row lane stride padded to a multiple of 128 with >= 1 zero gap lane:
    # kills edge masks and keeps the kd=+-1 tap slices 128-aligned.
    T_pad = _round_up(T + 1, 128)
    ND = D * T_pad
    segN = (D + 1) * T_pad          # D data rows + 1 zero separator row
    lead = T_pad + 128              # 128-aligned top halo (>= T_pad + 1)
    tail = T_pad + 128

    # Fold up to 8 batch rows into the lane axis of each contraction; pad
    # ragged batches instead of degrading to one row per step.  Prefer >= 2
    # steps on the "parallel" axis so v7x's 2 TensorCores both get work
    # (costs one extra ~0.35us step on 1-TC v5e/v6e -- negligible).
    BB = min(B, 8)
    if B // BB < 2 and BB > 1:
        BB = max(1, BB // 2)
    B_pad = _round_up(B, BB)
    grid = (B_pad // BB,)

    N_comp = BB * segN
    n_lanes = lead + N_comp + tail

    # TODO(synk): at realistic DeepSpeech shapes (D~161, T~1000+) tile T with
    # a KT-1 halo and use bf16 I/O on v6e/v7x; size N_comp so
    # (in+out blocks)*2 + scratches <= vmem_limit_bytes.

    w1_p = _pack_weight(w1, c_in_pad)           # (C_mid, 9*c_in_pad)
    w2_p = _pack_weight(w2, c_mid_pad)          # (C_out, 9*c_mid_pad)
    b1_c = b1.reshape(C_mid, 1).astype(jnp.float32)
    b2_c = b2.reshape(C_out, 1).astype(jnp.float32)

    # Pad T -> T_pad (the zeros double as the conv's 'same' padding and the
    # inter-row gap) and the batch -> B_pad, then flatten (D, T_pad).
    x_p = jnp.pad(x_nchw.astype(jnp.float32),
                  ((0, B_pad - B), (0, 0), (0, 0), (0, T_pad - T)))
    x_flat = x_p.reshape(B_pad, C_in, ND)
    lengths_p = jnp.pad(lengths.astype(jnp.int32), (0, B_pad - B))

    # (1, D*T_pad) within-row time index; reused for gap zeroing + MaskConv.
    col_map = jnp.broadcast_to(jnp.arange(T_pad, dtype=jnp.int32)[None, :],
                               (D, T_pad)).reshape(1, ND)

    kernel = functools.partial(
        _fused_maskconv_kernel,
        BB=BB, D=D, T=T, T_pad=T_pad, lead=lead, segN=segN,
        N_comp=N_comp, n_lanes=n_lanes,
        C_in=C_in, c_in_pad=c_in_pad, C_mid=C_mid, c_mid_pad=c_mid_pad,
        min_val=min_val, max_val=max_val)

    k_max = 9 * max(c_in_pad, c_mid_pad)
    grid_spec = pltpu.PrefetchScalarGridSpec(
        num_scalar_prefetch=1,                         # lengths -> SMEM
        grid=grid,
        in_specs=[
            pl.BlockSpec((1, ND), lambda i, lens: (0, 0)),                 # col
            pl.BlockSpec((BB, C_in, ND), lambda i, lens: (i, 0, 0)),       # x
            pl.BlockSpec((C_mid, 9 * c_in_pad), lambda i, lens: (0, 0)),   # w1
            pl.BlockSpec((C_mid, 1), lambda i, lens: (0, 0)),              # b1
            pl.BlockSpec((C_out, 9 * c_mid_pad), lambda i, lens: (0, 0)),  # w2
            pl.BlockSpec((C_out, 1), lambda i, lens: (0, 0)),              # b2
        ],
        out_specs=pl.BlockSpec((BB, C_out, ND), lambda i, lens: (i, 0, 0)),
        scratch_shapes=[
            pltpu.VMEM((c_in_pad, n_lanes), jnp.float32),   # padded L1 input
            pltpu.VMEM((c_mid_pad, n_lanes), jnp.float32),  # padded L1 output
            pltpu.VMEM((k_max, N_comp), jnp.float32),       # im2col slab
        ],
    )

    out_flat = pl.pallas_call(
        kernel,
        out_shape=jax.ShapeDtypeStruct((B_pad, C_out, ND), jnp.float32),
        grid_spec=grid_spec,
        compiler_params=pltpu.CompilerParams(
            dimension_semantics=("parallel",),
            vmem_limit_bytes=48 * 1024 * 1024),
    )(lengths_p, col_map, x_flat, w1_p, b1_c, w2_p, b2_c)

    # Lane-dense padded output back to NCHW; the [:T] slice is the only
    # wrapper-side copy (T_pad/T extra bytes, ~2.4% at realistic T).
    out = out_flat.reshape(B_pad, C_out, D, T_pad)[:B, :, :, :T]
    return out, lengths


def _reference_forward(x_nchw, lengths, params, *, min_val=0.0, max_val=20.0):
    """Pure-JAX/XLA reference with identical semantics."""
    T = x_nchw.shape[3]
    t_idx = jnp.arange(T, dtype=jnp.int32)
    x = x_nchw
    for (w, b) in params:
        x = lax.conv_general_dilated(
            x, w, window_strides=(1, 1), padding=((1, 1), (1, 1)),
            dimension_numbers=("NCHW", "OIHW", "NCHW"),
            precision=lax.Precision.HIGHEST)
        x = x + b.reshape(1, -1, 1, 1)
        x = jnp.clip(x, min_val, max_val)
        x = jnp.where(t_idx[None, None, None, :] < lengths[:, None, None, None],
                      x, 0.0)
    return x


if __name__ == "__main__":
    key = jax.random.PRNGKey(0)
    k1, k2, k3, k4, kx = jax.random.split(key, 5)

    B, C_in, D, T = 2, 4, 16, 16
    C_mid = 8

    # nn.Conv2d(C_in->C_mid, 3, padding=1) / nn.Conv2d(C_mid->C_mid, 3, padding=1)
    w1 = jax.random.normal(k1, (C_mid, C_in, 3, 3), jnp.float32) * 0.1   # OIHW
    b1 = jax.random.normal(k2, (C_mid,), jnp.float32) * 0.1
    w2 = jax.random.normal(k3, (C_mid, C_mid, 3, 3), jnp.float32) * 0.1
    b2 = jax.random.normal(k4, (C_mid,), jnp.float32) * 0.1
    params = [(w1, b1), (w2, b2)]

    x = jax.random.normal(kx, (B, C_in, D, T), jnp.float32)   # BxCxDxT
    lengths = jnp.array([16, 10], dtype=jnp.int32)

    out, out_lengths = mask_conv_forward(x, lengths, params)
    out = jax.block_until_ready(out)
    assert out.shape == (B, C_mid, D, T)

    # Correctness vs. pure-XLA reference.  The 5e-2 tolerance is intentional:
    # the kernel uses default MXU f32 precision (bf16 passes) while the
    # reference uses lax.Precision.HIGHEST; structural errors would be >= 1e-1.
    ref = _reference_forward(x, lengths, params)
    max_err = float(jnp.max(jnp.abs(out - ref)))
    assert max_err < 5e-2, f"kernel/reference mismatch: {max_err}"

    # masked time steps are exactly zero for the short sequence
    assert float(jnp.abs(out[1, :, :, int(lengths[1]):]).max()) == 0.0

    print("KERNEL_OK")
</pallas_src>

<mosaic_0001>
module attributes {stable_mosaic.version = 11 : i64} {
  func.func @_fused_maskconv_kernel(%arg0: i32, %arg1: memref<2xi32, #tpu.memory_space<smem>>, %arg2: memref<1x2048xi32, #tpu.memory_space<vmem>>, %arg3: memref<1x4x2048xf32, #tpu.memory_space<vmem>>, %arg4: memref<8x72xf32, #tpu.memory_space<vmem>>, %arg5: memref<8x1xf32, #tpu.memory_space<vmem>>, %arg6: memref<8x72xf32, #tpu.memory_space<vmem>>, %arg7: memref<8x1xf32, #tpu.memory_space<vmem>>, %arg8: memref<1x8x2048xf32, #tpu.memory_space<vmem>>, %arg9: memref<8x2688xf32, #tpu.memory_space<vmem>>, %arg10: memref<8x2688xf32, #tpu.memory_space<vmem>>, %arg11: memref<72x2176xf32, #tpu.memory_space<vmem>>) attributes {dimension_semantics = [#tpu.dimension_semantics<parallel>], iteration_bounds = array<i64: 2>, scalar_prefetch = 1 : i64, scratch_operands = 3 : i64, tpu.core_type = #tpu.core_type<tc>, window_params = [{pipeline_mode = #tpu.pipeline_mode<synchronous>, transform_indices = @transform_0, window_bounds = array<i64: 1, 2048>}, {transform_indices = @transform_1, window_bounds = array<i64: 1, 4, 2048>}, {pipeline_mode = #tpu.pipeline_mode<synchronous>, transform_indices = @transform_2, window_bounds = array<i64: 8, 72>}, {pipeline_mode = #tpu.pipeline_mode<synchronous>, transform_indices = @transform_3, window_bounds = array<i64: 8, 1>}, {pipeline_mode = #tpu.pipeline_mode<synchronous>, transform_indices = @transform_4, window_bounds = array<i64: 8, 72>}, {pipeline_mode = #tpu.pipeline_mode<synchronous>, transform_indices = @transform_5, window_bounds = array<i64: 8, 1>}, {transform_indices = @transform_6, window_bounds = array<i64: 1, 8, 2048>}]} {
    %c1_i32 = arith.constant 1 : i32
    %0 = arith.muli %arg0, %c1_i32 : i32
    %c0 = arith.constant 0 : index
    %c0_0 = arith.constant 0 : index
    %1 = vector.load %arg2[%c0, %c0_0] : memref<1x2048xi32, #tpu.memory_space<vmem>>, vector<1x2048xi32>
    %c0_i32 = arith.constant 0 : i32
    %2 = arith.addi %0, %c0_i32 : i32
    %3 = arith.index_cast %2 : i32 to index
    %4 = memref.load %arg1[%3] : memref<2xi32, #tpu.memory_space<smem>>
    %c16_i32 = arith.constant 16 : i32
    %5 = arith.minsi %4, %c16_i32 : i32
    %6 = vector.broadcast %5 : i32 to vector<1x2048xi32>
    %7 = arith.cmpi slt, %1, %6 : vector<1x2048xi32>
    %cst = arith.constant 0.000000e+00 : f32
    %8 = vector.broadcast %cst : f32 to vector<4x2688xf32>
    %c4 = arith.constant 4 : index
    %c0_1 = arith.constant 0 : index
    %9 = vector.load %arg9[%c4, %c0_1] : memref<8x2688xf32, #tpu.memory_space<vmem>>, vector<4x2688xf32>
    tpu.vector_store %arg9[%c4, %c0_1], %8 {strides = array<i32>} : memref<8x2688xf32, #tpu.memory_space<vmem>>, vector<4x2688xf32>,
    %cst_2 = arith.constant 0.000000e+00 : f32
    %10 = vector.broadcast %cst_2 : f32 to vector<4x256xf32>
    %c0_3 = arith.constant 0 : index
    %c0_4 = arith.constant 0 : index
    %11 = vector.load %arg9[%c0_3, %c0_4] : memref<8x2688xf32, #tpu.memory_space<vmem>>, vector<4x256xf32>
    tpu.vector_store %arg9[%c0_3, %c0_4], %10 {strides = array<i32>} : memref<8x2688xf32, #tpu.memory_space<vmem>>, vector<4x256xf32>,
    %cst_5 = arith.constant 0.000000e+00 : f32
    %12 = vector.broadcast %cst_5 : f32 to vector<8x256xf32>
    %c0_6 = arith.constant 0 : index
    %c0_7 = arith.constant 0 : index
    %13 = vector.load %arg10[%c0_6, %c0_7] : memref<8x2688xf32, #tpu.memory_space<vmem>>, vector<8x256xf32>
    tpu.vector_store %arg10[%c0_6, %c0_7], %12 {strides = array<i32>} : memref<8x2688xf32, #tpu.memory_space<vmem>>, vector<8x256xf32>,
    %cst_8 = arith.constant 0.000000e+00 : f32
    %14 = vector.broadcast %cst_8 : f32 to vector<4x256xf32>
    %c0_9 = arith.constant 0 : index
    %c2432 = arith.constant 2432 : index
    %15 = vector.load %arg9[%c0_9, %c2432] : memref<8x2688xf32, #tpu.memory_space<vmem>>, vector<4x256xf32>
    tpu.vector_store %arg9[%c0_9, %c2432], %14 {strides = array<i32>} : memref<8x2688xf32, #tpu.memory_space<vmem>>, vector<4x256xf32>,
    %cst_10 = arith.constant 0.000000e+00 : f32
    %16 = vector.broadcast %cst_10 : f32 to vector<8x256xf32>
    %c0_11 = arith.constant 0 : index
    %c2432_12 = arith.constant 2432 : index
    %17 = vector.load %arg10[%c0_11, %c2432_12] : memref<8x2688xf32, #tpu.memory_space<vmem>>, vector<8x256xf32>
    tpu.vector_store %arg10[%c0_11, %c2432_12], %16 {strides = array<i32>} : memref<8x2688xf32, #tpu.memory_space<vmem>>, vector<8x256xf32>,
    %cst_13 = arith.constant 0.000000e+00 : f32
    %18 = vector.broadcast %cst_13 : f32 to vector<4x128xf32>
    %c0_14 = arith.constant 0 : index
    %c2304 = arith.constant 2304 : index
    %19 = vector.load %arg9[%c0_14, %c2304] : memref<8x2688xf32, #tpu.memory_space<vmem>>, vector<4x128xf32>
    tpu.vector_store %arg9[%c0_14, %c2304], %18 {strides = array<i32>} : memref<8x2688xf32, #tpu.memory_space<vmem>>, vector<4x128xf32>,
    %cst_15 = arith.constant 0.000000e+00 : f32
    %20 = vector.broadcast %cst_15 : f32 to vector<8x128xf32>
    %c0_16 = arith.constant 0 : index
    %c2304_17 = arith.constant 2304 : index
    %21 = vector.load %arg10[%c0_16, %c2304_17] : memref<8x2688xf32, #tpu.memory_space<vmem>>, vector<8x128xf32>
    tpu.vector_store %arg10[%c0_16, %c2304_17], %20 {strides = array<i32>} : memref<8x2688xf32, #tpu.memory_space<vmem>>, vector<8x128xf32>,
    %c0_18 = arith.constant 0 : index
    %c0_19 = arith.constant 0 : index
    %c0_20 = arith.constant 0 : index
    %22 = vector.load %arg3[%c0_18, %c0_19, %c0_20] : memref<1x4x2048xf32, #tpu.memory_space<vmem>>, vector<1x4x2048xf32>
    %23 = vector.shape_cast %22 : vector<1x4x2048xf32> to vector<4x2048xf32>
    %c0_21 = arith.constant 0 : index
    %c256 = arith.constant 256 : index
    %24 = vector.load %arg9[%c0_21, %c256] : memref<8x2688xf32, #tpu.memory_space<vmem>>, vector<4x2048xf32>
    tpu.vector_store %arg9[%c0_21, %c256], %23 {strides = array<i32>} : memref<8x2688xf32, #tpu.memory_space<vmem>>, vector<4x2048xf32>,
    %c0_22 = arith.constant 0 : index
    %c127 = arith.constant 127 : index
    %25 = vector.load %arg9[%c0_22, %c127] : memref<8x2688xf32, #tpu.memory_space<vmem>>, vector<8x2176xf32>
    %c0_23 = arith.constant 0 : index
    %c0_24 = arith.constant 0 : index
    %26 = vector.load %arg11[%c0_23, %c0_24] : memref<72x2176xf32, #tpu.memory_space<vmem>>, vector<8x2176xf32>
    tpu.vector_store %arg11[%c0_23, %c0_24], %25 {strides = array<i32>} : memref<72x2176xf32, #tpu.memory_space<vmem>>, vector<8x2176xf32>,
    %c0_25 = arith.constant 0 : index
    %c128 = arith.constant 128 : index
    %27 = vector.load %arg9[%c0_25, %c128] : memref<8x2688xf32, #tpu.memory_space<vmem>>, vector<8x2176xf32>
    %c8 = arith.constant 8 : index
    %c0_26 = arith.constant 0 : index
    %28 = vector.load %arg11[%c8, %c0_26] : memref<72x2176xf32, #tpu.memory_space<vmem>>, vector<8x2176xf32>
    tpu.vector_store %arg11[%c8, %c0_26], %27 {strides = array<i32>} : memref<72x2176xf32, #tpu.memory_space<vmem>>, vector<8x2176xf32>,
    %c0_27 = arith.constant 0 : index
    %c129 = arith.constant 129 : index
    %29 = vector.load %arg9[%c0_27, %c129] : memref<8x2688xf32, #tpu.memory_space<vmem>>, vector<8x2176xf32>
    %c16 = arith.constant 16 : index
    %c0_28 = arith.constant 0 : index
    %30 = vector.load %arg11[%c16, %c0_28] : memref<72x2176xf32, #tpu.memory_space<vmem>>, vector<8x2176xf32>
    tpu.vector_store %arg11[%c16, %c0_28], %29 {strides = array<i32>} : memref<72x2176xf32, #tpu.memory_space<vmem>>, vector<8x2176xf32>,
    %c0_29 = arith.constant 0 : index
    %c255 = arith.constant 255 : index
    %31 = vector.load %arg9[%c0_29, %c255] : memref<8x2688xf32, #tpu.memory_space<vmem>>, vector<8x2176xf32>
    %c24 = arith.constant 24 : index
    %c0_30 = arith.constant 0 : index
    %32 = vector.load %arg11[%c24, %c0_30] : memref<72x2176xf32, #tpu.memory_space<vmem>>, vector<8x2176xf32>
    tpu.vector_store %arg11[%c24, %c0_30], %31 {strides = array<i32>} : memref<72x2176xf32, #tpu.memory_space<vmem>>, vector<8x2176xf32>,
    %c0_31 = arith.constant 0 : index
    %c256_32 = arith.constant 256 : index
    %33 = vector.load %arg9[%c0_31, %c256_32] : memref<8x2688xf32, #tpu.memory_space<vmem>>, vector<8x2176xf32>
    %c32 = arith.constant 32 : index
    %c0_33 = arith.constant 0 : index
    %34 = vector.load %arg11[%c32, %c0_33] : memref<72x2176xf32, #tpu.memory_space<vmem>>, vector<8x2176xf32>
    tpu.vector_store %arg11[%c32, %c0_33], %33 {strides = array<i32>} : memref<72x2176xf32, #tpu.memory_space<vmem>>, vector<8x2176xf32>,
    %c0_34 = arith.constant 0 : index
    %c257 = arith.constant 257 : index
    %35 = vector.load %arg9[%c0_34, %c257] : memref<8x2688xf32, #tpu.memory_space<vmem>>, vector<8x2176xf32>
    %c40 = arith.constant 40 : index
    %c0_35 = arith.constant 0 : index
    %36 = vector.load %arg11[%c40, %c0_35] : memref<72x2176xf32, #tpu.memory_space<vmem>>, vector<8x2176xf32>
    tpu.vector_store %arg11[%c40, %c0_35], %35 {strides = array<i32>} : memref<72x2176xf32, #tpu.memory_space<vmem>>, vector<8x2176xf32>,
    %c0_36 = arith.constant 0 : index
    %c383 = arith.constant 383 : index
    %37 = vector.load %arg9[%c0_36, %c383] : memref<8x2688xf32, #tpu.memory_space<vmem>>, vector<8x2176xf32>
    %c48 = arith.constant 48 : index
    %c0_37 = arith.constant 0 : index
    %38 = vector.load %arg11[%c48, %c0_37] : memref<72x2176xf32, #tpu.memory_space<vmem>>, vector<8x2176xf32>
    tpu.vector_store %arg11[%c48, %c0_37], %37 {strides = array<i32>} : memref<72x2176xf32, #tpu.memory_space<vmem>>, vector<8x2176xf32>,
    %c0_38 = arith.constant 0 : index
    %c384 = arith.constant 384 : index
    %39 = vector.load %arg9[%c0_38, %c384] : memref<8x2688xf32, #tpu.memory_space<vmem>>, vector<8x2176xf32>
    %c56 = arith.constant 56 : index
    %c0_39 = arith.constant 0 : index
    %40 = vector.load %arg11[%c56, %c0_39] : memref<72x2176xf32, #tpu.memory_space<vmem>>, vector<8x2176xf32>
    tpu.vector_store %arg11[%c56, %c0_39], %39 {strides = array<i32>} : memref<72x2176xf32, #tpu.memory_space<vmem>>, vector<8x2176xf32>,
    %c0_40 = arith.constant 0 : index
    %c385 = arith.constant 385 : index
    %41 = vector.load %arg9[%c0_40, %c385] : memref<8x2688xf32, #tpu.memory_space<vmem>>, vector<8x2176xf32>
    %c64 = arith.constant 64 : index
    %c0_41 = arith.constant 0 : index
    %42 = vector.load %arg11[%c64, %c0_41] : memref<72x2176xf32, #tpu.memory_space<vmem>>, vector<8x2176xf32>
    tpu.vector_store %arg11[%c64, %c0_41], %41 {strides = array<i32>} : memref<72x2176xf32, #tpu.memory_space<vmem>>, vector<8x2176xf32>,
    %c0_42 = arith.constant 0 : index
    %c0_43 = arith.constant 0 : index
    %43 = vector.load %arg4[%c0_42, %c0_43] : memref<8x72xf32, #tpu.memory_space<vmem>>, vector<8x72xf32>
    %c0_44 = arith.constant 0 : index
    %c0_45 = arith.constant 0 : index
    %44 = vector.load %arg11[%c0_44, %c0_45] : memref<72x2176xf32, #tpu.memory_space<vmem>>, vector<72x2176xf32>
    %cst_46 = arith.constant dense<0.000000e+00> : vector<8x2176xf32>
    %45 = tpu.matmul %43, %44, %cst_46 {dimension_numbers = #tpu.dot_dimension_numbers<[1], [0], [0], [1], [0, 0, 1, 1], [], []>} : vector<8x72xf32>, vector<72x2176xf32>, vector<8x2176xf32> -> vector<8x2176xf32>
    %c0_47 = arith.constant 0 : index
    %c0_48 = arith.constant 0 : index
    %46 = vector.load %arg5[%c0_47, %c0_48] : memref<8x1xf32, #tpu.memory_space<vmem>>, vector<8x1xf32>
    %47 = vector.broadcast %46 : vector<8x1xf32> to vector<8x2176xf32>
    %48 = arith.addf %45, %47 : vector<8x2176xf32>
    %cst_49 = arith.constant 0.000000e+00 : f32
    %cst_50 = arith.constant 2.000000e+01 : f32
    %49 = vector.broadcast %cst_49 : f32 to vector<8x2176xf32>
    %50 = arith.maximumf %49, %48 : vector<8x2176xf32>
    %51 = vector.broadcast %cst_50 : f32 to vector<8x2176xf32>
    %52 = arith.minimumf %51, %50 : vector<8x2176xf32>
    %53 = vector.extract_strided_slice %52 {offsets = [0, 0], sizes = [8, 2048], strides = [1, 1]} : vector<8x2176xf32> to vector<8x2048xf32>
    %cst_51 = arith.constant 0.000000e+00 : f32
    %54 = vector.shape_cast %7 : vector<1x2048xi1> to vector<1x2048xi1>
    %55 = vector.broadcast %54 : vector<1x2048xi1> to vector<8x2048xi1>
    %56 = vector.broadcast %cst_51 : f32 to vector<8x2048xf32>
    %57 = arith.select %55, %53, %56 : vector<8x2048xi1>, vector<8x2048xf32>
    %c0_52 = arith.constant 0 : index
    %c256_53 = arith.constant 256 : index
    %58 = vector.load %arg10[%c0_52, %c256_53] : memref<8x2688xf32, #tpu.memory_space<vmem>>, vector<8x2048xf32>
    tpu.vector_store %arg10[%c0_52, %c256_53], %57 {strides = array<i32>} : memref<8x2688xf32, #tpu.memory_space<vmem>>, vector<8x2048xf32>,
    %c0_54 = arith.constant 0 : index
    %c127_55 = arith.constant 127 : index
    %59 = vector.load %arg10[%c0_54, %c127_55] : memref<8x2688xf32, #tpu.memory_space<vmem>>, vector<8x2176xf32>
    %c0_56 = arith.constant 0 : index
    %c0_57 = arith.constant 0 : index
    %60 = vector.load %arg11[%c0_56, %c0_57] : memref<72x2176xf32, #tpu.memory_space<vmem>>, vector<8x2176xf32>
    tpu.vector_store %arg11[%c0_56, %c0_57], %59 {strides = array<i32>} : memref<72x2176xf32, #tpu.memory_space<vmem>>, vector<8x2176xf32>,
    %c0_58 = arith.constant 0 : index
    %c128_59 = arith.constant 128 : index
    %61 = vector.load %arg10[%c0_58, %c128_59] : memref<8x2688xf32, #tpu.memory_space<vmem>>, vector<8x2176xf32>
    %c8_60 = arith.constant 8 : index
    %c0_61 = arith.constant 0 : index
    %62 = vector.load %arg11[%c8_60, %c0_61] : memref<72x2176xf32, #tpu.memory_space<vmem>>, vector<8x2176xf32>
    tpu.vector_store %arg11[%c8_60, %c0_61], %61 {strides = array<i32>} : memref<72x2176xf32, #tpu.memory_space<vmem>>, vector<8x2176xf32>,
    %c0_62 = arith.constant 0 : index
    %c129_63 = arith.constant 129 : index
    %63 = vector.load %arg10[%c0_62, %c129_63] : memref<8x2688xf32, #tpu.memory_space<vmem>>, vector<8x2176xf32>
    %c16_64 = arith.constant 16 : index
    %c0_65 = arith.constant 0 : index
    %64 = vector.load %arg11[%c16_64, %c0_65] : memref<72x2176xf32, #tpu.memory_space<vmem>>, vector<8x2176xf32>
    tpu.vector_store %arg11[%c16_64, %c0_65], %63 {strides = array<i32>} : memref<72x2176xf32, #tpu.memory_space<vmem>>, vector<8x2176xf32>,
    %c0_66 = arith.constant 0 : index
    %c255_67 = arith.constant 255 : index
    %65 = vector.load %arg10[%c0_66, %c255_67] : memref<8x2688xf32, #tpu.memory_space<vmem>>, vector<8x2176xf32>
    %c24_68 = arith.constant 24 : index
    %c0_69 = arith.constant 0 : index
    %66 = vector.load %arg11[%c24_68, %c0_69] : memref<72x2176xf32, #tpu.memory_space<vmem>>, vector<8x2176xf32>
    tpu.vector_store %arg11[%c24_68, %c0_69], %65 {strides = array<i32>} : memref<72x2176xf32, #tpu.memory_space<vmem>>, vector<8x2176xf32>,
    %c0_70 = arith.constant 0 : index
    %c256_71 = arith.constant 256 : index
    %67 = vector.load %arg10[%c0_70, %c256_71] : memref<8x2688xf32, #tpu.memory_space<vmem>>, vector<8x2176xf32>
    %c32_72 = arith.constant 32 : index
    %c0_73 = arith.constant 0 : index
    %68 = vector.load %arg11[%c32_72, %c0_73] : memref<72x2176xf32, #tpu.memory_space<vmem>>, vector<8x2176xf32>
    tpu.vector_store %arg11[%c32_72, %c0_73], %67 {strides = array<i32>} : memref<72x2176xf32, #tpu.memory_space<vmem>>, vector<8x2176xf32>,
    %c0_74 = arith.constant 0 : index
    %c257_75 = arith.constant 257 : index
    %69 = vector.load %arg10[%c0_74, %c257_75] : memref<8x2688xf32, #tpu.memory_space<vmem>>, vector<8x2176xf32>
    %c40_76 = arith.constant 40 : index
    %c0_77 = arith.constant 0 : index
    %70 = vector.load %arg11[%c40_76, %c0_77] : memref<72x2176xf32, #tpu.memory_space<vmem>>, vector<8x2176xf32>
    tpu.vector_store %arg11[%c40_76, %c0_77], %69 {strides = array<i32>} : memref<72x2176xf32, #tpu.memory_space<vmem>>, vector<8x2176xf32>,
    %c0_78 = arith.constant 0 : index
    %c383_79 = arith.constant 383 : index
    %71 = vector.load %arg10[%c0_78, %c383_79] : memref<8x2688xf32, #tpu.memory_space<vmem>>, vector<8x2176xf32>
    %c48_80 = arith.constant 48 : index
    %c0_81 = arith.constant 0 : index
    %72 = vector.load %arg11[%c48_80, %c0_81] : memref<72x2176xf32, #tpu.memory_space<vmem>>, vector<8x2176xf32>
    tpu.vector_store %arg11[%c48_80, %c0_81], %71 {strides = array<i32>} : memref<72x2176xf32, #tpu.memory_space<vmem>>, vector<8x2176xf32>,
    %c0_82 = arith.constant 0 : index
    %c384_83 = arith.constant 384 : index
    %73 = vector.load %arg10[%c0_82, %c384_83] : memref<8x2688xf32, #tpu.memory_space<vmem>>, vector<8x2176xf32>
    %c56_84 = arith.constant 56 : index
    %c0_85 = arith.constant 0 : index
    %74 = vector.load %arg11[%c56_84, %c0_85] : memref<72x2176xf32, #tpu.memory_space<vmem>>, vector<8x2176xf32>
    tpu.vector_store %arg11[%c56_84, %c0_85], %73 {strides = array<i32>} : memref<72x2176xf32, #tpu.memory_space<vmem>>, vector<8x2176xf32>,
    %c0_86 = arith.constant 0 : index
    %c385_87 = arith.constant 385 : index
    %75 = vector.load %arg10[%c0_86, %c385_87] : memref<8x2688xf32, #tpu.memory_space<vmem>>, vector<8x2176xf32>
    %c64_88 = arith.constant 64 : index
    %c0_89 = arith.constant 0 : index
    %76 = vector.load %arg11[%c64_88, %c0_89] : memref<72x2176xf32, #tpu.memory_space<vmem>>, vector<8x2176xf32>
    tpu.vector_store %arg11[%c64_88, %c0_89], %75 {strides = array<i32>} : memref<72x2176xf32, #tpu.memory_space<vmem>>, vector<8x2176xf32>,
    %c0_90 = arith.constant 0 : index
    %c0_91 = arith.constant 0 : index
    %77 = vector.load %arg6[%c0_90, %c0_91] : memref<8x72xf32, #tpu.memory_space<vmem>>, vector<8x72xf32>
    %c0_92 = arith.constant 0 : index
    %c0_93 = arith.constant 0 : index
    %78 = vector.load %arg11[%c0_92, %c0_93] : memref<72x2176xf32, #tpu.memory_space<vmem>>, vector<72x2176xf32>
    %cst_94 = arith.constant dense<0.000000e+00> : vector<8x2176xf32>
    %79 = tpu.matmul %77, %78, %cst_94 {dimension_numbers = #tpu.dot_dimension_numbers<[1], [0], [0], [1], [0, 0, 1, 1], [], []>} : vector<8x72xf32>, vector<72x2176xf32>, vector<8x2176xf32> -> vector<8x2176xf32>
    %c0_95 = arith.constant 0 : index
    %c0_96 = arith.constant 0 : index
    %80 = vector.load %arg7[%c0_95, %c0_96] : memref<8x1xf32, #tpu.memory_space<vmem>>, vector<8x1xf32>
    %81 = vector.broadcast %80 : vector<8x1xf32> to vector<8x2176xf32>
    %82 = arith.addf %79, %81 : vector<8x2176xf32>
    %cst_97 = arith.constant 0.000000e+00 : f32
    %cst_98 = arith.constant 2.000000e+01 : f32
    %83 = vector.broadcast %cst_97 : f32 to vector<8x2176xf32>
    %84 = arith.maximumf %83, %82 : vector<8x2176xf32>
    %85 = vector.broadcast %cst_98 : f32 to vector<8x2176xf32>
    %86 = arith.minimumf %85, %84 : vector<8x2176xf32>
    %87 = vector.extract_strided_slice %86 {offsets = [0, 0], sizes = [8, 2048], strides = [1, 1]} : vector<8x2176xf32> to vector<8x2048xf32>
    %cst_99 = arith.constant 0.000000e+00 : f32
    %88 = vector.shape_cast %7 : vector<1x2048xi1> to vector<1x2048xi1>
    %89 = vector.broadcast %88 : vector<1x2048xi1> to vector<8x2048xi1>
    %90 = vector.broadcast %cst_99 : f32 to vector<8x2048xf32>
    %91 = arith.select %89, %87, %90 : vector<8x2048xi1>, vector<8x2048xf32>
    %c0_100 = arith.constant 0 : index
    %c0_101 = arith.constant 0 : index
    %c0_102 = arith.constant 0 : index
    %92 = vector.load %arg8[%c0_100, %c0_101, %c0_102] : memref<1x8x2048xf32, #tpu.memory_space<vmem>>, vector<1x8x2048xf32>
    %93 = vector.shape_cast %92 : vector<1x8x2048xf32> to vector<8x2048xf32>
    %94 = vector.shape_cast %91 : vector<8x2048xf32> to vector<1x8x2048xf32>
    tpu.vector_store %arg8[%c0_100, %c0_101, %c0_102], %94 {strides = array<i32>} : memref<1x8x2048xf32, #tpu.memory_space<vmem>>, vector<1x8x2048xf32>,
    return
  }
  func.func @transform_0(%arg0: i32, %arg1: memref<2xi32, #tpu.memory_space<smem>>) -> (i32, i32) {
    %c0_i32 = arith.constant 0 : i32
    %c0_i32_0 = arith.constant 0 : i32
    %c0_i32_1 = arith.constant 0 : i32
    return %c0_i32, %c0_i32_0 : i32, i32
  }
  func.func @transform_1(%arg0: i32, %arg1: memref<2xi32, #tpu.memory_space<smem>>) -> (i32, i32, i32) {
    %c0_i32 = arith.constant 0 : i32
    %c0_i32_0 = arith.constant 0 : i32
    %c0_i32_1 = arith.constant 0 : i32
    return %arg0, %c0_i32, %c0_i32_0 : i32, i32, i32
  }
  func.func @transform_2(%arg0: i32, %arg1: memref<2xi32, #tpu.memory_space<smem>>) -> (i32, i32) {
    %c0_i32 = arith.constant 0 : i32
    %c0_i32_0 = arith.constant 0 : i32
    %c0_i32_1 = arith.constant 0 : i32
    return %c0_i32, %c0_i32_0 : i32, i32
  }
  func.func @transform_3(%arg0: i32, %arg1: memref<2xi32, #tpu.memory_space<smem>>) -> (i32, i32) {
    %c0_i32 = arith.constant 0 : i32
    %c0_i32_0 = arith.constant 0 : i32
    %c0_i32_1 = arith.constant 0 : i32
    return %c0_i32, %c0_i32_0 : i32, i32
  }
  func.func @transform_4(%arg0: i32, %arg1: memref<2xi32, #tpu.memory_space<smem>>) -> (i32, i32) {
    %c0_i32 = arith.constant 0 : i32
    %c0_i32_0 = arith.constant 0 : i32
    %c0_i32_1 = arith.constant 0 : i32
    return %c0_i32, %c0_i32_0 : i32, i32
  }
  func.func @transform_5(%arg0: i32, %arg1: memref<2xi32, #tpu.memory_space<smem>>) -> (i32, i32) {
    %c0_i32 = arith.constant 0 : i32
    %c0_i32_0 = arith.constant 0 : i32
    %c0_i32_1 = arith.constant 0 : i32
    return %c0_i32, %c0_i32_0 : i32, i32
  }
  func.func @transform_6(%arg0: i32, %arg1: memref<2xi32, #tpu.memory_space<smem>>) -> (i32, i32, i32) {
    %c0_i32 = arith.constant 0 : i32
    %c0_i32_0 = arith.constant 0 : i32
    %c0_i32_1 = arith.constant 0 : i32
    return %arg0, %c0_i32, %c0_i32_0 : i32, i32, i32
  }
}

</mosaic_0001>

<llo_original>
// kernel: tpu_custom_call.1
$region0: #{tpu_custom_call.1}
  #allocation0 [shape = 'u32[]', space=smem, size = 0x4, offset = 0x4, fixed_abs, tag = 'smem constant byte address 0x4 - core index']
  #allocation1 [shape = 'u32[144,128]{1,0:T(1,128)}', space=vmem, size = 0x12000, scoped, tag = 'internal scratch']
  #allocation2 [shape = 'f32[8,2688]{1,0:T(8,128)}', space=vmem, size = 0x15000, scoped, tag = 'scratch operand']
  #allocation3 [shape = 'f32[8,2688]{1,0:T(8,128)}', space=vmem, size = 0x15000, scoped, tag = 'scratch operand']
  #allocation4 [shape = 'f32[72,2176]{1,0:T(8,128)}', space=vmem, size = 0x99000, scoped, tag = 'scratch operand']
  #allocation5 [shape = 's32[1]{0}', space=sflag, size = 0x4, scoped, tag = 'scoped memory for tpu_custom_call.1']
  #allocation6 [shape = 'u8[512]{0}', space=smem, size = 0x200, scoped, tag = 'prefetched SMEM operand 0']
  %s0 = inlined_call_operand.vmem [shape: s32[2], index: 0, kind: input, shape index: {}]
  %s1 = inlined_call_operand.vmem [shape: s32[1,2048], index: 1, kind: input, shape index: {}]
  %s2 = inlined_call_operand.hbm [shape: f32[2,4,2048], index: 2, kind: input, shape index: {}]
  %s3 = inlined_call_operand.vmem [shape: f32[8,72], index: 3, kind: input, shape index: {}]
  %s4 = inlined_call_operand.vmem [shape: f32[8,1], index: 4, kind: input, shape index: {}]
  %s5 = inlined_call_operand.vmem [shape: f32[8,72], index: 5, kind: input, shape index: {}]
  %s6 = inlined_call_operand.vmem [shape: f32[8,1], index: 6, kind: input, shape index: {}]
  %s7 = inlined_call_operand.hbm [shape: f32[2,8,2048], index: 7, kind: output, shape index: {}]
  %s8 = sld [smem:[#allocation0]]
  $region61: #{tpu_custom_call.1} parent=0
    _
  %s10 = ssub.s32 1, %s8
  %s11 = scalar_select 0, %s10, %s8
  %s12 = sshll.u32 %s0, 4
  %s13 = int_to_ptr.vmem [resolvable:$true] %s12
  %15 = dma.vmem_to_smem %s13, 16, [#allocation6], [#allocation5]
  %16 = dma.done [#allocation5], 16
  %17 = sfence
  $region1: #{tpu_custom_call.1} parent=0
    #allocation7 [shape = 'u8[65536]{0}', space=vmem, size = 0x10000, scoped, tag = 'input window, operand 2']
    #allocation8 [shape = 's32[2]{0}', space=sflag, size = 0x8, scoped, tag = 'scoped memory for tpu_custom_call.1']
    #allocation9 [shape = 's32[2]{0}', space=sflag, size = 0x8, scoped, tag = 'scoped memory for tpu_custom_call.1']
    #allocation10 [shape = 'u8[131072]{0}', space=vmem, size = 0x20000, scoped, tag = 'output window, operand 0']
    %18 = vsyncpa [#allocation8], 0
    %s19 = scalar_lea.sflag [#allocation8], 1
    %20 = vsyncpa %s19, 0
    %21 = vsyncpa [#allocation9], 0
    %s22 = scalar_lea.sflag [#allocation9], 1
    %23 = vsyncpa %s22, 0
    loop: start=0, step=1, limit=4
    $region2: #{tpu_custom_call.1} parent=1 // loop_pre_header
      _
    $region3: #{tpu_custom_call.1} parent=1 // loop_header
      %s25 = sphi 0, %s29
      %p26 = scmp.ge.s32.totalorder %s25, 4
      %s33 = sphi 0, %s33
      %s35 = sphi 0, %s33
      %s36 = sphi 0, %s35
      %s50 = sphi 0, %s36
      %s56 = sphi 0, %s58
      %s59 = sphi 0, %s56
      %s60 = sphi 0, %s59
      %s76 = sphi 0, %s60
      %s80 = sphi 0, %s80
      %s82 = sphi 0, %s80
      %s83 = sphi 0, %s82
      %s97 = sphi 0, %s83
      %s101 = sphi 0, %s101
      %s103 = sphi 0, %s101
      %s104 = sphi 0, %s103
      %s118 = sphi 0, %s104
      %s122 = sphi 0, %s122
      %s124 = sphi 0, %s122
      %s125 = sphi 0, %s124
      %s139 = sphi 0, %s125
      %s143 = sphi 0, %s143
      %s145 = sphi 0, %s143
      %s146 = sphi 0, %s145
      %s160 = sphi 0, %s146
      %s166 = sphi 0, %s168
      %s169 = sphi 0, %s166
      %s170 = sphi 0, %s169
      %s186 = sphi 0, %s170
    $region4: #{tpu_custom_call.1} parent=1 // loop_header_branch
      %28 = sbr.rel (%p26) target = $region8
    $region5: #{tpu_custom_call.1} parent=1 // loop_body
      %s30 = ssub.s32 %s25, 1
      %s31 = ssub.s32 %s25, 2
      %s32 = sadd.s32 %s25, 1
      %s34 = sadd.s32 %s33, 1
      %p37 = scmp.eq.s32.totalorder %s25, 1
      %p38 = scmp.ne.s32.totalorder %s33, %s35
      %p39 = scmp.eq.s32.totalorder %s25, 0
      %p40 = por %p38, %p39
      %p41 = scmp.ne.s32.totalorder %s33, %s35
      %p42 = scmp.eq.s32.totalorder %s30, 1
      %p43 = por %p41, %p42
      %p44 = scmp.ne.s32.totalorder %s35, %s36
      %p45 = scmp.eq.s32.totalorder %s30, 0
      %p46 = por %p44, %p45
      %p47 = scmp.ne.s32.totalorder %s35, %s36
      %p48 = scmp.eq.s32.totalorder %s31, 1
      %p49 = por %p47, %p48
      %p51 = scmp.ne.s32.totalorder %s36, %s50
      %p52 = scmp.eq.s32.totalorder %s31, 0
      %p53 = por %p51, %p52
      %s54 = ssub.s32 %s25, %s32
      %p55 = scmp.eq.s32.totalorder %s54, 0
      %s57 = sadd.s32 %s56, 1
      %s58 = scalar_select %p55, %s56, %s57
      %p61 = pneg %p55
      %p62 = scmp.eq.s32.totalorder %s25, 1
      %p63 = por %p61, %p62
      %p64 = scmp.ne.s32.totalorder %s56, %s59
      %p65 = scmp.eq.s32.totalorder %s25, 0
      %p66 = por %p64, %p65
      %p67 = scmp.ne.s32.totalorder %s56, %s59
      %p68 = scmp.eq.s32.totalorder %s30, 1
      %p69 = por %p67, %p68
      %p70 = scmp.ne.s32.totalorder %s59, %s60
      %p71 = scmp.eq.s32.totalorder %s30, 0
      %p72 = por %p70, %p71
      %p73 = scmp.ne.s32.totalorder %s59, %s60
      %p74 = scmp.eq.s32.totalorder %s31, 1
      %p75 = por %p73, %p74
      %p77 = scmp.ne.s32.totalorder %s60, %s76
      %p78 = scmp.eq.s32.totalorder %s31, 0
      %p79 = por %p77, %p78
      %s81 = sadd.s32 %s80, 1
      %p84 = scmp.eq.s32.totalorder %s25, 1
      %p85 = scmp.ne.s32.totalorder %s80, %s82
      %p86 = scmp.eq.s32.totalorder %s25, 0
      %p87 = por %p85, %p86
      %p88 = scmp.ne.s32.totalorder %s80, %s82
      %p89 = scmp.eq.s32.totalorder %s30, 1
      %p90 = por %p88, %p89
      %p91 = scmp.ne.s32.totalorder %s82, %s83
      %p92 = scmp.eq.s32.totalorder %s30, 0
      %p93 = por %p91, %p92
      %p94 = scmp.ne.s32.totalorder %s82, %s83
      %p95 = scmp.eq.s32.totalorder %s31, 1
      %p96 = por %p94, %p95
      %p98 = scmp.ne.s32.totalorder %s83, %s97
      %p99 = scmp.eq.s32.totalorder %s31, 0
      %p100 = por %p98, %p99
      %s102 = sadd.s32 %s101, 1
      %p105 = scmp.eq.s32.totalorder %s25, 1
      %p106 = scmp.ne.s32.totalorder %s101, %s103
      %p107 = scmp.eq.s32.totalorder %s25, 0
      %p108 = por %p106, %p107
      %p109 = scmp.ne.s32.totalorder %s101, %s103
      %p110 = scmp.eq.s32.totalorder %s30, 1
      %p111 = por %p109, %p110
      %p112 = scmp.ne.s32.totalorder %s103, %s104
      %p113 = scmp.eq.s32.totalorder %s30, 0
      %p114 = por %p112, %p113
      %p115 = scmp.ne.s32.totalorder %s103, %s104
      %p116 = scmp.eq.s32.totalorder %s31, 1
      %p117 = por %p115, %p116
      %p119 = scmp.ne.s32.totalorder %s104, %s118
      %p120 = scmp.eq.s32.totalorder %s31, 0
      %p121 = por %p119, %p120
      %s123 = sadd.s32 %s122, 1
      %p126 = scmp.eq.s32.totalorder %s25, 1
      %p127 = scmp.ne.s32.totalorder %s122, %s124
      %p128 = scmp.eq.s32.totalorder %s25, 0
      %p129 = por %p127, %p128
      %p130 = scmp.ne.s32.totalorder %s122, %s124
      %p131 = scmp.eq.s32.totalorder %s30, 1
      %p132 = por %p130, %p131
      %p133 = scmp.ne.s32.totalorder %s124, %s125
      %p134 = scmp.eq.s32.totalorder %s30, 0
      %p135 = por %p133, %p134
      %p136 = scmp.ne.s32.totalorder %s124, %s125
      %p137 = scmp.eq.s32.totalorder %s31, 1
      %p138 = por %p136, %p137
      %p140 = scmp.ne.s32.totalorder %s125, %s139
      %p141 = scmp.eq.s32.totalorder %s31, 0
      %p142 = por %p140, %p141
      %s144 = sadd.s32 %s143, 1
      %p147 = scmp.eq.s32.totalorder %s25, 1
      %p148 = scmp.ne.s32.totalorder %s143, %s145
      %p149 = scmp.eq.s32.totalorder %s25, 0
      %p150 = por %p148, %p149
      %p151 = scmp.ne.s32.totalorder %s143, %s145
      %p152 = scmp.eq.s32.totalorder %s30, 1
      %p153 = por %p151, %p152
      %p154 = scmp.ne.s32.totalorder %s145, %s146
      %p155 = scmp.eq.s32.totalorder %s30, 0
      %p156 = por %p154, %p155
      %p157 = scmp.ne.s32.totalorder %s145, %s146
      %p158 = scmp.eq.s32.totalorder %s31, 1
      %p159 = por %p157, %p158
      %p161 = scmp.ne.s32.totalorder %s146, %s160
      %p162 = scmp.eq.s32.totalorder %s31, 0
      %p163 = por %p161, %p162
      %s164 = ssub.s32 %s25, %s32
      %p165 = scmp.eq.s32.totalorder %s164, 0
      %s167 = sadd.s32 %s166, 1
      %s168 = scalar_select %p165, %s166, %s167
      %p171 = pneg %p165
      %p172 = scmp.eq.s32.totalorder %s25, 1
      %p173 = por %p171, %p172
      %p174 = scmp.ne.s32.totalorder %s166, %s169
      %p175 = scmp.eq.s32.totalorder %s25, 0
      %p176 = por %p174, %p175
      %p177 = scmp.ne.s32.totalorder %s166, %s169
      %p178 = scmp.eq.s32.totalorder %s30, 1
      %p179 = por %p177, %p178
      %p180 = scmp.ne.s32.totalorder %s169, %s170
      %p181 = scmp.eq.s32.totalorder %s30, 0
      %p182 = por %p180, %p181
      %p183 = scmp.ne.s32.totalorder %s169, %s170
      %p184 = scmp.eq.s32.totalorder %s31, 1
      %p185 = por %p183, %p184
      %p187 = scmp.ne.s32.totalorder %s170, %s186
      %p188 = scmp.eq.s32.totalorder %s31, 0
      %p189 = por %p187, %p188
      %p190 = scmp.le.s32.totalorder 1, %s25
      %p191 = scmp.lt.s32.totalorder %s25, 3
      %p192 = pnand %p190, %p191
      %p193 = pneg %p192
      // Predicated region
      $region9: #{tpu_custom_call.1} parent=5 // pred_check
        _
      $region10: #{tpu_custom_call.1} parent=5 // pred_check_branch
        %195 = sbr.rel (%p192) target = $region12
      $region11: #{tpu_custom_call.1} parent=5 // pred_region
        %s196 = ssub.s32 %s25, 1
        // Predicated region
        $region13: #{tpu_custom_call.1} parent=11 // pred_check
          %p197 = pneg %p46
        $region14: #{tpu_custom_call.1} parent=11 // pred_check_branch
          %199 = sbr.rel (%p197) target = $region16
        $region15: #{tpu_custom_call.1} parent=11 // pred_region
          _
        $region16: #{tpu_custom_call.1} parent=11 // pred_fallthru
          _
        // Predicated region
        $region17: #{tpu_custom_call.1} parent=11 // pred_check
          %p200 = pneg %p93
        $region18: #{tpu_custom_call.1} parent=11 // pred_check_branch
          %202 = sbr.rel (%p200) target = $region20
        $region19: #{tpu_custom_call.1} parent=11 // pred_region
          _
        $region20: #{tpu_custom_call.1} parent=11 // pred_fallthru
          _
        // Predicated region
        $region21: #{tpu_custom_call.1} parent=11 // pred_check
          %p203 = pneg %p114
        $region22: #{tpu_custom_call.1} parent=11 // pred_check_branch
          %205 = sbr.rel (%p203) target = $region24
        $region23: #{tpu_custom_call.1} parent=11 // pred_region
          _
        $region24: #{tpu_custom_call.1} parent=11 // pred_fallthru
          _
        // Predicated region
        $region25: #{tpu_custom_call.1} parent=11 // pred_check
          %p206 = pneg %p135
        $region26: #{tpu_custom_call.1} parent=11 // pred_check_branch
          %208 = sbr.rel (%p206) target = $region28
        $region27: #{tpu_custom_call.1} parent=11 // pred_region
          _
        $region28: #{tpu_custom_call.1} parent=11 // pred_fallthru
          _
        // Predicated region
        $region29: #{tpu_custom_call.1} parent=11 // pred_check
          %p209 = pneg %p156
        $region30: #{tpu_custom_call.1} parent=11 // pred_check_branch
          %211 = sbr.rel (%p209) target = $region32
        $region31: #{tpu_custom_call.1} parent=11 // pred_region
          _
        $region32: #{tpu_custom_call.1} parent=11 // pred_fallthru
          _
      $region12: #{tpu_custom_call.1} parent=5 // pred_fallthru
        _
      %p212 = scmp.lt.s32.totalorder %s25, 2
      // Predicated region
      $region33: #{tpu_custom_call.1} parent=5 // pred_check
        %p213 = pneg %p212
      $region34: #{tpu_custom_call.1} parent=5 // pred_check_branch
        %215 = sbr.rel (%p213) target = $region36
      $region35: #{tpu_custom_call.1} parent=5 // pred_region
        // Predicated region
        $region37: #{tpu_custom_call.1} parent=35 // pred_check
          %p216 = pneg %p66
        $region38: #{tpu_custom_call.1} parent=35 // pred_check_branch
          %218 = sbr.rel (%p216) target = $region40
        $region39: #{tpu_custom_call.1} parent=35 // pred_region
          %s219 = sand.u32 %s56, 1
          %s220 = scalar_lea.sflag [#allocation8], %s219
          %s221 = sand.u32 %s56, 1
          %s222 = smul.addr %s221, 64
          %s223 = scalar_lea.vmem [#allocation7], %s222
          %s225 = ssub.s32 1024, 1024
          %226 = vsyncadd %s220, %s225
          %s227 = smul.addr %s25, 16
          %s228 = smul.addr %s227, 64
          %s229 = scalar_lea.hbm %s2, %s228
          %s231 = sshll.u32 %s223, 4
          %s232 = int_to_ptr.vmem [resolvable:$true] %s231
          %234 = dma.hbm_to_vmem [thread:$0]  %s229, 1024, %s232, %s220
        $region40: #{tpu_custom_call.1} parent=35 // pred_fallthru
          _
      $region36: #{tpu_custom_call.1} parent=5 // pred_fallthru
        _
      %p235 = scmp.le.s32.totalorder 1, %s25
      %p236 = scmp.lt.s32.totalorder %s25, 3
      %p237 = pnand %p235, %p236
      %p238 = pneg %p237
      // Predicated region
      $region41: #{tpu_custom_call.1} parent=5 // pred_check
        _
      $region42: #{tpu_custom_call.1} parent=5 // pred_check_branch
        %240 = sbr.rel (%p237) target = $region44
      $region43: #{tpu_custom_call.1} parent=5 // pred_region
        %s241 = ssub.s32 %s25, 1
        %s242 = sand.u32 %s59, 1
        %s243 = scalar_lea.sflag [#allocation8], %s242
        %s244 = sand.u32 %s59, 1
        %s245 = smul.addr %s244, 64
        %s246 = scalar_lea.vmem [#allocation7], %s245
        // Predicated region
        $region45: #{tpu_custom_call.1} parent=43 // pred_check
          %p247 = pneg %p72
        $region46: #{tpu_custom_call.1} parent=43 // pred_check_branch
          %249 = sbr.rel (%p247) target = $region48
        $region47: #{tpu_custom_call.1} parent=43 // pred_region
          %250 = dma.done %s243, 1024
        $region48: #{tpu_custom_call.1} parent=43 // pred_fallthru
          _
        %p251 = pneg %p46
        %p252 = pneg %p43
        %s253 = sand.u32 %s59, 1
        %s254 = scalar_lea.sflag [#allocation8], %s253
        %s255 = sand.u32 %s59, 1
        %s256 = smul.addr %s255, 64
        %s257 = scalar_lea.vmem [#allocation7], %s256
        %p258 = pneg %p72
        %p259 = pneg %p69
        %p260 = pneg %p93
        %p261 = pneg %p90
        %p262 = pneg %p114
        %p263 = pneg %p111
        %p264 = pneg %p135
        %p265 = pneg %p132
        %p266 = pneg %p156
        %p267 = pneg %p153
        %p268 = pneg %p182
        %p269 = pneg %p179
        %s270 = sand.u32 %s169, 1
        %s271 = scalar_lea.sflag [#allocation9], %s270
        %s272 = sand.u32 %s169, 1
        %s273 = smul.addr %s272, 128
        %s274 = scalar_lea.vmem [#allocation10], %s273
        %v275 = vld [vmem:[%s1] sm:$0xff]
        %v276 = vld [vmem:[%s1 + $0x8] sm:$0xff]
        %s277 = sld [smem:[#allocation6 + %s30]]
        %p278 = scmp.lt.s32.totalorder %s277, 16
        %s279 = scalar_select %p278, %s277, 16
        %v280 = vstv %s279
        %vm281 = vcmp.lt.s32.totalorder %v275, %v280
        %vm282 = vcmp.lt.s32.totalorder %v276, %v280
        %283 = vst [vmem:[#allocation2] sm:$0xf0] 0.0
        %284 = vst [vmem:[#allocation2 + $0x8] sm:$0xf0] 0.0
        %285 = vst [vmem:[#allocation2 + $0x10] sm:$0xf0] 0.0
        %286 = vst [vmem:[#allocation2 + $0x18] sm:$0xf0] 0.0
        %287 = vst [vmem:[#allocation2 + $0x20] sm:$0xf0] 0.0
        %288 = vst [vmem:[#allocation2 + $0x28] sm:$0xf0] 0.0
        %289 = vst [vmem:[#allocation2 + $0x30] sm:$0xf0] 0.0
        %290 = vst [vmem:[#allocation2 + $0x38] sm:$0xf0] 0.0
        %291 = vst [vmem:[#allocation2 + $0x40] sm:$0xf0] 0.0
        %292 = vst [vmem:[#allocation2 + $0x48] sm:$0xf0] 0.0
        %293 = vst [vmem:[#allocation2 + $0x50] sm:$0xf0] 0.0
        %294 = vst [vmem:[#allocation2 + $0x58] sm:$0xf0] 0.0
        %295 = vst [vmem:[#allocation2 + $0x60] sm:$0xf0] 0.0
        %296 = vst [vmem:[#allocation2 + $0x68] sm:$0xf0] 0.0
        %297 = vst [vmem:[#allocation2 + $0x70] sm:$0xf0] 0.0
        %298 = vst [vmem:[#allocation2 + $0x78] sm:$0xf0] 0.0
        %299 = vst [vmem:[#allocation2 + $0x80] sm:$0xf0] 0.0
        %300 = vst [vmem:[#allocation2 + $0x88] sm:$0xf0] 0.0
        %301 = vst [vmem:[#allocation2 + $0x90] sm:$0xf0] 0.0
        %302 = vst [vmem:[#allocation2 + $0x98] sm:$0xf0] 0.0
        %303 = vst [vmem:[#allocation2 + $0xa0] sm:$0xf0] 0.0
        %304 = vst [vmem:[#allocation2] sm:$0xf] 0.0
        %305 = vst [vmem:[#allocation2 + $0x8] sm:$0xf] 0.0
        %306 = vst [vmem:[#allocation3] sm:$0xff] 0.0
        %307 = vst [vmem:[#allocation3 + $0x8] sm:$0xff] 0.0
        %308 = vst [vmem:[#allocation2 + $0x98] sm:$0xf] 0.0
        %309 = vst [vmem:[#allocation2 + $0xa0] sm:$0xf] 0.0
        %310 = vst [vmem:[#allocation3 + $0x98] sm:$0xff] 0.0
        %311 = vst [vmem:[#allocation3 + $0xa0] sm:$0xff] 0.0
        %312 = vst [vmem:[#allocation2 + $0x90] sm:$0xf] 0.0
        %313 = vst [vmem:[#allocation3 + $0x90] sm:$0xff] 0.0
        %v314 = vld [vmem:[%s246] sm:$0xff]
        %v315 = vld [vmem:[%s246 + $0x8] sm:$0xff]
        %v316 = vld [vmem:[%s246 + $0x10] sm:$0xff]
        %v317 = vld [vmem:[%s246 + $0x18] sm:$0xff]
        %v318 = vld [vmem:[%s246 + $0x20] sm:$0xff]
        %v319 = vld [vmem:[%s246 + $0x28] sm:$0xff]
        %v320 = vld [vmem:[%s246 + $0x30] sm:$0xff]
        %v321 = vld [vmem:[%s246 + $0x38] sm:$0xff]
        %v330 = vcombine.high %v314, %v314
        %v331 = vcombine.high %v315, %v315
        %v332 = vcombine.high %v316, %v316
        %v333 = vcombine.high %v317, %v317
        %v334 = vcombine.high %v318, %v318
        %v335 = vcombine.high %v319, %v319
        %v336 = vcombine.high %v320, %v320
        %v337 = vcombine.high %v321, %v321
        %346 = vst [vmem:[#allocation2 + $0x10] sm:$0xf] %v314
        %347 = vst [vmem:[#allocation2 + $0x18] sm:$0xf] %v330
        %348 = vst [vmem:[#allocation2 + $0x20] sm:$0xf] %v315
        %349 = vst [vmem:[#allocation2 + $0x28] sm:$0xf] %v331
        %350 = vst [vmem:[#allocation2 + $0x30] sm:$0xf] %v316
        %351 = vst [vmem:[#allocation2 + $0x38] sm:$0xf] %v332
        %352 = vst [vmem:[#allocation2 + $0x40] sm:$0xf] %v317
        %353 = vst [vmem:[#allocation2 + $0x48] sm:$0xf] %v333
        %354 = vst [vmem:[#allocation2 + $0x50] sm:$0xf] %v318
        %355 = vst [vmem:[#allocation2 + $0x58] sm:$0xf] %v334
        %356 = vst [vmem:[#allocation2 + $0x60] sm:$0xf] %v319
        %357 = vst [vmem:[#allocation2 + $0x68] sm:$0xf] %v335
        %358 = vst [vmem:[#allocation2 + $0x70] sm:$0xf] %v320
        %359 = vst [vmem:[#allocation2 + $0x78] sm:$0xf] %v336
        %360 = vst [vmem:[#allocation2 + $0x80] sm:$0xf] %v321
        %361 = vst [vmem:[#allocation2 + $0x88] sm:$0xf] %v337
        %v362 = vld [vmem:[#allocation2] sm:$0xff]
        %v363 = vld [vmem:[#allocation2 + $0x8] sm:$0xff]
        %v364 = vld [vmem:[#allocation2 + $0x10] sm:$0xff]
        %v365 = vld [vmem:[#allocation2 + $0x18] sm:$0xff]
        %v366 = vld [vmem:[#allocation2 + $0x20] sm:$0xff]
        %v367 = vld [vmem:[#allocation2 + $0x28] sm:$0xff]
        %v368 = vld [vmem:[#allocation2 + $0x30] sm:$0xff]
        %v369 = vld [vmem:[#allocation2 + $0x38] sm:$0xff]
        %v370 = vld [vmem:[#allocation2 + $0x40] sm:$0xff]
        %v371 = vld [vmem:[#allocation2 + $0x48] sm:$0xff]
        %v372 = vld [vmem:[#allocation2 + $0x50] sm:$0xff]
        %v373 = vld [vmem:[#allocation2 + $0x58] sm:$0xff]
        %v374 = vld [vmem:[#allocation2 + $0x60] sm:$0xff]
        %v375 = vld [vmem:[#allocation2 + $0x68] sm:$0xff]
        %v376 = vld [vmem:[#allocation2 + $0x70] sm:$0xff]
        %v377 = vld [vmem:[#allocation2 + $0x78] sm:$0xff]
        %v378 = vld [vmem:[#allocation2 + $0x80] sm:$0xff]
        %v379 = vld [vmem:[#allocation2 + $0x88] sm:$0xff]
        %398 = vrot.lane.b32.xlu0 %v362, 1
        %v399 = vpop.permute.xlu0 %398
        %400 = vrot.lane.b32.xlu0 %v363, 1
        %v401 = vpop.permute.xlu0 %400
        %402 = vrot.lane.b32.xlu0 %v364, 1
        %v403 = vpop.permute.xlu0 %402
        %404 = vrot.lane.b32.xlu0 %v365, 1
        %v405 = vpop.permute.xlu0 %404
        %406 = vrot.lane.b32.xlu0 %v366, 1
        %v407 = vpop.permute.xlu0 %406
        %408 = vrot.lane.b32.xlu0 %v367, 1
        %v409 = vpop.permute.xlu0 %408
        %410 = vrot.lane.b32.xlu0 %v368, 1
        %v411 = vpop.permute.xlu0 %410
        %412 = vrot.lane.b32.xlu0 %v369, 1
        %v413 = vpop.permute.xlu0 %412
        %414 = vrot.lane.b32.xlu0 %v370, 1
        %v415 = vpop.permute.xlu0 %414
        %416 = vrot.lane.b32.xlu0 %v371, 1
        %v417 = vpop.permute.xlu0 %416
        %418 = vrot.lane.b32.xlu0 %v372, 1
        %v419 = vpop.permute.xlu0 %418
        %420 = vrot.lane.b32.xlu0 %v373, 1
        %v421 = vpop.permute.xlu0 %420
        %422 = vrot.lane.b32.xlu0 %v374, 1
        %v423 = vpop.permute.xlu0 %422
        %424 = vrot.lane.b32.xlu0 %v375, 1
        %v425 = vpop.permute.xlu0 %424
        %426 = vrot.lane.b32.xlu0 %v376, 1
        %v427 = vpop.permute.xlu0 %426
        %428 = vrot.lane.b32.xlu0 %v377, 1
        %v429 = vpop.permute.xlu0 %428
        %430 = vrot.lane.b32.xlu0 %v378, 1
        %v431 = vpop.permute.xlu0 %430
        %432 = vrot.lane.b32.xlu0 %v379, 1
        %v433 = vpop.permute.xlu0 %432
        %vm434 = vcmask 7168
        %v435 = vsel %vm434, %v399, %v401
        %v436 = vsel %vm434, %v401, %v403
        %v437 = vsel %vm434, %v403, %v405
        %v438 = vsel %vm434, %v405, %v407
        %v439 = vsel %vm434, %v407, %v409
        %v440 = vsel %vm434, %v409, %v411
        %v441 = vsel %vm434, %v411, %v413
        %v442 = vsel %vm434, %v413, %v415
        %v443 = vsel %vm434, %v415, %v417
        %v444 = vsel %vm434, %v417, %v419
        %v445 = vsel %vm434, %v419, %v421
        %v446 = vsel %vm434, %v421, %v423
        %v447 = vsel %vm434, %v423, %v425
        %v448 = vsel %vm434, %v425, %v427
        %v449 = vsel %vm434, %v427, %v429
        %v450 = vsel %vm434, %v429, %v431
        %v451 = vsel %vm434, %v431, %v433
        %469 = vst [vmem:[#allocation4] sm:$0xff] %v435
        %470 = vst [vmem:[#allocation4 + $0x8] sm:$0xff] %v436
        %471 = vst [vmem:[#allocation4 + $0x10] sm:$0xff] %v437
        %472 = vst [vmem:[#allocation4 + $0x18] sm:$0xff] %v438
        %473 = vst [vmem:[#allocation4 + $0x20] sm:$0xff] %v439
        %474 = vst [vmem:[#allocation4 + $0x28] sm:$0xff] %v440
        %475 = vst [vmem:[#allocation4 + $0x30] sm:$0xff] %v441
        %476 = vst [vmem:[#allocation4 + $0x38] sm:$0xff] %v442
        %477 = vst [vmem:[#allocation4 + $0x40] sm:$0xff] %v443
        %478 = vst [vmem:[#allocation4 + $0x48] sm:$0xff] %v444
        %479 = vst [vmem:[#allocation4 + $0x50] sm:$0xff] %v445
        %480 = vst [vmem:[#allocation4 + $0x58] sm:$0xff] %v446
        %481 = vst [vmem:[#allocation4 + $0x60] sm:$0xff] %v447
        %482 = vst [vmem:[#allocation4 + $0x68] sm:$0xff] %v448
        %483 = vst [vmem:[#allocation4 + $0x70] sm:$0xff] %v449
        %484 = vst [vmem:[#allocation4 + $0x78] sm:$0xff] %v450
        %485 = vst [vmem:[#allocation4 + $0x80] sm:$0xff] %v451
        %v486 = vld [vmem:[#allocation2 + $0x8] sm:$0xff]
        %v487 = vld [vmem:[#allocation2 + $0x10] sm:$0xff]
        %v488 = vld [vmem:[#allocation2 + $0x18] sm:$0xff]
        %v489 = vld [vmem:[#allocation2 + $0x20] sm:$0xff]
        %v490 = vld [vmem:[#allocation2 + $0x28] sm:$0xff]
        %v491 = vld [vmem:[#allocation2 + $0x30] sm:$0xff]
        %v492 = vld [vmem:[#allocation2 + $0x38] sm:$0xff]
        %v493 = vld [vmem:[#allocation2 + $0x40] sm:$0xff]
        %v494 = vld [vmem:[#allocation2 + $0x48] sm:$0xff]
        %v495 = vld [vmem:[#allocation2 + $0x50] sm:$0xff]
        %v496 = vld [vmem:[#allocation2 + $0x58] sm:$0xff]
        %v497 = vld [vmem:[#allocation2 + $0x60] sm:$0xff]
        %v498 = vld [vmem:[#allocation2 + $0x68] sm:$0xff]
        %v499 = vld [vmem:[#allocation2 + $0x70] sm:$0xff]
        %v500 = vld [vmem:[#allocation2 + $0x78] sm:$0xff]
        %v501 = vld [vmem:[#allocation2 + $0x80] sm:$0xff]
        %v502 = vld [vmem:[#allocation2 + $0x88] sm:$0xff]
        %503 = vst [vmem:[#allocation4 + $0x88] sm:$0xff] %v486
        %504 = vst [vmem:[#allocation4 + $0x90] sm:$0xff] %v487
        %505 = vst [vmem:[#allocation4 + $0x98] sm:$0xff] %v488
        %506 = vst [vmem:[#allocation4 + $0xa0] sm:$0xff] %v489
        %507 = vst [vmem:[#allocation4 + $0xa8] sm:$0xff] %v490
        %508 = vst [vmem:[#allocation4 + $0xb0] sm:$0xff] %v491
        %509 = vst [vmem:[#allocation4 + $0xb8] sm:$0xff] %v492
        %510 = vst [vmem:[#allocation4 + $0xc0] sm:$0xff] %v493
        %511 = vst [vmem:[#allocation4 + $0xc8] sm:$0xff] %v494
        %512 = vst [vmem:[#allocation4 + $0xd0] sm:$0xff] %v495
        %513 = vst [vmem:[#allocation4 + $0xd8] sm:$0xff] %v496
        %514 = vst [vmem:[#allocation4 + $0xe0] sm:$0xff] %v497
        %515 = vst [vmem:[#allocation4 + $0xe8] sm:$0xff] %v498
        %516 = vst [vmem:[#allocation4 + $0xf0] sm:$0xff] %v499
        %517 = vst [vmem:[#allocation4 + $0xf8] sm:$0xff] %v500
        %518 = vst [vmem:[#allocation4 + $0x100] sm:$0xff] %v501
        %519 = vst [vmem:[#allocation4 + $0x108] sm:$0xff] %v502
        %v520 = vld [vmem:[#allocation2 + $0x8] sm:$0xff]
        %v521 = vld [vmem:[#allocation2 + $0x10] sm:$0xff]
        %v522 = vld [vmem:[#allocation2 + $0x18] sm:$0xff]
        %v523 = vld [vmem:[#allocation2 + $0x20] sm:$0xff]
        %v524 = vld [vmem:[#allocation2 + $0x28] sm:$0xff]
        %v525 = vld [vmem:[#allocation2 + $0x30] sm:$0xff]
        %v526 = vld [vmem:[#allocation2 + $0x38] sm:$0xff]
        %v527 = vld [vmem:[#allocation2 + $0x40] sm:$0xff]
        %v528 = vld [vmem:[#allocation2 + $0x48] sm:$0xff]
        %v529 = vld [vmem:[#allocation2 + $0x50] sm:$0xff]
        %v530 = vld [vmem:[#allocation2 + $0x58] sm:$0xff]
        %v531 = vld [vmem:[#allocation2 + $0x60] sm:$0xff]
        %v532 = vld [vmem:[#allocation2 + $0x68] sm:$0xff]
        %v533 = vld [vmem:[#allocation2 + $0x70] sm:$0xff]
        %v534 = vld [vmem:[#allocation2 + $0x78] sm:$0xff]
        %v535 = vld [vmem:[#allocation2 + $0x80] sm:$0xff]
        %v536 = vld [vmem:[#allocation2 + $0x88] sm:$0xff]
        %v537 = vld [vmem:[#allocation2 + $0x90] sm:$0xff]
        %556 = vrot.lane.b32.xlu0 %v520, 127
        %v557 = vpop.permute.xlu0 %556
        %558 = vrot.lane.b32.xlu0 %v521, 127
        %v559 = vpop.permute.xlu0 %558
        %560 = vrot.lane.b32.xlu0 %v522, 127
        %v561 = vpop.permute.xlu0 %560
        %562 = vrot.lane.b32.xlu0 %v523, 127
        %v563 = vpop.permute.xlu0 %562
        %564 = vrot.lane.b32.xlu0 %v524, 127
        %v565 = vpop.permute.xlu0 %564
        %566 = vrot.lane.b32.xlu0 %v525, 127
        %v567 = vpop.permute.xlu0 %566
        %568 = vrot.lane.b32.xlu0 %v526, 127
        %v569 = vpop.permute.xlu0 %568
        %570 = vrot.lane.b32.xlu0 %v527, 127
        %v571 = vpop.permute.xlu0 %570
        %572 = vrot.lane.b32.xlu0 %v528, 127
        %v573 = vpop.permute.xlu0 %572
        %574 = vrot.lane.b32.xlu0 %v529, 127
        %v575 = vpop.permute.xlu0 %574
        %576 = vrot.lane.b32.xlu0 %v530, 127
        %v577 = vpop.permute.xlu0 %576
        %578 = vrot.lane.b32.xlu0 %v531, 127
        %v579 = vpop.permute.xlu0 %578
        %580 = vrot.lane.b32.xlu0 %v532, 127
        %v581 = vpop.permute.xlu0 %580
        %582 = vrot.lane.b32.xlu0 %v533, 127
        %v583 = vpop.permute.xlu0 %582
        %584 = vrot.lane.b32.xlu0 %v534, 127
        %v585 = vpop.permute.xlu0 %584
        %586 = vrot.lane.b32.xlu0 %v535, 127
        %v587 = vpop.permute.xlu0 %586
        %588 = vrot.lane.b32.xlu0 %v536, 127
        %v589 = vpop.permute.xlu0 %588
        %590 = vrot.lane.b32.xlu0 %v537, 127
        %v591 = vpop.permute.xlu0 %590
        %vm592 = vcmask 1039360
        %v593 = vsel %vm592, %v557, %v559
        %v594 = vsel %vm592, %v559, %v561
        %v595 = vsel %vm592, %v561, %v563
        %v596 = vsel %vm592, %v563, %v565
        %v597 = vsel %vm592, %v565, %v567
        %v598 = vsel %vm592, %v567, %v569
        %v599 = vsel %vm592, %v569, %v571
        %v600 = vsel %vm592, %v571, %v573
        %v601 = vsel %vm592, %v573, %v575
        %v602 = vsel %vm592, %v575, %v577
        %v603 = vsel %vm592, %v577, %v579
        %v604 = vsel %vm592, %v579, %v581
        %v605 = vsel %vm592, %v581, %v583
        %v606 = vsel %vm592, %v583, %v585
        %v607 = vsel %vm592, %v585, %v587
        %v608 = vsel %vm592, %v587, %v589
        %v609 = vsel %vm592, %v589, %v591
        %627 = vst [vmem:[#allocation4 + $0x110] sm:$0xff] %v593
        %628 = vst [vmem:[#allocation4 + $0x118] sm:$0xff] %v594
        %629 = vst [vmem:[#allocation4 + $0x120] sm:$0xff] %v595
        %630 = vst [vmem:[#allocation4 + $0x128] sm:$0xff] %v596
        %631 = vst [vmem:[#allocation4 + $0x130] sm:$0xff] %v597
        %632 = vst [vmem:[#allocation4 + $0x138] sm:$0xff] %v598
        %633 = vst [vmem:[#allocation4 + $0x140] sm:$0xff] %v599
        %634 = vst [vmem:[#allocation4 + $0x148] sm:$0xff] %v600
        %635 = vst [vmem:[#allocation4 + $0x150] sm:$0xff] %v601
        %636 = vst [vmem:[#allocation4 + $0x158] sm:$0xff] %v602
        %637 = vst [vmem:[#allocation4 + $0x160] sm:$0xff] %v603
        %638 = vst [vmem:[#allocation4 + $0x168] sm:$0xff] %v604
        %639 = vst [vmem:[#allocation4 + $0x170] sm:$0xff] %v605
        %640 = vst [vmem:[#allocation4 + $0x178] sm:$0xff] %v606
        %641 = vst [vmem:[#allocation4 + $0x180] sm:$0xff] %v607
        %642 = vst [vmem:[#allocation4 + $0x188] sm:$0xff] %v608
        %643 = vst [vmem:[#allocation4 + $0x190] sm:$0xff] %v609
        %v644 = vld [vmem:[#allocation2 + $0x8] sm:$0xff]
        %v645 = vld [vmem:[#allocation2 + $0x10] sm:$0xff]
        %v646 = vld [vmem:[#allocation2 + $0x18] sm:$0xff]
        %v647 = vld [vmem:[#allocation2 + $0x20] sm:$0xff]
        %v648 = vld [vmem:[#allocation2 + $0x28] sm:$0xff]
        %v649 = vld [vmem:[#allocation2 + $0x30] sm:$0xff]
        %v650 = vld [vmem:[#allocation2 + $0x38] sm:$0xff]
        %v651 = vld [vmem:[#allocation2 + $0x40] sm:$0xff]
        %v652 = vld [vmem:[#allocation2 + $0x48] sm:$0xff]
        %v653 = vld [vmem:[#allocation2 + $0x50] sm:$0xff]
        %v654 = vld [vmem:[#allocation2 + $0x58] sm:$0xff]
        %v655 = vld [vmem:[#allocation2 + $0x60] sm:$0xff]
        %v656 = vld [vmem:[#allocation2 + $0x68] sm:$0xff]
        %v657 = vld [vmem:[#allocation2 + $0x70] sm:$0xff]
        %v658 = vld [vmem:[#allocation2 + $0x78] sm:$0xff]
        %v659 = vld [vmem:[#allocation2 + $0x80] sm:$0xff]
        %v660 = vld [vmem:[#allocation2 + $0x88] sm:$0xff]
        %v661 = vld [vmem:[#allocation2 + $0x90] sm:$0xff]
        %680 = vrot.lane.b32.xlu0 %v644, 1
        %v681 = vpop.permute.xlu0 %680
        %682 = vrot.lane.b32.xlu0 %v645, 1
        %v683 = vpop.permute.xlu0 %682
        %684 = vrot.lane.b32.xlu0 %v646, 1
        %v685 = vpop.permute.xlu0 %684
        %686 = vrot.lane.b32.xlu0 %v647, 1
        %v687 = vpop.permute.xlu0 %686
        %688 = vrot.lane.b32.xlu0 %v648, 1
        %v689 = vpop.permute.xlu0 %688
        %690 = vrot.lane.b32.xlu0 %v649, 1
        %v691 = vpop.permute.xlu0 %690
        %692 = vrot.lane.b32.xlu0 %v650, 1
        %v693 = vpop.permute.xlu0 %692
        %694 = vrot.lane.b32.xlu0 %v651, 1
        %v695 = vpop.permute.xlu0 %694
        %696 = vrot.lane.b32.xlu0 %v652, 1
        %v697 = vpop.permute.xlu0 %696
        %698 = vrot.lane.b32.xlu0 %v653, 1
        %v699 = vpop.permute.xlu0 %698
        %700 = vrot.lane.b32.xlu0 %v654, 1
        %v701 = vpop.permute.xlu0 %700
        %702 = vrot.lane.b32.xlu0 %v655, 1
        %v703 = vpop.permute.xlu0 %702
        %704 = vrot.lane.b32.xlu0 %v656, 1
        %v705 = vpop.permute.xlu0 %704
        %706 = vrot.lane.b32.xlu0 %v657, 1
        %v707 = vpop.permute.xlu0 %706
        %708 = vrot.lane.b32.xlu0 %v658, 1
        %v709 = vpop.permute.xlu0 %708
        %710 = vrot.lane.b32.xlu0 %v659, 1
        %v711 = vpop.permute.xlu0 %710
        %712 = vrot.lane.b32.xlu0 %v660, 1
        %v713 = vpop.permute.xlu0 %712
        %714 = vrot.lane.b32.xlu0 %v661, 1
        %v715 = vpop.permute.xlu0 %714
        %v716 = vsel %vm434, %v681, %v683
        %v717 = vsel %vm434, %v683, %v685
        %v718 = vsel %vm434, %v685, %v687
        %v719 = vsel %vm434, %v687, %v689
        %v720 = vsel %vm434, %v689, %v691
        %v721 = vsel %vm434, %v691, %v693
        %v722 = vsel %vm434, %v693, %v695
        %v723 = vsel %vm434, %v695, %v697
        %v724 = vsel %vm434, %v697, %v699
        %v725 = vsel %vm434, %v699, %v701
        %v726 = vsel %vm434, %v701, %v703
        %v727 = vsel %vm434, %v703, %v705
        %v728 = vsel %vm434, %v705, %v707
        %v729 = vsel %vm434, %v707, %v709
        %v730 = vsel %vm434, %v709, %v711
        %v731 = vsel %vm434, %v711, %v713
        %v732 = vsel %vm434, %v713, %v715
        %750 = vst [vmem:[#allocation4 + $0x198] sm:$0xff] %v716
        %751 = vst [vmem:[#allocation4 + $0x1a0] sm:$0xff] %v717
        %752 = vst [vmem:[#allocation4 + $0x1a8] sm:$0xff] %v718
        %753 = vst [vmem:[#allocation4 + $0x1b0] sm:$0xff] %v719
        %754 = vst [vmem:[#allocation4 + $0x1b8] sm:$0xff] %v720
        %755 = vst [vmem:[#allocation4 + $0x1c0] sm:$0xff] %v721
        %756 = vst [vmem:[#allocation4 + $0x1c8] sm:$0xff] %v722
        %757 = vst [vmem:[#allocation4 + $0x1d0] sm:$0xff] %v723
        %758 = vst [vmem:[#allocation4 + $0x1d8] sm:$0xff] %v724
        %759 = vst [vmem:[#allocation4 + $0x1e0] sm:$0xff] %v725
        %760 = vst [vmem:[#allocation4 + $0x1e8] sm:$0xff] %v726
        %761 = vst [vmem:[#allocation4 + $0x1f0] sm:$0xff] %v727
        %762 = vst [vmem:[#allocation4 + $0x1f8] sm:$0xff] %v728
        %763 = vst [vmem:[#allocation4 + $0x200] sm:$0xff] %v729
        %764 = vst [vmem:[#allocation4 + $0x208] sm:$0xff] %v730
        %765 = vst [vmem:[#allocation4 + $0x210] sm:$0xff] %v731
        %766 = vst [vmem:[#allocation4 + $0x218] sm:$0xff] %v732
        %v767 = vld [vmem:[#allocation2 + $0x10] sm:$0xff]
        %v768 = vld [vmem:[#allocation2 + $0x18] sm:$0xff]
        %v769 = vld [vmem:[#allocation2 + $0x20] sm:$0xff]
        %v770 = vld [vmem:[#allocation2 + $0x28] sm:$0xff]
        %v771 = vld [vmem:[#allocation2 + $0x30] sm:$0xff]
        %v772 = vld [vmem:[#allocation2 + $0x38] sm:$0xff]
        %v773 = vld [vmem:[#allocation2 + $0x40] sm:$0xff]
        %v774 = vld [vmem:[#allocation2 + $0x48] sm:$0xff]
        %v775 = vld [vmem:[#allocation2 + $0x50] sm:$0xff]
        %v776 = vld [vmem:[#allocation2 + $0x58] sm:$0xff]
        %v777 = vld [vmem:[#allocation2 + $0x60] sm:$0xff]
        %v778 = vld [vmem:[#allocation2 + $0x68] sm:$0xff]
        %v779 = vld [vmem:[#allocation2 + $0x70] sm:$0xff]
        %v780 = vld [vmem:[#allocation2 + $0x78] sm:$0xff]
        %v781 = vld [vmem:[#allocation2 + $0x80] sm:$0xff]
        %v782 = vld [vmem:[#allocation2 + $0x88] sm:$0xff]
        %v783 = vld [vmem:[#allocation2 + $0x90] sm:$0xff]
        %784 = vst [vmem:[#allocation4 + $0x220] sm:$0xff] %v767
        %785 = vst [vmem:[#allocation4 + $0x228] sm:$0xff] %v768
        %786 = vst [vmem:[#allocation4 + $0x230] sm:$0xff] %v769
        %787 = vst [vmem:[#allocation4 + $0x238] sm:$0xff] %v770
        %788 = vst [vmem:[#allocation4 + $0x240] sm:$0xff] %v771
        %789 = vst [vmem:[#allocation4 + $0x248] sm:$0xff] %v772
        %790 = vst [vmem:[#allocation4 + $0x250] sm:$0xff] %v773
        %791 = vst [vmem:[#allocation4 + $0x258] sm:$0xff] %v774
        %792 = vst [vmem:[#allocation4 + $0x260] sm:$0xff] %v775
        %793 = vst [vmem:[#allocation4 + $0x268] sm:$0xff] %v776
        %794 = vst [vmem:[#allocation4 + $0x270] sm:$0xff] %v777
        %795 = vst [vmem:[#allocation4 + $0x278] sm:$0xff] %v778
        %796 = vst [vmem:[#allocation4 + $0x280] sm:$0xff] %v779
        %797 = vst [vmem:[#allocation4 + $0x288] sm:$0xff] %v780
        %798 = vst [vmem:[#allocation4 + $0x290] sm:$0xff] %v781
        %799 = vst [vmem:[#allocation4 + $0x298] sm:$0xff] %v782
        %800 = vst [vmem:[#allocation4 + $0x2a0] sm:$0xff] %v783
        %v801 = vld [vmem:[#allocation2 + $0x10] sm:$0xff]
        %v802 = vld [vmem:[#allocation2 + $0x18] sm:$0xff]
        %v803 = vld [vmem:[#allocation2 + $0x20] sm:$0xff]
        %v804 = vld [vmem:[#allocation2 + $0x28] sm:$0xff]
        %v805 = vld [vmem:[#allocation2 + $0x30] sm:$0xff]
        %v806 = vld [vmem:[#allocation2 + $0x38] sm:$0xff]
        %v807 = vld [vmem:[#allocation2 + $0x40] sm:$0xff]
        %v808 = vld [vmem:[#allocation2 + $0x48] sm:$0xff]
        %v809 = vld [vmem:[#allocation2 + $0x50] sm:$0xff]
        %v810 = vld [vmem:[#allocation2 + $0x58] sm:$0xff]
        %v811 = vld [vmem:[#allocation2 + $0x60] sm:$0xff]
        %v812 = vld [vmem:[#allocation2 + $0x68] sm:$0xff]
        %v813 = vld [vmem:[#allocation2 + $0x70] sm:$0xff]
        %v814 = vld [vmem:[#allocation2 + $0x78] sm:$0xff]
        %v815 = vld [vmem:[#allocation2 + $0x80] sm:$0xff]
        %v816 = vld [vmem:[#allocation2 + $0x88] sm:$0xff]
        %v817 = vld [vmem:[#allocation2 + $0x90] sm:$0xff]
        %v818 = vld [vmem:[#allocation2 + $0x98] sm:$0xff]
        %837 = vrot.lane.b32.xlu0 %v801, 127
        %v838 = vpop.permute.xlu0 %837
        %839 = vrot.lane.b32.xlu0 %v802, 127
        %v840 = vpop.permute.xlu0 %839
        %841 = vrot.lane.b32.xlu0 %v803, 127
        %v842 = vpop.permute.xlu0 %841
        %843 = vrot.lane.b32.xlu0 %v804, 127
        %v844 = vpop.permute.xlu0 %843
        %845 = vrot.lane.b32.xlu0 %v805, 127
        %v846 = vpop.permute.xlu0 %845
        %847 = vrot.lane.b32.xlu0 %v806, 127
        %v848 = vpop.permute.xlu0 %847
        %849 = vrot.lane.b32.xlu0 %v807, 127
        %v850 = vpop.permute.xlu0 %849
        %851 = vrot.lane.b32.xlu0 %v808, 127
        %v852 = vpop.permute.xlu0 %851
        %853 = vrot.lane.b32.xlu0 %v809, 127
        %v854 = vpop.permute.xlu0 %853
        %855 = vrot.lane.b32.xlu0 %v810, 127
        %v856 = vpop.permute.xlu0 %855
        %857 = vrot.lane.b32.xlu0 %v811, 127
        %v858 = vpop.permute.xlu0 %857
        %859 = vrot.lane.b32.xlu0 %v812, 127
        %v860 = vpop.permute.xlu0 %859
        %861 = vrot.lane.b32.xlu0 %v813, 127
        %v862 = vpop.permute.xlu0 %861
        %863 = vrot.lane.b32.xlu0 %v814, 127
        %v864 = vpop.permute.xlu0 %863
        %865 = vrot.lane.b32.xlu0 %v815, 127
        %v866 = vpop.permute.xlu0 %865
        %867 = vrot.lane.b32.xlu0 %v816, 127
        %v868 = vpop.permute.xlu0 %867
        %869 = vrot.lane.b32.xlu0 %v817, 127
        %v870 = vpop.permute.xlu0 %869
        %871 = vrot.lane.b32.xlu0 %v818, 127
        %v872 = vpop.permute.xlu0 %871
        %v873 = vsel %vm592, %v838, %v840
        %v874 = vsel %vm592, %v840, %v842
        %v875 = vsel %vm592, %v842, %v844
        %v876 = vsel %vm592, %v844, %v846
        %v877 = vsel %vm592, %v846, %v848
        %v878 = vsel %vm592, %v848, %v850
        %v879 = vsel %vm592, %v850, %v852
        %v880 = vsel %vm592, %v852, %v854
        %v881 = vsel %vm592, %v854, %v856
        %v882 = vsel %vm592, %v856, %v858
        %v883 = vsel %vm592, %v858, %v860
        %v884 = vsel %vm592, %v860, %v862
        %v885 = vsel %vm592, %v862, %v864
        %v886 = vsel %vm592, %v864, %v866
        %v887 = vsel %vm592, %v866, %v868
        %v888 = vsel %vm592, %v868, %v870
        %v889 = vsel %vm592, %v870, %v872
        %907 = vst [vmem:[#allocation4 + $0x2a8] sm:$0xff] %v873
        %908 = vst [vmem:[#allocation4 + $0x2b0] sm:$0xff] %v874
        %909 = vst [vmem:[#allocation4 + $0x2b8] sm:$0xff] %v875
        %910 = vst [vmem:[#allocation4 + $0x2c0] sm:$0xff] %v876
        %911 = vst [vmem:[#allocation4 + $0x2c8] sm:$0xff] %v877
        %912 = vst [vmem:[#allocation4 + $0x2d0] sm:$0xff] %v878
        %913 = vst [vmem:[#allocation4 + $0x2d8] sm:$0xff] %v879
        %914 = vst [vmem:[#allocation4 + $0x2e0] sm:$0xff] %v880
        %915 = vst [vmem:[#allocation4 + $0x2e8] sm:$0xff] %v881
        %916 = vst [vmem:[#allocation4 + $0x2f0] sm:$0xff] %v882
        %917 = vst [vmem:[#allocation4 + $0x2f8] sm:$0xff] %v883
        %918 = vst [vmem:[#allocation4 + $0x300] sm:$0xff] %v884
        %919 = vst [vmem:[#allocation4 + $0x308] sm:$0xff] %v885
        %920 = vst [vmem:[#allocation4 + $0x310] sm:$0xff] %v886
        %921 = vst [vmem:[#allocation4 + $0x318] sm:$0xff] %v887
        %922 = vst [vmem:[#allocation4 + $0x320] sm:$0xff] %v888
        %923 = vst [vmem:[#allocation4 + $0x328] sm:$0xff] %v889
        %v924 = vld [vmem:[#allocation2 + $0x10] sm:$0xff]
        %v925 = vld [vmem:[#allocation2 + $0x18] sm:$0xff]
        %v926 = vld [vmem:[#allocation2 + $0x20] sm:$0xff]
        %v927 = vld [vmem:[#allocation2 + $0x28] sm:$0xff]
        %v928 = vld [vmem:[#allocation2 + $0x30] sm:$0xff]
        %v929 = vld [vmem:[#allocation2 + $0x38] sm:$0xff]
        %v930 = vld [vmem:[#allocation2 + $0x40] sm:$0xff]
        %v931 = vld [vmem:[#allocation2 + $0x48] sm:$0xff]
        %v932 = vld [vmem:[#allocation2 + $0x50] sm:$0xff]
        %v933 = vld [vmem:[#allocation2 + $0x58] sm:$0xff]
        %v934 = vld [vmem:[#allocation2 + $0x60] sm:$0xff]
        %v935 = vld [vmem:[#allocation2 + $0x68] sm:$0xff]
        %v936 = vld [vmem:[#allocation2 + $0x70] sm:$0xff]
        %v937 = vld [vmem:[#allocation2 + $0x78] sm:$0xff]
        %v938 = vld [vmem:[#allocation2 + $0x80] sm:$0xff]
        %v939 = vld [vmem:[#allocation2 + $0x88] sm:$0xff]
        %v940 = vld [vmem:[#allocation2 + $0x90] sm:$0xff]
        %v941 = vld [vmem:[#allocation2 + $0x98] sm:$0xff]
        %960 = vrot.lane.b32.xlu0 %v924, 1
        %v961 = vpop.permute.xlu0 %960
        %962 = vrot.lane.b32.xlu0 %v925, 1
        %v963 = vpop.permute.xlu0 %962
        %964 = vrot.lane.b32.xlu0 %v926, 1
        %v965 = vpop.permute.xlu0 %964
        %966 = vrot.lane.b32.xlu0 %v927, 1
        %v967 = vpop.permute.xlu0 %966
        %968 = vrot.lane.b32.xlu0 %v928, 1
        %v969 = vpop.permute.xlu0 %968
        %970 = vrot.lane.b32.xlu0 %v929, 1
        %v971 = vpop.permute.xlu0 %970
        %972 = vrot.lane.b32.xlu0 %v930, 1
        %v973 = vpop.permute.xlu0 %972
        %974 = vrot.lane.b32.xlu0 %v931, 1
        %v975 = vpop.permute.xlu0 %974
        %976 = vrot.lane.b32.xlu0 %v932, 1
        %v977 = vpop.permute.xlu0 %976
        %978 = vrot.lane.b32.xlu0 %v933, 1
        %v979 = vpop.permute.xlu0 %978
        %980 = vrot.lane.b32.xlu0 %v934, 1
        %v981 = vpop.permute.xlu0 %980
        %982 = vrot.lane.b32.xlu0 %v935, 1
        %v983 = vpop.permute.xlu0 %982
        %984 = vrot.lane.b32.xlu0 %v936, 1
        %v985 = vpop.permute.xlu0 %984
        %986 = vrot.lane.b32.xlu0 %v937, 1
        %v987 = vpop.permute.xlu0 %986
        %988 = vrot.lane.b32.xlu0 %v938, 1
        %v989 = vpop.permute.xlu0 %988
        %990 = vrot.lane.b32.xlu0 %v939, 1
        %v991 = vpop.permute.xlu0 %990
        %992 = vrot.lane.b32.xlu0 %v940, 1
        %v993 = vpop.permute.xlu0 %992
        %994 = vrot.lane.b32.xlu0 %v941, 1
        %v995 = vpop.permute.xlu0 %994
        %v996 = vsel %vm434, %v961, %v963
        %v997 = vsel %vm434, %v963, %v965
        %v998 = vsel %vm434, %v965, %v967
        %v999 = vsel %vm434, %v967, %v969
        %v1000 = vsel %vm434, %v969, %v971
        %v1001 = vsel %vm434, %v971, %v973
        %v1002 = vsel %vm434, %v973, %v975
        %v1003 = vsel %vm434, %v975, %v977
        %v1004 = vsel %vm434, %v977, %v979
        %v1005 = vsel %vm434, %v979, %v981
        %v1006 = vsel %vm434, %v981, %v983
        %v1007 = vsel %vm434, %v983, %v985
        %v1008 = vsel %vm434, %v985, %v987
        %v1009 = vsel %vm434, %v987, %v989
        %v1010 = vsel %vm434, %v989, %v991
        %v1011 = vsel %vm434, %v991, %v993
        %v1012 = vsel %vm434, %v993, %v995
        %1030 = vst [vmem:[#allocation4 + $0x330] sm:$0xff] %v996
        %1031 = vst [vmem:[#allocation4 + $0x338] sm:$0xff] %v997
        %1032 = vst [vmem:[#allocation4 + $0x340] sm:$0xff] %v998
        %1033 = vst [vmem:[#allocation4 + $0x348] sm:$0xff] %v999
        %1034 = vst [vmem:[#allocation4 + $0x350] sm:$0xff] %v1000
        %1035 = vst [vmem:[#allocation4 + $0x358] sm:$0xff] %v1001
        %1036 = vst [vmem:[#allocation4 + $0x360] sm:$0xff] %v1002
        %1037 = vst [vmem:[#allocation4 + $0x368] sm:$0xff] %v1003
        %1038 = vst [vmem:[#allocation4 + $0x370] sm:$0xff] %v1004
        %1039 = vst [vmem:[#allocation4 + $0x378] sm:$0xff] %v1005
        %1040 = vst [vmem:[#allocation4 + $0x380] sm:$0xff] %v1006
        %1041 = vst [vmem:[#allocation4 + $0x388] sm:$0xff] %v1007
        %1042 = vst [vmem:[#allocation4 + $0x390] sm:$0xff] %v1008
        %1043 = vst [vmem:[#allocation4 + $0x398] sm:$0xff] %v1009
        %1044 = vst [vmem:[#allocation4 + $0x3a0] sm:$0xff] %v1010
        %1045 = vst [vmem:[#allocation4 + $0x3a8] sm:$0xff] %v1011
        %1046 = vst [vmem:[#allocation4 + $0x3b0] sm:$0xff] %v1012
        %v1047 = vld [vmem:[#allocation2 + $0x18] sm:$0xff]
        %v1048 = vld [vmem:[#allocation2 + $0x20] sm:$0xff]
        %v1049 = vld [vmem:[#allocation2 + $0x28] sm:$0xff]
        %v1050 = vld [vmem:[#allocation2 + $0x30] sm:$0xff]
        %v1051 = vld [vmem:[#allocation2 + $0x38] sm:$0xff]
        %v1052 = vld [vmem:[#allocation2 + $0x40] sm:$0xff]
        %v1053 = vld [vmem:[#allocation2 + $0x48] sm:$0xff]
        %v1054 = vld [vmem:[#allocation2 + $0x50] sm:$0xff]
        %v1055 = vld [vmem:[#allocation2 + $0x58] sm:$0xff]
        %v1056 = vld [vmem:[#allocation2 + $0x60] sm:$0xff]
        %v1057 = vld [vmem:[#allocation2 + $0x68] sm:$0xff]
        %v1058 = vld [vmem:[#allocation2 + $0x70] sm:$0xff]
        %v1059 = vld [vmem:[#allocation2 + $0x78] sm:$0xff]
        %v1060 = vld [vmem:[#allocation2 + $0x80] sm:$0xff]
        %v1061 = vld [vmem:[#allocation2 + $0x88] sm:$0xff]
        %v1062 = vld [vmem:[#allocation2 + $0x90] sm:$0xff]
        %v1063 = vld [vmem:[#allocation2 + $0x98] sm:$0xff]
        %1064 = vst [vmem:[#allocation4 + $0x3b8] sm:$0xff] %v1047
        %1065 = vst [vmem:[#allocation4 + $0x3c0] sm:$0xff] %v1048
        %1066 = vst [vmem:[#allocation4 + $0x3c8] sm:$0xff] %v1049
        %1067 = vst [vmem:[#allocation4 + $0x3d0] sm:$0xff] %v1050
        %1068 = vst [vmem:[#allocation4 + $0x3d8] sm:$0xff] %v1051
        %1069 = vst [vmem:[#allocation4 + $0x3e0] sm:$0xff] %v1052
        %1070 = vst [vmem:[#allocation4 + $0x3e8] sm:$0xff] %v1053
        %1071 = vst [vmem:[#allocation4 + $0x3f0] sm:$0xff] %v1054
        %1072 = vst [vmem:[#allocation4 + $0x3f8] sm:$0xff] %v1055
        %1073 = vst [vmem:[#allocation4 + $0x400] sm:$0xff] %v1056
        %1074 = vst [vmem:[#allocation4 + $0x408] sm:$0xff] %v1057
        %1075 = vst [vmem:[#allocation4 + $0x410] sm:$0xff] %v1058
        %1076 = vst [vmem:[#allocation4 + $0x418] sm:$0xff] %v1059
        %1077 = vst [vmem:[#allocation4 + $0x420] sm:$0xff] %v1060
        %1078 = vst [vmem:[#allocation4 + $0x428] sm:$0xff] %v1061
        %1079 = vst [vmem:[#allocation4 + $0x430] sm:$0xff] %v1062
        %1080 = vst [vmem:[#allocation4 + $0x438] sm:$0xff] %v1063
        %v1081 = vld [vmem:[#allocation2 + $0x18] sm:$0xff]
        %v1082 = vld [vmem:[#allocation2 + $0x20] sm:$0xff]
        %v1083 = vld [vmem:[#allocation2 + $0x28] sm:$0xff]
        %v1084 = vld [vmem:[#allocation2 + $0x30] sm:$0xff]
        %v1085 = vld [vmem:[#allocation2 + $0x38] sm:$0xff]
        %v1086 = vld [vmem:[#allocation2 + $0x40] sm:$0xff]
        %v1087 = vld [vmem:[#allocation2 + $0x48] sm:$0xff]
        %v1088 = vld [vmem:[#allocation2 + $0x50] sm:$0xff]
        %v1089 = vld [vmem:[#allocation2 + $0x58] sm:$0xff]
        %v1090 = vld [vmem:[#allocation2 + $0x60] sm:$0xff]
        %v1091 = vld [vmem:[#allocation2 + $0x68] sm:$0xff]
        %v1092 = vld [vmem:[#allocation2 + $0x70] sm:$0xff]
        %v1093 = vld [vmem:[#allocation2 + $0x78] sm:$0xff]
        %v1094 = vld [vmem:[#allocation2 + $0x80] sm:$0xff]
        %v1095 = vld [vmem:[#allocation2 + $0x88] sm:$0xff]
        %v1096 = vld [vmem:[#allocation2 + $0x90] sm:$0xff]
        %v1097 = vld [vmem:[#allocation2 + $0x98] sm:$0xff]
        %v1098 = vld [vmem:[#allocation2 + $0xa0] sm:$0xff]
        %1117 = vrot.lane.b32.xlu0 %v1081, 127
        %v1118 = vpop.permute.xlu0 %1117
        %1119 = vrot.lane.b32.xlu0 %v1082, 127
        %v1120 = vpop.permute.xlu0 %1119
        %1121 = vrot.lane.b32.xlu0 %v1083, 127
        %v1122 = vpop.permute.xlu0 %1121
        %1123 = vrot.lane.b32.xlu0 %v1084, 127
        %v1124 = vpop.permute.xlu0 %1123
        %1125 = vrot.lane.b32.xlu0 %v1085, 127
        %v1126 = vpop.permute.xlu0 %1125
        %1127 = vrot.lane.b32.xlu0 %v1086, 127
        %v1128 = vpop.permute.xlu0 %1127
        %1129 = vrot.lane.b32.xlu0 %v1087, 127
        %v1130 = vpop.permute.xlu0 %1129
        %1131 = vrot.lane.b32.xlu0 %v1088, 127
        %v1132 = vpop.permute.xlu0 %1131
        %1133 = vrot.lane.b32.xlu0 %v1089, 127
        %v1134 = vpop.permute.xlu0 %1133
        %1135 = vrot.lane.b32.xlu0 %v1090, 127
        %v1136 = vpop.permute.xlu0 %1135
        %1137 = vrot.lane.b32.xlu0 %v1091, 127
        %v1138 = vpop.permute.xlu0 %1137
        %1139 = vrot.lane.b32.xlu0 %v1092, 127
        %v1140 = vpop.permute.xlu0 %1139
        %1141 = vrot.lane.b32.xlu0 %v1093, 127
        %v1142 = vpop.permute.xlu0 %1141
        %1143 = vrot.lane.b32.xlu0 %v1094, 127
        %v1144 = vpop.permute.xlu0 %1143
        %1145 = vrot.lane.b32.xlu0 %v1095, 127
        %v1146 = vpop.permute.xlu0 %1145
        %1147 = vrot.lane.b32.xlu0 %v1096, 127
        %v1148 = vpop.permute.xlu0 %1147
        %1149 = vrot.lane.b32.xlu0 %v1097, 127
        %v1150 = vpop.permute.xlu0 %1149
        %1151 = vrot.lane.b32.xlu0 %v1098, 127
        %v1152 = vpop.permute.xlu0 %1151
        %v1153 = vsel %vm592, %v1118, %v1120
        %v1154 = vsel %vm592, %v1120, %v1122
        %v1155 = vsel %vm592, %v1122, %v1124
        %v1156 = vsel %vm592, %v1124, %v1126
        %v1157 = vsel %vm592, %v1126, %v1128
        %v1158 = vsel %vm592, %v1128, %v1130
        %v1159 = vsel %vm592, %v1130, %v1132
        %v1160 = vsel %vm592, %v1132, %v1134
        %v1161 = vsel %vm592, %v1134, %v1136
        %v1162 = vsel %vm592, %v1136, %v1138
        %v1163 = vsel %vm592, %v1138, %v1140
        %v1164 = vsel %vm592, %v1140, %v1142
        %v1165 = vsel %vm592, %v1142, %v1144
        %v1166 = vsel %vm592, %v1144, %v1146
        %v1167 = vsel %vm592, %v1146, %v1148
        %v1168 = vsel %vm592, %v1148, %v1150
        %v1169 = vsel %vm592, %v1150, %v1152
        %1187 = vst [vmem:[#allocation4 + $0x440] sm:$0xff] %v1153
        %1188 = vst [vmem:[#allocation4 + $0x448] sm:$0xff] %v1154
        %1189 = vst [vmem:[#allocation4 + $0x450] sm:$0xff] %v1155
        %1190 = vst [vmem:[#allocation4 + $0x458] sm:$0xff] %v1156
        %1191 = vst [vmem:[#allocation4 + $0x460] sm:$0xff] %v1157
        %1192 = vst [vmem:[#allocation4 + $0x468] sm:$0xff] %v1158
        %1193 = vst [vmem:[#allocation4 + $0x470] sm:$0xff] %v1159
        %1194 = vst [vmem:[#allocation4 + $0x478] sm:$0xff] %v1160
        %1195 = vst [vmem:[#allocation4 + $0x480] sm:$0xff] %v1161
        %1196 = vst [vmem:[#allocation4 + $0x488] sm:$0xff] %v1162
        %1197 = vst [vmem:[#allocation4 + $0x490] sm:$0xff] %v1163
        %1198 = vst [vmem:[#allocation4 + $0x498] sm:$0xff] %v1164
        %1199 = vst [vmem:[#allocation4 + $0x4a0] sm:$0xff] %v1165
        %1200 = vst [vmem:[#allocation4 + $0x4a8] sm:$0xff] %v1166
        %1201 = vst [vmem:[#allocation4 + $0x4b0] sm:$0xff] %v1167
        %1202 = vst [vmem:[#allocation4 + $0x4b8] sm:$0xff] %v1168
        %1203 = vst [vmem:[#allocation4 + $0x4c0] sm:$0xff] %v1169
        %v1204 = vld [vmem:[%s3] sm:$0xff]
        %v1205 = vld [vmem:[#allocation4] sm:$0xff]
        %v1206 = vld [vmem:[#allocation4 + $0x8] sm:$0xff]
        %v1207 = vld [vmem:[#allocation4 + $0x10] sm:$0xff]
        %v1208 = vld [vmem:[#allocation4 + $0x18] sm:$0xff]
        %v1209 = vld [vmem:[#allocation4 + $0x20] sm:$0xff]
        %v1210 = vld [vmem:[#allocation4 + $0x28] sm:$0xff]
        %v1211 = vld [vmem:[#allocation4 + $0x30] sm:$0xff]
        %v1212 = vld [vmem:[#allocation4 + $0x38] sm:$0xff]
        %v1213 = vld [vmem:[#allocation4 + $0x40] sm:$0xff]
        %v1214 = vld [vmem:[#allocation4 + $0x48] sm:$0xff]
        %v1215 = vld [vmem:[#allocation4 + $0x50] sm:$0xff]
        %v1216 = vld [vmem:[#allocation4 + $0x58] sm:$0xff]
        %v1217 = vld [vmem:[#allocation4 + $0x60] sm:$0xff]
        %v1218 = vld [vmem:[#allocation4 + $0x68] sm:$0xff]
        %v1219 = vld [vmem:[#allocation4 + $0x70] sm:$0xff]
        %v1220 = vld [vmem:[#allocation4 + $0x78] sm:$0xff]
        %v1221 = vld [vmem:[#allocation4 + $0x88] sm:$0xff]
        %v1222 = vld [vmem:[#allocation4 + $0x90] sm:$0xff]
        %v1223 = vld [vmem:[#allocation4 + $0x98] sm:$0xff]
        %v1224 = vld [vmem:[#allocation4 + $0xa0] sm:$0xff]
        %v1225 = vld [vmem:[#allocation4 + $0xa8] sm:$0xff]
        %v1226 = vld [vmem:[#allocation4 + $0xb0] sm:$0xff]
        %v1227 = vld [vmem:[#allocation4 + $0xb8] sm:$0xff]
        %v1228 = vld [vmem:[#allocation4 + $0xc0] sm:$0xff]
        %v1229 = vld [vmem:[#allocation4 + $0xc8] sm:$0xff]
        %v1230 = vld [vmem:[#allocation4 + $0xd0] sm:$0xff]
        %v1231 = vld [vmem:[#allocation4 + $0xd8] sm:$0xff]
        %v1232 = vld [vmem:[#allocation4 + $0xe0] sm:$0xff]
        %v1233 = vld [vmem:[#allocation4 + $0xe8] sm:$0xff]
        %v1234 = vld [vmem:[#allocation4 + $0xf0] sm:$0xff]
        %v1235 = vld [vmem:[#allocation4 + $0xf8] sm:$0xff]
        %v1236 = vld [vmem:[#allocation4 + $0x100] sm:$0xff]
        %v1237 = vld [vmem:[#allocation4 + $0x110] sm:$0xff]
        %v1238 = vld [vmem:[#allocation4 + $0x118] sm:$0xff]
        %v1239 = vld [vmem:[#allocation4 + $0x120] sm:$0xff]
        %v1240 = vld [vmem:[#allocation4 + $0x128] sm:$0xff]
        %v1241 = vld [vmem:[#allocation4 + $0x130] sm:$0xff]
        %v1242 = vld [vmem:[#allocation4 + $0x138] sm:$0xff]
        %v1243 = vld [vmem:[#allocation4 + $0x140] sm:$0xff]
        %v1244 = vld [vmem:[#allocation4 + $0x148] sm:$0xff]
        %v1245 = vld [vmem:[#allocation4 + $0x150] sm:$0xff]
        %v1246 = vld [vmem:[#allocation4 + $0x158] sm:$0xff]
        %v1247 = vld [vmem:[#allocation4 + $0x160] sm:$0xff]
        %v1248 = vld [vmem:[#allocation4 + $0x168] sm:$0xff]
        %v1249 = vld [vmem:[#allocation4 + $0x170] sm:$0xff]
        %v1250 = vld [vmem:[#allocation4 + $0x178] sm:$0xff]
        %v1251 = vld [vmem:[#allocation4 + $0x180] sm:$0xff]
        %v1252 = vld [vmem:[#allocation4 + $0x188] sm:$0xff]
        %v1253 = vld [vmem:[#allocation4 + $0x198] sm:$0xff]
        %v1254 = vld [vmem:[#allocation4 + $0x1a0] sm:$0xff]
        %v1255 = vld [vmem:[#allocation4 + $0x1a8] sm:$0xff]
        %v1256 = vld [vmem:[#allocation4 + $0x1b0] sm:$0xff]
        %v1257 = vld [vmem:[#allocation4 + $0x1b8] sm:$0xff]
        %v1258 = vld [vmem:[#allocation4 + $0x1c0] sm:$0xff]
        %v1259 = vld [vmem:[#allocation4 + $0x1c8] sm:$0xff]
        %v1260 = vld [vmem:[#allocation4 + $0x1d0] sm:$0xff]
        %v1261 = vld [vmem:[#allocation4 + $0x1d8] sm:$0xff]
        %v1262 = vld [vmem:[#allocation4 + $0x1e0] sm:$0xff]
        %v1263 = vld [vmem:[#allocation4 + $0x1e8] sm:$0xff]
        %v1264 = vld [vmem:[#allocation4 + $0x1f0] sm:$0xff]
        %v1265 = vld [vmem:[#allocation4 + $0x1f8] sm:$0xff]
        %v1266 = vld [vmem:[#allocation4 + $0x200] sm:$0xff]
        %v1267 = vld [vmem:[#allocation4 + $0x208] sm:$0xff]
        %v1268 = vld [vmem:[#allocation4 + $0x210] sm:$0xff]
        %v1269 = vld [vmem:[#allocation4 + $0x220] sm:$0xff]
        %v1270 = vld [vmem:[#allocation4 + $0x228] sm:$0xff]
        %v1271 = vld [vmem:[#allocation4 + $0x230] sm:$0xff]
        %v1272 = vld [vmem:[#allocation4 + $0x238] sm:$0xff]
        %v1273 = vld [vmem:[#allocation4 + $0x240] sm:$0xff]
        %v1274 = vld [vmem:[#allocation4 + $0x248] sm:$0xff]
        %v1275 = vld [vmem:[#allocation4 + $0x250] sm:$0xff]
        %v1276 = vld [vmem:[#allocation4 + $0x258] sm:$0xff]
        %v1277 = vld [vmem:[#allocation4 + $0x260] sm:$0xff]
        %v1278 = vld [vmem:[#allocation4 + $0x268] sm:$0xff]
        %v1279 = vld [vmem:[#allocation4 + $0x270] sm:$0xff]
        %v1280 = vld [vmem:[#allocation4 + $0x278] sm:$0xff]
        %v1281 = vld [vmem:[#allocation4 + $0x280] sm:$0xff]
        %v1282 = vld [vmem:[#allocation4 + $0x288] sm:$0xff]
        %v1283 = vld [vmem:[#allocation4 + $0x290] sm:$0xff]
        %v1284 = vld [vmem:[#allocation4 + $0x298] sm:$0xff]
        %v1285 = vld [vmem:[#allocation4 + $0x2a8] sm:$0xff]
        %v1286 = vld [vmem:[#allocation4 + $0x2b0] sm:$0xff]
        %v1287 = vld [vmem:[#allocation4 + $0x2b8] sm:$0xff]
        %v1288 = vld [vmem:[#allocation4 + $0x2c0] sm:$0xff]
        %v1289 = vld [vmem:[#allocation4 + $0x2c8] sm:$0xff]
        %v1290 = vld [vmem:[#allocation4 + $0x2d0] sm:$0xff]
        %v1291 = vld [vmem:[#allocation4 + $0x2d8] sm:$0xff]
        %v1292 = vld [vmem:[#allocation4 + $0x2e0] sm:$0xff]
        %v1293 = vld [vmem:[#allocation4 + $0x2e8] sm:$0xff]
        %v1294 = vld [vmem:[#allocation4 + $0x2f0] sm:$0xff]
        %v1295 = vld [vmem:[#allocation4 + $0x2f8] sm:$0xff]
        %v1296 = vld [vmem:[#allocation4 + $0x300] sm:$0xff]
        %v1297 = vld [vmem:[#allocation4 + $0x308] sm:$0xff]
        %v1298 = vld [vmem:[#allocation4 + $0x310] sm:$0xff]
        %v1299 = vld [vmem:[#allocation4 + $0x318] sm:$0xff]
        %v1300 = vld [vmem:[#allocation4 + $0x320] sm:$0xff]
        %v1301 = vld [vmem:[#allocation4 + $0x330] sm:$0xff]
        %v1302 = vld [vmem:[#allocation4 + $0x338] sm:$0xff]
        %v1303 = vld [vmem:[#allocation4 + $0x340] sm:$0xff]
        %v1304 = vld [vmem:[#allocation4 + $0x348] sm:$0xff]
        %v1305 = vld [vmem:[#allocation4 + $0x350] sm:$0xff]
        %v1306 = vld [vmem:[#allocation4 + $0x358] sm:$0xff]
        %v1307 = vld [vmem:[#allocation4 + $0x360] sm:$0xff]
        %v1308 = vld [vmem:[#allocation4 + $0x368] sm:$0xff]
        %v1309 = vld [vmem:[#allocation4 + $0x370] sm:$0xff]
        %v1310 = vld [vmem:[#allocation4 + $0x378] sm:$0xff]
        %v1311 = vld [vmem:[#allocation4 + $0x380] sm:$0xff]
        %v1312 = vld [vmem:[#allocation4 + $0x388] sm:$0xff]
        %v1313 = vld [vmem:[#allocation4 + $0x390] sm:$0xff]
        %v1314 = vld [vmem:[#allocation4 + $0x398] sm:$0xff]
        %v1315 = vld [vmem:[#allocation4 + $0x3a0] sm:$0xff]
        %v1316 = vld [vmem:[#allocation4 + $0x3a8] sm:$0xff]
        %v1317 = vld [vmem:[#allocation4 + $0x3b8] sm:$0xff]
        %v1318 = vld [vmem:[#allocation4 + $0x3c0] sm:$0xff]
        %v1319 = vld [vmem:[#allocation4 + $0x3c8] sm:$0xff]
        %v1320 = vld [vmem:[#allocation4 + $0x3d0] sm:$0xff]
        %v1321 = vld [vmem:[#allocation4 + $0x3d8] sm:$0xff]
        %v1322 = vld [vmem:[#allocation4 + $0x3e0] sm:$0xff]
        %v1323 = vld [vmem:[#allocation4 + $0x3e8] sm:$0xff]
        %v1324 = vld [vmem:[#allocation4 + $0x3f0] sm:$0xff]
        %v1325 = vld [vmem:[#allocation4 + $0x3f8] sm:$0xff]
        %v1326 = vld [vmem:[#allocation4 + $0x400] sm:$0xff]
        %v1327 = vld [vmem:[#allocation4 + $0x408] sm:$0xff]
        %v1328 = vld [vmem:[#allocation4 + $0x410] sm:$0xff]
        %v1329 = vld [vmem:[#allocation4 + $0x418] sm:$0xff]
        %v1330 = vld [vmem:[#allocation4 + $0x420] sm:$0xff]
        %v1331 = vld [vmem:[#allocation4 + $0x428] sm:$0xff]
        %v1332 = vld [vmem:[#allocation4 + $0x430] sm:$0xff]
        %v1333 = vld [vmem:[#allocation4 + $0x440] sm:$0xff]
        %v1334 = vld [vmem:[#allocation4 + $0x448] sm:$0xff]
        %v1335 = vld [vmem:[#allocation4 + $0x450] sm:$0xff]
        %v1336 = vld [vmem:[#allocation4 + $0x458] sm:$0xff]
        %v1337 = vld [vmem:[#allocation4 + $0x460] sm:$0xff]
        %v1338 = vld [vmem:[#allocation4 + $0x468] sm:$0xff]
        %v1339 = vld [vmem:[#allocation4 + $0x470] sm:$0xff]
        %v1340 = vld [vmem:[#allocation4 + $0x478] sm:$0xff]
        %v1341 = vld [vmem:[#allocation4 + $0x480] sm:$0xff]
        %v1342 = vld [vmem:[#allocation4 + $0x488] sm:$0xff]
        %v1343 = vld [vmem:[#allocation4 + $0x490] sm:$0xff]
        %v1344 = vld [vmem:[#allocation4 + $0x498] sm:$0xff]
        %v1345 = vld [vmem:[#allocation4 + $0x4a0] sm:$0xff]
        %v1346 = vld [vmem:[#allocation4 + $0x4a8] sm:$0xff]
        %v1347 = vld [vmem:[#allocation4 + $0x4b0] sm:$0xff]
        %v1348 = vld [vmem:[#allocation4 + $0x4b8] sm:$0xff]
        %v1349 = vld [vmem:[%s4] sm:$0xff]
        %1351 = vset.pattern.permute.xlu0 0
        %1352 = vperm.xlu0 %1351, %v1349
        %v1353 = vpop.permute.xlu0 %1352
        %vm1355 = vcmask 588800
        %v1357 = vsel %vm1355, %v1204, 0
        %1359 = vmatprep.subr.mxu0 %v1206
        %1360 = vmatpush1.msra.mxu0 %v1205
        %1361 = vmatprep.subr.mxu0 %v1222
        %1362 = vmatpush1.msra.mxu0 %v1221
        %1363 = vmatprep.subr.mxu0 %v1238
        %1364 = vmatpush1.msra.mxu0 %v1237
        %1365 = vmatprep.subr.mxu0 %v1254
        %1366 = vmatpush1.msra.mxu0 %v1253
        %1367 = vmatprep.subr.mxu0 %v1270
        %1368 = vmatpush1.msra.mxu0 %v1269
        %1369 = vmatprep.subr.mxu0 %v1286
        %1370 = vmatpush1.msra.mxu0 %v1285
        %1371 = vmatprep.subr.mxu0 %v1302
        %1372 = vmatpush1.msra.mxu0 %v1301
        %1373 = vmatprep.subr.mxu0 %v1318
        %1374 = vmatpush1.msra.mxu0 %v1317
        %1375 = vmatprep.subr.mxu0 %v1334
        %1376 = vmatpush1.msra.mxu0 %v1333
        %1377 = vmatprep.subr.mxu0 0.0
        %1378 = vmatpush1.msra.mxu0 0.0
        %1379 = vmatprep.subr.mxu0 0.0
        %1380 = vmatpush1.msra.mxu0 0.0
        %1381 = vmatprep.subr.mxu0 0.0
        %1382 = vmatpush1.msra.mxu0 0.0
        %1383 = vmatprep.subr.mxu0 0.0
        %1384 = vmatpush1.msra.mxu0 0.0
        %1385 = vmatprep.subr.mxu0 0.0
        %1386 = vmatpush1.msra.mxu0 0.0
        %1387 = vmatprep.subr.mxu0 0.0
        %1388 = vmatpush1.msra.mxu0 0.0
        %1389 = vmatprep.subr.mxu0 0.0
        %1390 = vmatpush1.msra.mxu0 0.0
        %1391 = vmatprep.subr.mxu0 0.0
        %1392 = vmatpush1.msra.mxu0 0.0
        %1393 = vmatprep.subr.mxu0 0.0
        %1394 = vmatpush1.msra.mxu0 0.0
        %1395 = vmatprep.subr.mxu0 0.0
        %1396 = vmatpush1.msra.mxu0 0.0
        %1397 = vmatprep.subr.mxu0 0.0
        %1398 = vmatpush1.msra.mxu0 0.0
        %1399 = vmatprep.subr.mxu0 0.0
        %1400 = vmatpush1.msra.mxu0 0.0
        %1401 = vmatprep.subr.mxu0 0.0
        %1402 = vmatpush1.msra.mxu0 0.0
        %1403 = vmatprep.subr.mxu0 0.0
        %1404 = vmatpush1.msra.mxu0 0.0
        %1405 = vmatprep.subr.mxu0 0.0
        %1406 = vmatpush1.msra.mxu0 0.0
        %1407 = vmatprep.subr.mxu0 0.0
        %1408 = vmatpush1.msra.mxu0 0.0
        %1409 = vmatprep.subr.mxu0 0.0
        %1410 = vmatpush1.msra.mxu0 0.0
        %1411 = vmatprep.subr.mxu0 0.0
        %1412 = vmatpush1.msra.mxu0 0.0
        %1413 = vmatprep.subr.mxu0 0.0
        %1414 = vmatpush1.msra.mxu0 0.0
        %1415 = vmatprep.subr.mxu0 0.0
        %1416 = vmatpush1.msra.mxu0 0.0
        %1417 = vmatprep.subr.mxu0 0.0
        %1418 = vmatpush1.msra.mxu0 0.0
        %1419 = vmatprep.subr.mxu0 0.0
        %1420 = vmatpush1.msra.mxu0 0.0
        %1421 = vmatprep.subr.mxu0 0.0
        %1422 = vmatpush1.msra.mxu0 0.0
        %1423 = vmatprep.mubr.f32.mxu0 0.0
        %1424 = vmatmul.mubr.f32.gmra.mrb[0].mxu0 %v1357
        %v1425 = vpop.f32.mrb[0].mxu0
        %v1426 = vadd.f32 %v1353, %v1425
        %v1427 = vpop.f32.mrb[0].mxu0
        %v1428 = vadd.f32 %v1353, %v1427
        %1429 = vdwg.mxu0
        %1430 = vmatprep.subr.mxu0 %v1208
        %1431 = vmatpush1.msra.mxu0 %v1207
        %1432 = vmatprep.subr.mxu0 %v1224
        %1433 = vmatpush1.msra.mxu0 %v1223
        %1434 = vmatprep.subr.mxu0 %v1240
        %1435 = vmatpush1.msra.mxu0 %v1239
        %1436 = vmatprep.subr.mxu0 %v1256
        %1437 = vmatpush1.msra.mxu0 %v1255
        %1438 = vmatprep.subr.mxu0 %v1272
        %1439 = vmatpush1.msra.mxu0 %v1271
        %1440 = vmatprep.subr.mxu0 %v1288
        %1441 = vmatpush1.msra.mxu0 %v1287
        %1442 = vmatprep.subr.mxu0 %v1304
        %1443 = vmatpush1.msra.mxu0 %v1303
        %1444 = vmatprep.subr.mxu0 %v1320
        %1445 = vmatpush1.msra.mxu0 %v1319
        %1446 = vmatprep.subr.mxu0 %v1336
        %1447 = vmatpush1.msra.mxu0 %v1335
        %1448 = vmatprep.subr.mxu0 0.0
        %1449 = vmatpush1.msra.mxu0 0.0
        %1450 = vmatprep.subr.mxu0 0.0
        %1451 = vmatpush1.msra.mxu0 0.0
        %1452 = vmatprep.subr.mxu0 0.0
        %1453 = vmatpush1.msra.mxu0 0.0
        %1454 = vmatprep.subr.mxu0 0.0
        %1455 = vmatpush1.msra.mxu0 0.0
        %1456 = vmatprep.subr.mxu0 0.0
        %1457 = vmatpush1.msra.mxu0 0.0
        %1458 = vmatprep.subr.mxu0 0.0
        %1459 = vmatpush1.msra.mxu0 0.0
        %1460 = vmatprep.subr.mxu0 0.0
        %1461 = vmatpush1.msra.mxu0 0.0
        %1462 = vmatprep.subr.mxu0 0.0
        %1463 = vmatpush1.msra.mxu0 0.0
        %1464 = vmatprep.subr.mxu0 0.0
        %1465 = vmatpush1.msra.mxu0 0.0
        %1466 = vmatprep.subr.mxu0 0.0
        %1467 = vmatpush1.msra.mxu0 0.0
        %1468 = vmatprep.subr.mxu0 0.0
        %1469 = vmatpush1.msra.mxu0 0.0
        %1470 = vmatprep.subr.mxu0 0.0
        %1471 = vmatpush1.msra.mxu0 0.0
        %1472 = vmatprep.subr.mxu0 0.0
        %1473 = vmatpush1.msra.mxu0 0.0
        %1474 = vmatprep.subr.mxu0 0.0
        %1475 = vmatpush1.msra.mxu0 0.0
        %1476 = vmatprep.subr.mxu0 0.0
        %1477 = vmatpush1.msra.mxu0 0.0
        %1478 = vmatprep.subr.mxu0 0.0
        %1479 = vmatpush1.msra.mxu0 0.0
        %1480 = vmatprep.subr.mxu0 0.0
        %1481 = vmatpush1.msra.mxu0 0.0
        %1482 = vmatprep.subr.mxu0 0.0
        %1483 = vmatpush1.msra.mxu0 0.0
        %1484 = vmatprep.subr.mxu0 0.0
        %1485 = vmatpush1.msra.mxu0 0.0
        %1486 = vmatprep.subr.mxu0 0.0
        %1487 = vmatpush1.msra.mxu0 0.0
        %1488 = vmatprep.subr.mxu0 0.0
        %1489 = vmatpush1.msra.mxu0 0.0
        %1490 = vmatprep.subr.mxu0 0.0
        %1491 = vmatpush1.msra.mxu0 0.0
        %1492 = vmatprep.subr.mxu0 0.0
        %1493 = vmatpush1.msra.mxu0 0.0
        %1494 = vmatprep.mubr.f32.mxu0 0.0
        %1495 = vmatmul.mubr.f32.gmra.mrb[0].mxu0 %v1357
        %v1496 = vpop.f32.mrb[0].mxu0
        %v1497 = vadd.f32 %v1353, %v1496
        %v1498 = vpop.f32.mrb[0].mxu0
        %v1499 = vadd.f32 %v1353, %v1498
        %1500 = vdwg.mxu0
        %1501 = vmatprep.subr.mxu0 %v1210
        %1502 = vmatpush1.msra.mxu0 %v1209
        %1503 = vmatprep.subr.mxu0 %v1226
        %1504 = vmatpush1.msra.mxu0 %v1225
        %1505 = vmatprep.subr.mxu0 %v1242
        %1506 = vmatpush1.msra.mxu0 %v1241
        %1507 = vmatprep.subr.mxu0 %v1258
        %1508 = vmatpush1.msra.mxu0 %v1257
        %1509 = vmatprep.subr.mxu0 %v1274
        %1510 = vmatpush1.msra.mxu0 %v1273
        %1511 = vmatprep.subr.mxu0 %v1290
        %1512 = vmatpush1.msra.mxu0 %v1289
        %1513 = vmatprep.subr.mxu0 %v1306
        %1514 = vmatpush1.msra.mxu0 %v1305
        %1515 = vmatprep.subr.mxu0 %v1322
        %1516 = vmatpush1.msra.mxu0 %v1321
        %1517 = vmatprep.subr.mxu0 %v1338
        %1518 = vmatpush1.msra.mxu0 %v1337
        %1519 = vmatprep.subr.mxu0 0.0
        %1520 = vmatpush1.msra.mxu0 0.0
        %1521 = vmatprep.subr.mxu0 0.0
        %1522 = vmatpush1.msra.mxu0 0.0
        %1523 = vmatprep.subr.mxu0 0.0
        %1524 = vmatpush1.msra.mxu0 0.0
        %1525 = vmatprep.subr.mxu0 0.0
        %1526 = vmatpush1.msra.mxu0 0.0
        %1527 = vmatprep.subr.mxu0 0.0
        %1528 = vmatpush1.msra.mxu0 0.0
        %1529 = vmatprep.subr.mxu0 0.0
        %1530 = vmatpush1.msra.mxu0 0.0
        %1531 = vmatprep.subr.mxu0 0.0
        %1532 = vmatpush1.msra.mxu0 0.0
        %1533 = vmatprep.subr.mxu0 0.0
        %1534 = vmatpush1.msra.mxu0 0.0
        %1535 = vmatprep.subr.mxu0 0.0
        %1536 = vmatpush1.msra.mxu0 0.0
        %1537 = vmatprep.subr.mxu0 0.0
        %1538 = vmatpush1.msra.mxu0 0.0
        %1539 = vmatprep.subr.mxu0 0.0
        %1540 = vmatpush1.msra.mxu0 0.0
        %1541 = vmatprep.subr.mxu0 0.0
        %1542 = vmatpush1.msra.mxu0 0.0
        %1543 = vmatprep.subr.mxu0 0.0
        %1544 = vmatpush1.msra.mxu0 0.0
        %1545 = vmatprep.subr.mxu0 0.0
        %1546 = vmatpush1.msra.mxu0 0.0
        %1547 = vmatprep.subr.mxu0 0.0
        %1548 = vmatpush1.msra.mxu0 0.0
        %1549 = vmatprep.subr.mxu0 0.0
        %1550 = vmatpush1.msra.mxu0 0.0
        %1551 = vmatprep.subr.mxu0 0.0
        %1552 = vmatpush1.msra.mxu0 0.0
        %1553 = vmatprep.subr.mxu0 0.0
        %1554 = vmatpush1.msra.mxu0 0.0
        %1555 = vmatprep.subr.mxu0 0.0
        %1556 = vmatpush1.msra.mxu0 0.0
        %1557 = vmatprep.subr.mxu0 0.0
        %1558 = vmatpush1.msra.mxu0 0.0
        %1559 = vmatprep.subr.mxu0 0.0
        %1560 = vmatpush1.msra.mxu0 0.0
        %1561 = vmatprep.subr.mxu0 0.0
        %1562 = vmatpush1.msra.mxu0 0.0
        %1563 = vmatprep.subr.mxu0 0.0
        %1564 = vmatpush1.msra.mxu0 0.0
        %1565 = vmatprep.mubr.f32.mxu0 0.0
        %1566 = vmatmul.mubr.f32.gmra.mrb[0].mxu0 %v1357
        %v1567 = vpop.f32.mrb[0].mxu0
        %v1568 = vadd.f32 %v1353, %v1567
        %v1569 = vpop.f32.mrb[0].mxu0
        %v1570 = vadd.f32 %v1353, %v1569
        %1571 = vdwg.mxu0
        %1572 = vmatprep.subr.mxu0 %v1212
        %1573 = vmatpush1.msra.mxu0 %v1211
        %1574 = vmatprep.subr.mxu0 %v1228
        %1575 = vmatpush1.msra.mxu0 %v1227
        %1576 = vmatprep.subr.mxu0 %v1244
        %1577 = vmatpush1.msra.mxu0 %v1243
        %1578 = vmatprep.subr.mxu0 %v1260
        %1579 = vmatpush1.msra.mxu0 %v1259
        %1580 = vmatprep.subr.mxu0 %v1276
        %1581 = vmatpush1.msra.mxu0 %v1275
        %1582 = vmatprep.subr.mxu0 %v1292
        %1583 = vmatpush1.msra.mxu0 %v1291
        %1584 = vmatprep.subr.mxu0 %v1308
        %1585 = vmatpush1.msra.mxu0 %v1307
        %1586 = vmatprep.subr.mxu0 %v1324
        %1587 = vmatpush1.msra.mxu0 %v1323
        %1588 = vmatprep.subr.mxu0 %v1340
        %1589 = vmatpush1.msra.mxu0 %v1339
        %1590 = vmatprep.subr.mxu0 0.0
        %1591 = vmatpush1.msra.mxu0 0.0
        %1592 = vmatprep.subr.mxu0 0.0
        %1593 = vmatpush1.msra.mxu0 0.0
        %1594 = vmatprep.subr.mxu0 0.0
        %1595 = vmatpush1.msra.mxu0 0.0
        %1596 = vmatprep.subr.mxu0 0.0
        %1597 = vmatpush1.msra.mxu0 0.0
        %1598 = vmatprep.subr.mxu0 0.0
        %1599 = vmatpush1.msra.mxu0 0.0
        %1600 = vmatprep.subr.mxu0 0.0
        %1601 = vmatpush1.msra.mxu0 0.0
        %1602 = vmatprep.subr.mxu0 0.0
        %1603 = vmatpush1.msra.mxu0 0.0
        %1604 = vmatprep.subr.mxu0 0.0
        %1605 = vmatpush1.msra.mxu0 0.0
        %1606 = vmatprep.subr.mxu0 0.0
        %1607 = vmatpush1.msra.mxu0 0.0
        %1608 = vmatprep.subr.mxu0 0.0
        %1609 = vmatpush1.msra.mxu0 0.0
        %1610 = vmatprep.subr.mxu0 0.0
        %1611 = vmatpush1.msra.mxu0 0.0
        %1612 = vmatprep.subr.mxu0 0.0
        %1613 = vmatpush1.msra.mxu0 0.0
        %1614 = vmatprep.subr.mxu0 0.0
        %1615 = vmatpush1.msra.mxu0 0.0
        %1616 = vmatprep.subr.mxu0 0.0
        %1617 = vmatpush1.msra.mxu0 0.0
        %1618 = vmatprep.subr.mxu0 0.0
        %1619 = vmatpush1.msra.mxu0 0.0
        %1620 = vmatprep.subr.mxu0 0.0
        %1621 = vmatpush1.msra.mxu0 0.0
        %1622 = vmatprep.subr.mxu0 0.0
        %1623 = vmatpush1.msra.mxu0 0.0
        %1624 = vmatprep.subr.mxu0 0.0
        %1625 = vmatpush1.msra.mxu0 0.0
        %1626 = vmatprep.subr.mxu0 0.0
        %1627 = vmatpush1.msra.mxu0 0.0
        %1628 = vmatprep.subr.mxu0 0.0
        %1629 = vmatpush1.msra.mxu0 0.0
        %1630 = vmatprep.subr.mxu0 0.0
        %1631 = vmatpush1.msra.mxu0 0.0
        %1632 = vmatprep.subr.mxu0 0.0
        %1633 = vmatpush1.msra.mxu0 0.0
        %1634 = vmatprep.subr.mxu0 0.0
        %1635 = vmatpush1.msra.mxu0 0.0
        %1636 = vmatprep.mubr.f32.mxu0 0.0
        %1637 = vmatmul.mubr.f32.gmra.mrb[0].mxu0 %v1357
        %v1638 = vpop.f32.mrb[0].mxu0
        %v1639 = vadd.f32 %v1353, %v1638
        %v1640 = vpop.f32.mrb[0].mxu0
        %v1641 = vadd.f32 %v1353, %v1640
        %1642 = vdwg.mxu0
        %1643 = vmatprep.subr.mxu0 %v1214
        %1644 = vmatpush1.msra.mxu0 %v1213
        %1645 = vmatprep.subr.mxu0 %v1230
        %1646 = vmatpush1.msra.mxu0 %v1229
        %1647 = vmatprep.subr.mxu0 %v1246
        %1648 = vmatpush1.msra.mxu0 %v1245
        %1649 = vmatprep.subr.mxu0 %v1262
        %1650 = vmatpush1.msra.mxu0 %v1261
        %1651 = vmatprep.subr.mxu0 %v1278
        %1652 = vmatpush1.msra.mxu0 %v1277
        %1653 = vmatprep.subr.mxu0 %v1294
        %1654 = vmatpush1.msra.mxu0 %v1293
        %1655 = vmatprep.subr.mxu0 %v1310
        %1656 = vmatpush1.msra.mxu0 %v1309
        %1657 = vmatprep.subr.mxu0 %v1326
        %1658 = vmatpush1.msra.mxu0 %v1325
        %1659 = vmatprep.subr.mxu0 %v1342
        %1660 = vmatpush1.msra.mxu0 %v1341
        %1661 = vmatprep.subr.mxu0 0.0
        %1662 = vmatpush1.msra.mxu0 0.0
        %1663 = vmatprep.subr.mxu0 0.0
        %1664 = vmatpush1.msra.mxu0 0.0
        %1665 = vmatprep.subr.mxu0 0.0
        %1666 = vmatpush1.msra.mxu0 0.0
        %1667 = vmatprep.subr.mxu0 0.0
        %1668 = vmatpush1.msra.mxu0 0.0
        %1669 = vmatprep.subr.mxu0 0.0
        %1670 = vmatpush1.msra.mxu0 0.0
        %1671 = vmatprep.subr.mxu0 0.0
        %1672 = vmatpush1.msra.mxu0 0.0
        %1673 = vmatprep.subr.mxu0 0.0
        %1674 = vmatpush1.msra.mxu0 0.0
        %1675 = vmatprep.subr.mxu0 0.0
        %1676 = vmatpush1.msra.mxu0 0.0
        %1677 = vmatprep.subr.mxu0 0.0
        %1678 = vmatpush1.msra.mxu0 0.0
        %1679 = vmatprep.subr.mxu0 0.0
        %1680 = vmatpush1.msra.mxu0 0.0
        %1681 = vmatprep.subr.mxu0 0.0
        %1682 = vmatpush1.msra.mxu0 0.0
        %1683 = vmatprep.subr.mxu0 0.0
        %1684 = vmatpush1.msra.mxu0 0.0
        %1685 = vmatprep.subr.mxu0 0.0
        %1686 = vmatpush1.msra.mxu0 0.0
        %1687 = vmatprep.subr.mxu0 0.0
        %1688 = vmatpush1.msra.mxu0 0.0
        %1689 = vmatprep.subr.mxu0 0.0
        %1690 = vmatpush1.msra.mxu0 0.0
        %1691 = vmatprep.subr.mxu0 0.0
        %1692 = vmatpush1.msra.mxu0 0.0
        %1693 = vmatprep.subr.mxu0 0.0
        %1694 = vmatpush1.msra.mxu0 0.0
        %1695 = vmatprep.subr.mxu0 0.0
        %1696 = vmatpush1.msra.mxu0 0.0
        %1697 = vmatprep.subr.mxu0 0.0
        %1698 = vmatpush1.msra.mxu0 0.0
        %1699 = vmatprep.subr.mxu0 0.0
        %1700 = vmatpush1.msra.mxu0 0.0
        %1701 = vmatprep.subr.mxu0 0.0
        %1702 = vmatpush1.msra.mxu0 0.0
        %1703 = vmatprep.subr.mxu0 0.0
        %1704 = vmatpush1.msra.mxu0 0.0
        %1705 = vmatprep.subr.mxu0 0.0
        %1706 = vmatpush1.msra.mxu0 0.0
        %1707 = vmatprep.mubr.f32.mxu0 0.0
        %1708 = vmatmul.mubr.f32.gmra.mrb[0].mxu0 %v1357
        %v1709 = vpop.f32.mrb[0].mxu0
        %v1710 = vadd.f32 %v1353, %v1709
        %v1711 = vpop.f32.mrb[0].mxu0
        %v1712 = vadd.f32 %v1353, %v1711
        %1713 = vdwg.mxu0
        %1714 = vmatprep.subr.mxu0 %v1216
        %1715 = vmatpush1.msra.mxu0 %v1215
        %1716 = vmatprep.subr.mxu0 %v1232
        %1717 = vmatpush1.msra.mxu0 %v1231
        %1718 = vmatprep.subr.mxu0 %v1248
        %1719 = vmatpush1.msra.mxu0 %v1247
        %1720 = vmatprep.subr.mxu0 %v1264
        %1721 = vmatpush1.msra.mxu0 %v1263
        %1722 = vmatprep.subr.mxu0 %v1280
        %1723 = vmatpush1.msra.mxu0 %v1279
        %1724 = vmatprep.subr.mxu0 %v1296
        %1725 = vmatpush1.msra.mxu0 %v1295
        %1726 = vmatprep.subr.mxu0 %v1312
        %1727 = vmatpush1.msra.mxu0 %v1311
        %1728 = vmatprep.subr.mxu0 %v1328
        %1729 = vmatpush1.msra.mxu0 %v1327
        %1730 = vmatprep.subr.mxu0 %v1344
        %1731 = vmatpush1.msra.mxu0 %v1343
        %1732 = vmatprep.subr.mxu0 0.0
        %1733 = vmatpush1.msra.mxu0 0.0
        %1734 = vmatprep.subr.mxu0 0.0
        %1735 = vmatpush1.msra.mxu0 0.0
        %1736 = vmatprep.subr.mxu0 0.0
        %1737 = vmatpush1.msra.mxu0 0.0
        %1738 = vmatprep.subr.mxu0 0.0
        %1739 = vmatpush1.msra.mxu0 0.0
        %1740 = vmatprep.subr.mxu0 0.0
        %1741 = vmatpush1.msra.mxu0 0.0
        %1742 = vmatprep.subr.mxu0 0.0
        %1743 = vmatpush1.msra.mxu0 0.0
        %1744 = vmatprep.subr.mxu0 0.0
        %1745 = vmatpush1.msra.mxu0 0.0
        %1746 = vmatprep.subr.mxu0 0.0
        %1747 = vmatpush1.msra.mxu0 0.0
        %1748 = vmatprep.subr.mxu0 0.0
        %1749 = vmatpush1.msra.mxu0 0.0
        %1750 = vmatprep.subr.mxu0 0.0
        %1751 = vmatpush1.msra.mxu0 0.0
        %1752 = vmatprep.subr.mxu0 0.0
        %1753 = vmatpush1.msra.mxu0 0.0
        %1754 = vmatprep.subr.mxu0 0.0
        %1755 = vmatpush1.msra.mxu0 0.0
        %1756 = vmatprep.subr.mxu0 0.0
        %1757 = vmatpush1.msra.mxu0 0.0
        %1758 = vmatprep.subr.mxu0 0.0
        %1759 = vmatpush1.msra.mxu0 0.0
        %1760 = vmatprep.subr.mxu0 0.0
        %1761 = vmatpush1.msra.mxu0 0.0
        %1762 = vmatprep.subr.mxu0 0.0
        %1763 = vmatpush1.msra.mxu0 0.0
        %1764 = vmatprep.subr.mxu0 0.0
        %1765 = vmatpush1.msra.mxu0 0.0
        %1766 = vmatprep.subr.mxu0 0.0
        %1767 = vmatpush1.msra.mxu0 0.0
        %1768 = vmatprep.subr.mxu0 0.0
        %1769 = vmatpush1.msra.mxu0 0.0
        %1770 = vmatprep.subr.mxu0 0.0
        %1771 = vmatpush1.msra.mxu0 0.0
        %1772 = vmatprep.subr.mxu0 0.0
        %1773 = vmatpush1.msra.mxu0 0.0
        %1774 = vmatprep.subr.mxu0 0.0
        %1775 = vmatpush1.msra.mxu0 0.0
        %1776 = vmatprep.subr.mxu0 0.0
        %1777 = vmatpush1.msra.mxu0 0.0
        %1778 = vmatprep.mubr.f32.mxu0 0.0
        %1779 = vmatmul.mubr.f32.gmra.mrb[0].mxu0 %v1357
        %v1780 = vpop.f32.mrb[0].mxu0
        %v1781 = vadd.f32 %v1353, %v1780
        %v1782 = vpop.f32.mrb[0].mxu0
        %v1783 = vadd.f32 %v1353, %v1782
        %1784 = vdwg.mxu0
        %1785 = vmatprep.subr.mxu0 %v1218
        %1786 = vmatpush1.msra.mxu0 %v1217
        %1787 = vmatprep.subr.mxu0 %v1234
        %1788 = vmatpush1.msra.mxu0 %v1233
        %1789 = vmatprep.subr.mxu0 %v1250
        %1790 = vmatpush1.msra.mxu0 %v1249
        %1791 = vmatprep.subr.mxu0 %v1266
        %1792 = vmatpush1.msra.mxu0 %v1265
        %1793 = vmatprep.subr.mxu0 %v1282
        %1794 = vmatpush1.msra.mxu0 %v1281
        %1795 = vmatprep.subr.mxu0 %v1298
        %1796 = vmatpush1.msra.mxu0 %v1297
        %1797 = vmatprep.subr.mxu0 %v1314
        %1798 = vmatpush1.msra.mxu0 %v1313
        %1799 = vmatprep.subr.mxu0 %v1330
        %1800 = vmatpush1.msra.mxu0 %v1329
        %1801 = vmatprep.subr.mxu0 %v1346
        %1802 = vmatpush1.msra.mxu0 %v1345
        %1803 = vmatprep.subr.mxu0 0.0
        %1804 = vmatpush1.msra.mxu0 0.0
        %1805 = vmatprep.subr.mxu0 0.0
        %1806 = vmatpush1.msra.mxu0 0.0
        %1807 = vmatprep.subr.mxu0 0.0
        %1808 = vmatpush1.msra.mxu0 0.0
        %1809 = vmatprep.subr.mxu0 0.0
        %1810 = vmatpush1.msra.mxu0 0.0
        %1811 = vmatprep.subr.mxu0 0.0
        %1812 = vmatpush1.msra.mxu0 0.0
        %1813 = vmatprep.subr.mxu0 0.0
        %1814 = vmatpush1.msra.mxu0 0.0
        %1815 = vmatprep.subr.mxu0 0.0
        %1816 = vmatpush1.msra.mxu0 0.0
        %1817 = vmatprep.subr.mxu0 0.0
        %1818 = vmatpush1.msra.mxu0 0.0
        %1819 = vmatprep.subr.mxu0 0.0
        %1820 = vmatpush1.msra.mxu0 0.0
        %1821 = vmatprep.subr.mxu0 0.0
        %1822 = vmatpush1.msra.mxu0 0.0
        %1823 = vmatprep.subr.mxu0 0.0
        %1824 = vmatpush1.msra.mxu0 0.0
        %1825 = vmatprep.subr.mxu0 0.0
        %1826 = vmatpush1.msra.mxu0 0.0
        %1827 = vmatprep.subr.mxu0 0.0
        %1828 = vmatpush1.msra.mxu0 0.0
        %1829 = vmatprep.subr.mxu0 0.0
        %1830 = vmatpush1.msra.mxu0 0.0
        %1831 = vmatprep.subr.mxu0 0.0
        %1832 = vmatpush1.msra.mxu0 0.0
        %1833 = vmatprep.subr.mxu0 0.0
        %1834 = vmatpush1.msra.mxu0 0.0
        %1835 = vmatprep.subr.mxu0 0.0
        %1836 = vmatpush1.msra.mxu0 0.0
        %1837 = vmatprep.subr.mxu0 0.0
        %1838 = vmatpush1.msra.mxu0 0.0
        %1839 = vmatprep.subr.mxu0 0.0
        %1840 = vmatpush1.msra.mxu0 0.0
        %1841 = vmatprep.subr.mxu0 0.0
        %1842 = vmatpush1.msra.mxu0 0.0
        %1843 = vmatprep.subr.mxu0 0.0
        %1844 = vmatpush1.msra.mxu0 0.0
        %1845 = vmatprep.subr.mxu0 0.0
        %1846 = vmatpush1.msra.mxu0 0.0
        %1847 = vmatprep.subr.mxu0 0.0
        %1848 = vmatpush1.msra.mxu0 0.0
        %1849 = vmatprep.mubr.f32.mxu0 0.0
        %1850 = vmatmul.mubr.f32.gmra.mrb[0].mxu0 %v1357
        %v1851 = vpop.f32.mrb[0].mxu0
        %v1852 = vadd.f32 %v1353, %v1851
        %v1853 = vpop.f32.mrb[0].mxu0
        %v1854 = vadd.f32 %v1353, %v1853
        %1855 = vdwg.mxu0
        %1856 = vmatprep.subr.mxu0 %v1220
        %1857 = vmatpush1.msra.mxu0 %v1219
        %1858 = vmatprep.subr.mxu0 %v1236
        %1859 = vmatpush1.msra.mxu0 %v1235
        %1860 = vmatprep.subr.mxu0 %v1252
        %1861 = vmatpush1.msra.mxu0 %v1251
        %1862 = vmatprep.subr.mxu0 %v1268
        %1863 = vmatpush1.msra.mxu0 %v1267
        %1864 = vmatprep.subr.mxu0 %v1284
        %1865 = vmatpush1.msra.mxu0 %v1283
        %1866 = vmatprep.subr.mxu0 %v1300
        %1867 = vmatpush1.msra.mxu0 %v1299
        %1868 = vmatprep.subr.mxu0 %v1316
        %1869 = vmatpush1.msra.mxu0 %v1315
        %1870 = vmatprep.subr.mxu0 %v1332
        %1871 = vmatpush1.msra.mxu0 %v1331
        %1872 = vmatprep.subr.mxu0 %v1348
        %1873 = vmatpush1.msra.mxu0 %v1347
        %1874 = vmatprep.subr.mxu0 0.0
        %1875 = vmatpush1.msra.mxu0 0.0
        %1876 = vmatprep.subr.mxu0 0.0
        %1877 = vmatpush1.msra.mxu0 0.0
        %1878 = vmatprep.subr.mxu0 0.0
        %1879 = vmatpush1.msra.mxu0 0.0
        %1880 = vmatprep.subr.mxu0 0.0
        %1881 = vmatpush1.msra.mxu0 0.0
        %1882 = vmatprep.subr.mxu0 0.0
        %1883 = vmatpush1.msra.mxu0 0.0
        %1884 = vmatprep.subr.mxu0 0.0
        %1885 = vmatpush1.msra.mxu0 0.0
        %1886 = vmatprep.subr.mxu0 0.0
        %1887 = vmatpush1.msra.mxu0 0.0
        %1888 = vmatprep.subr.mxu0 0.0
        %1889 = vmatpush1.msra.mxu0 0.0
        %1890 = vmatprep.subr.mxu0 0.0
        %1891 = vmatpush1.msra.mxu0 0.0
        %1892 = vmatprep.subr.mxu0 0.0
        %1893 = vmatpush1.msra.mxu0 0.0
        %1894 = vmatprep.subr.mxu0 0.0
        %1895 = vmatpush1.msra.mxu0 0.0
        %1896 = vmatprep.subr.mxu0 0.0
        %1897 = vmatpush1.msra.mxu0 0.0
        %1898 = vmatprep.subr.mxu0 0.0
        %1899 = vmatpush1.msra.mxu0 0.0
        %1900 = vmatprep.subr.mxu0 0.0
        %1901 = vmatpush1.msra.mxu0 0.0
        %1902 = vmatprep.subr.mxu0 0.0
        %1903 = vmatpush1.msra.mxu0 0.0
        %1904 = vmatprep.subr.mxu0 0.0
        %1905 = vmatpush1.msra.mxu0 0.0
        %1906 = vmatprep.subr.mxu0 0.0
        %1907 = vmatpush1.msra.mxu0 0.0
        %1908 = vmatprep.subr.mxu0 0.0
        %1909 = vmatpush1.msra.mxu0 0.0
        %1910 = vmatprep.subr.mxu0 0.0
        %1911 = vmatpush1.msra.mxu0 0.0
        %1912 = vmatprep.subr.mxu0 0.0
        %1913 = vmatpush1.msra.mxu0 0.0
        %1914 = vmatprep.subr.mxu0 0.0
        %1915 = vmatpush1.msra.mxu0 0.0
        %1916 = vmatprep.subr.mxu0 0.0
        %1917 = vmatpush1.msra.mxu0 0.0
        %1918 = vmatprep.subr.mxu0 0.0
        %1919 = vmatpush1.msra.mxu0 0.0
        %1920 = vmatprep.mubr.f32.mxu0 0.0
        %1921 = vmatmul.mubr.f32.gmra.mrb[0].mxu0 %v1357
        %v1922 = vpop.f32.mrb[0].mxu0
        %v1923 = vadd.f32 %v1353, %v1922
        %v1924 = vpop.f32.mrb[0].mxu0
        %v1925 = vadd.f32 %v1353, %v1924
        %1926 = vdwg.mxu0
        %v1927 = vmax.f32 %v1426, 0.0
        %v1928 = vmax.f32 %v1428, 0.0
        %v1929 = vmax.f32 %v1497, 0.0
        %v1930 = vmax.f32 %v1499, 0.0
        %v1931 = vmax.f32 %v1568, 0.0
        %v1932 = vmax.f32 %v1570, 0.0
        %v1933 = vmax.f32 %v1639, 0.0
        %v1934 = vmax.f32 %v1641, 0.0
        %v1935 = vmax.f32 %v1710, 0.0
        %v1936 = vmax.f32 %v1712, 0.0
        %v1937 = vmax.f32 %v1781, 0.0
        %v1938 = vmax.f32 %v1783, 0.0
        %v1939 = vmax.f32 %v1852, 0.0
        %v1940 = vmax.f32 %v1854, 0.0
        %v1941 = vmax.f32 %v1923, 0.0
        %v1942 = vmax.f32 %v1925, 0.0
        %v1943 = vmin.f32 %v1927, 20.0
        %v1944 = vmin.f32 %v1928, 20.0
        %v1945 = vmin.f32 %v1929, 20.0
        %v1946 = vmin.f32 %v1930, 20.0
        %v1947 = vmin.f32 %v1931, 20.0
        %v1948 = vmin.f32 %v1932, 20.0
        %v1949 = vmin.f32 %v1933, 20.0
        %v1950 = vmin.f32 %v1934, 20.0
        %v1951 = vmin.f32 %v1935, 20.0
        %v1952 = vmin.f32 %v1936, 20.0
        %v1953 = vmin.f32 %v1937, 20.0
        %v1954 = vmin.f32 %v1938, 20.0
        %v1955 = vmin.f32 %v1939, 20.0
        %v1956 = vmin.f32 %v1940, 20.0
        %v1957 = vmin.f32 %v1941, 20.0
        %v1958 = vmin.f32 %v1942, 20.0
        %v1959 = vsel %vm281, 1, 0
        %v1960 = vsel %vm282, 1, 0
        %v1961 = vlaneseq
        %v1962 = vshrl.u32 %v1961, 7
        %v1963 = vsub.s32 0, %v1962
        %v1964 = vrot.slane %v1959, %v1963
        %v1965 = vlaneseq
        %v1966 = vshrl.u32 %v1965, 7
        %v1967 = vsub.s32 1, %v1966
        %v1968 = vrot.slane %v1959, %v1967
        %v1969 = vlaneseq
        %v1970 = vshrl.u32 %v1969, 7
        %v1971 = vsub.s32 2, %v1970
        %v1972 = vrot.slane %v1959, %v1971
        %v1973 = vlaneseq
        %v1974 = vshrl.u32 %v1973, 7
        %v1975 = vsub.s32 3, %v1974
        %v1976 = vrot.slane %v1959, %v1975
        %v1977 = vlaneseq
        %v1978 = vshrl.u32 %v1977, 7
        %v1979 = vsub.s32 4, %v1978
        %v1980 = vrot.slane %v1959, %v1979
        %v1981 = vlaneseq
        %v1982 = vshrl.u32 %v1981, 7
        %v1983 = vsub.s32 5, %v1982
        %v1984 = vrot.slane %v1959, %v1983
        %v1985 = vlaneseq
        %v1986 = vshrl.u32 %v1985, 7
        %v1987 = vsub.s32 6, %v1986
        %v1988 = vrot.slane %v1959, %v1987
        %v1989 = vlaneseq
        %v1990 = vshrl.u32 %v1989, 7
        %v1991 = vsub.s32 7, %v1990
        %v1992 = vrot.slane %v1959, %v1991
        %v1993 = vlaneseq
        %v1994 = vshrl.u32 %v1993, 7
        %v1995 = vsub.s32 0, %v1994
        %v1996 = vrot.slane %v1960, %v1995
        %v1997 = vlaneseq
        %v1998 = vshrl.u32 %v1997, 7
        %v1999 = vsub.s32 1, %v1998
        %v2000 = vrot.slane %v1960, %v1999
        %v2001 = vlaneseq
        %v2002 = vshrl.u32 %v2001, 7
        %v2003 = vsub.s32 2, %v2002
        %v2004 = vrot.slane %v1960, %v2003
        %v2005 = vlaneseq
        %v2006 = vshrl.u32 %v2005, 7
        %v2007 = vsub.s32 3, %v2006
        %v2008 = vrot.slane %v1960, %v2007
        %v2009 = vlaneseq
        %v2010 = vshrl.u32 %v2009, 7
        %v2011 = vsub.s32 4, %v2010
        %v2012 = vrot.slane %v1960, %v2011
        %v2013 = vlaneseq
        %v2014 = vshrl.u32 %v2013, 7
        %v2015 = vsub.s32 5, %v2014
        %v2016 = vrot.slane %v1960, %v2015
        %v2017 = vlaneseq
        %v2018 = vshrl.u32 %v2017, 7
        %v2019 = vsub.s32 6, %v2018
        %v2020 = vrot.slane %v1960, %v2019
        %v2021 = vlaneseq
        %v2022 = vshrl.u32 %v2021, 7
        %v2023 = vsub.s32 7, %v2022
        %v2024 = vrot.slane %v1960, %v2023
        %vm2025 = vcmp.eq.s32.totalorder %v1964, 1
        %vm2026 = vcmp.eq.s32.totalorder %v1968, 1
        %vm2027 = vcmp.eq.s32.totalorder %v1972, 1
        %vm2028 = vcmp.eq.s32.totalorder %v1976, 1
        %vm2029 = vcmp.eq.s32.totalorder %v1980, 1
        %vm2030 = vcmp.eq.s32.totalorder %v1984, 1
        %vm2031 = vcmp.eq.s32.totalorder %v1988, 1
        %vm2032 = vcmp.eq.s32.totalorder %v1992, 1
        %vm2033 = vcmp.eq.s32.totalorder %v1996, 1
        %vm2034 = vcmp.eq.s32.totalorder %v2000, 1
        %vm2035 = vcmp.eq.s32.totalorder %v2004, 1
        %vm2036 = vcmp.eq.s32.totalorder %v2008, 1
        %vm2037 = vcmp.eq.s32.totalorder %v2012, 1
        %vm2038 = vcmp.eq.s32.totalorder %v2016, 1
        %vm2039 = vcmp.eq.s32.totalorder %v2020, 1
        %vm2040 = vcmp.eq.s32.totalorder %v2024, 1
        %v2041 = vsel %vm2025, %v1943, 0.0
        %v2042 = vsel %vm2026, %v1944, 0.0
        %v2043 = vsel %vm2027, %v1945, 0.0
        %v2044 = vsel %vm2028, %v1946, 0.0
        %v2045 = vsel %vm2029, %v1947, 0.0
        %v2046 = vsel %vm2030, %v1948, 0.0
        %v2047 = vsel %vm2031, %v1949, 0.0
        %v2048 = vsel %vm2032, %v1950, 0.0
        %v2049 = vsel %vm2033, %v1951, 0.0
        %v2050 = vsel %vm2034, %v1952, 0.0
        %v2051 = vsel %vm2035, %v1953, 0.0
        %v2052 = vsel %vm2036, %v1954, 0.0
        %v2053 = vsel %vm2037, %v1955, 0.0
        %v2054 = vsel %vm2038, %v1956, 0.0
        %v2055 = vsel %vm2039, %v1957, 0.0
        %v2056 = vsel %vm2040, %v1958, 0.0
        %2057 = vst [vmem:[#allocation3 + $0x10] sm:$0xff] %v2041
        %2058 = vst [vmem:[#allocation3 + $0x18] sm:$0xff] %v2042
        %2059 = vst [vmem:[#allocation3 + $0x20] sm:$0xff] %v2043
        %2060 = vst [vmem:[#allocation3 + $0x28] sm:$0xff] %v2044
        %2061 = vst [vmem:[#allocation3 + $0x30] sm:$0xff] %v2045
        %2062 = vst [vmem:[#allocation3 + $0x38] sm:$0xff] %v2046
        %2063 = vst [vmem:[#allocation3 + $0x40] sm:$0xff] %v2047
        %2064 = vst [vmem:[#allocation3 + $0x48] sm:$0xff] %v2048
        %2065 = vst [vmem:[#allocation3 + $0x50] sm:$0xff] %v2049
        %2066 = vst [vmem:[#allocation3 + $0x58] sm:$0xff] %v2050
        %2067 = vst [vmem:[#allocation3 + $0x60] sm:$0xff] %v2051
        %2068 = vst [vmem:[#allocation3 + $0x68] sm:$0xff] %v2052
        %2069 = vst [vmem:[#allocation3 + $0x70] sm:$0xff] %v2053
        %2070 = vst [vmem:[#allocation3 + $0x78] sm:$0xff] %v2054
        %2071 = vst [vmem:[#allocation3 + $0x80] sm:$0xff] %v2055
        %2072 = vst [vmem:[#allocation3 + $0x88] sm:$0xff] %v2056
        %v2073 = vld [vmem:[#allocation3] sm:$0xff]
        %v2074 = vld [vmem:[#allocation3 + $0x8] sm:$0xff]
        %v2075 = vld [vmem:[#allocation3 + $0x10] sm:$0xff]
        %v2076 = vld [vmem:[#allocation3 + $0x18] sm:$0xff]
        %v2077 = vld [vmem:[#allocation3 + $0x20] sm:$0xff]
        %v2078 = vld [vmem:[#allocation3 + $0x28] sm:$0xff]
        %v2079 = vld [vmem:[#allocation3 + $0x30] sm:$0xff]
        %v2080 = vld [vmem:[#allocation3 + $0x38] sm:$0xff]
        %v2081 = vld [vmem:[#allocation3 + $0x40] sm:$0xff]
        %v2082 = vld [vmem:[#allocation3 + $0x48] sm:$0xff]
        %v2083 = vld [vmem:[#allocation3 + $0x50] sm:$0xff]
        %v2084 = vld [vmem:[#allocation3 + $0x58] sm:$0xff]
        %v2085 = vld [vmem:[#allocation3 + $0x60] sm:$0xff]
        %v2086 = vld [vmem:[#allocation3 + $0x68] sm:$0xff]
        %v2087 = vld [vmem:[#allocation3 + $0x70] sm:$0xff]
        %v2088 = vld [vmem:[#allocation3 + $0x78] sm:$0xff]
        %v2089 = vld [vmem:[#allocation3 + $0x80] sm:$0xff]
        %v2090 = vld [vmem:[#allocation3 + $0x88] sm:$0xff]
        %2109 = vrot.lane.b32.xlu0 %v2073, 1
        %v2110 = vpop.permute.xlu0 %2109
        %2111 = vrot.lane.b32.xlu0 %v2074, 1
        %v2112 = vpop.permute.xlu0 %2111
        %2113 = vrot.lane.b32.xlu0 %v2075, 1
        %v2114 = vpop.permute.xlu0 %2113
        %2115 = vrot.lane.b32.xlu0 %v2076, 1
        %v2116 = vpop.permute.xlu0 %2115
        %2117 = vrot.lane.b32.xlu0 %v2077, 1
        %v2118 = vpop.permute.xlu0 %2117
        %2119 = vrot.lane.b32.xlu0 %v2078, 1
        %v2120 = vpop.permute.xlu0 %2119
        %2121 = vrot.lane.b32.xlu0 %v2079, 1
        %v2122 = vpop.permute.xlu0 %2121
        %2123 = vrot.lane.b32.xlu0 %v2080, 1
        %v2124 = vpop.permute.xlu0 %2123
        %2125 = vrot.lane.b32.xlu0 %v2081, 1
        %v2126 = vpop.permute.xlu0 %2125
        %2127 = vrot.lane.b32.xlu0 %v2082, 1
        %v2128 = vpop.permute.xlu0 %2127
        %2129 = vrot.lane.b32.xlu0 %v2083, 1
        %v2130 = vpop.permute.xlu0 %2129
        %2131 = vrot.lane.b32.xlu0 %v2084, 1
        %v2132 = vpop.permute.xlu0 %2131
        %2133 = vrot.lane.b32.xlu0 %v2085, 1
        %v2134 = vpop.permute.xlu0 %2133
        %2135 = vrot.lane.b32.xlu0 %v2086, 1
        %v2136 = vpop.permute.xlu0 %2135
        %2137 = vrot.lane.b32.xlu0 %v2087, 1
        %v2138 = vpop.permute.xlu0 %2137
        %2139 = vrot.lane.b32.xlu0 %v2088, 1
        %v2140 = vpop.permute.xlu0 %2139
        %2141 = vrot.lane.b32.xlu0 %v2089, 1
        %v2142 = vpop.permute.xlu0 %2141
        %2143 = vrot.lane.b32.xlu0 %v2090, 1
        %v2144 = vpop.permute.xlu0 %2143
        %v2145 = vsel %vm434, %v2110, %v2112
        %v2146 = vsel %vm434, %v2112, %v2114
        %v2147 = vsel %vm434, %v2114, %v2116
        %v2148 = vsel %vm434, %v2116, %v2118
        %v2149 = vsel %vm434, %v2118, %v2120
        %v2150 = vsel %vm434, %v2120, %v2122
        %v2151 = vsel %vm434, %v2122, %v2124
        %v2152 = vsel %vm434, %v2124, %v2126
        %v2153 = vsel %vm434, %v2126, %v2128
        %v2154 = vsel %vm434, %v2128, %v2130
        %v2155 = vsel %vm434, %v2130, %v2132
        %v2156 = vsel %vm434, %v2132, %v2134
        %v2157 = vsel %vm434, %v2134, %v2136
        %v2158 = vsel %vm434, %v2136, %v2138
        %v2159 = vsel %vm434, %v2138, %v2140
        %v2160 = vsel %vm434, %v2140, %v2142
        %v2161 = vsel %vm434, %v2142, %v2144
        %2179 = vst [vmem:[#allocation4] sm:$0xff] %v2145
        %2180 = vst [vmem:[#allocation4 + $0x8] sm:$0xff] %v2146
        %2181 = vst [vmem:[#allocation4 + $0x10] sm:$0xff] %v2147
        %2182 = vst [vmem:[#allocation4 + $0x18] sm:$0xff] %v2148
        %2183 = vst [vmem:[#allocation4 + $0x20] sm:$0xff] %v2149
        %2184 = vst [vmem:[#allocation4 + $0x28] sm:$0xff] %v2150
        %2185 = vst [vmem:[#allocation4 + $0x30] sm:$0xff] %v2151
        %2186 = vst [vmem:[#allocation4 + $0x38] sm:$0xff] %v2152
        %2187 = vst [vmem:[#allocation4 + $0x40] sm:$0xff] %v2153
        %2188 = vst [vmem:[#allocation4 + $0x48] sm:$0xff] %v2154
        %2189 = vst [vmem:[#allocation4 + $0x50] sm:$0xff] %v2155
        %2190 = vst [vmem:[#allocation4 + $0x58] sm:$0xff] %v2156
        %2191 = vst [vmem:[#allocation4 + $0x60] sm:$0xff] %v2157
        %2192 = vst [vmem:[#allocation4 + $0x68] sm:$0xff] %v2158
        %2193 = vst [vmem:[#allocation4 + $0x70] sm:$0xff] %v2159
        %2194 = vst [vmem:[#allocation4 + $0x78] sm:$0xff] %v2160
        %2195 = vst [vmem:[#allocation4 + $0x80] sm:$0xff] %v2161
        %v2196 = vld [vmem:[#allocation3 + $0x8] sm:$0xff]
        %v2197 = vld [vmem:[#allocation3 + $0x10] sm:$0xff]
        %v2198 = vld [vmem:[#allocation3 + $0x18] sm:$0xff]
        %v2199 = vld [vmem:[#allocation3 + $0x20] sm:$0xff]
        %v2200 = vld [vmem:[#allocation3 + $0x28] sm:$0xff]
        %v2201 = vld [vmem:[#allocation3 + $0x30] sm:$0xff]
        %v2202 = vld [vmem:[#allocation3 + $0x38] sm:$0xff]
        %v2203 = vld [vmem:[#allocation3 + $0x40] sm:$0xff]
        %v2204 = vld [vmem:[#allocation3 + $0x48] sm:$0xff]
        %v2205 = vld [vmem:[#allocation3 + $0x50] sm:$0xff]
        %v2206 = vld [vmem:[#allocation3 + $0x58] sm:$0xff]
        %v2207 = vld [vmem:[#allocation3 + $0x60] sm:$0xff]
        %v2208 = vld [vmem:[#allocation3 + $0x68] sm:$0xff]
        %v2209 = vld [vmem:[#allocation3 + $0x70] sm:$0xff]
        %v2210 = vld [vmem:[#allocation3 + $0x78] sm:$0xff]
        %v2211 = vld [vmem:[#allocation3 + $0x80] sm:$0xff]
        %v2212 = vld [vmem:[#allocation3 + $0x88] sm:$0xff]
        %2213 = vst [vmem:[#allocation4 + $0x88] sm:$0xff] %v2196
        %2214 = vst [vmem:[#allocation4 + $0x90] sm:$0xff] %v2197
        %2215 = vst [vmem:[#allocation4 + $0x98] sm:$0xff] %v2198
        %2216 = vst [vmem:[#allocation4 + $0xa0] sm:$0xff] %v2199
        %2217 = vst [vmem:[#allocation4 + $0xa8] sm:$0xff] %v2200
        %2218 = vst [vmem:[#allocation4 + $0xb0] sm:$0xff] %v2201
        %2219 = vst [vmem:[#allocation4 + $0xb8] sm:$0xff] %v2202
        %2220 = vst [vmem:[#allocation4 + $0xc0] sm:$0xff] %v2203
        %2221 = vst [vmem:[#allocation4 + $0xc8] sm:$0xff] %v2204
        %2222 = vst [vmem:[#allocation4 + $0xd0] sm:$0xff] %v2205
        %2223 = vst [vmem:[#allocation4 + $0xd8] sm:$0xff] %v2206
        %2224 = vst [vmem:[#allocation4 + $0xe0] sm:$0xff] %v2207
        %2225 = vst [vmem:[#allocation4 + $0xe8] sm:$0xff] %v2208
        %2226 = vst [vmem:[#allocation4 + $0xf0] sm:$0xff] %v2209
        %2227 = vst [vmem:[#allocation4 + $0xf8] sm:$0xff] %v2210
        %2228 = vst [vmem:[#allocation4 + $0x100] sm:$0xff] %v2211
        %2229 = vst [vmem:[#allocation4 + $0x108] sm:$0xff] %v2212
        %v2230 = vld [vmem:[#allocation3 + $0x8] sm:$0xff]
        %v2231 = vld [vmem:[#allocation3 + $0x10] sm:$0xff]
        %v2232 = vld [vmem:[#allocation3 + $0x18] sm:$0xff]
        %v2233 = vld [vmem:[#allocation3 + $0x20] sm:$0xff]
        %v2234 = vld [vmem:[#allocation3 + $0x28] sm:$0xff]
        %v2235 = vld [vmem:[#allocation3 + $0x30] sm:$0xff]
        %v2236 = vld [vmem:[#allocation3 + $0x38] sm:$0xff]
        %v2237 = vld [vmem:[#allocation3 + $0x40] sm:$0xff]
        %v2238 = vld [vmem:[#allocation3 + $0x48] sm:$0xff]
        %v2239 = vld [vmem:[#allocation3 + $0x50] sm:$0xff]
        %v2240 = vld [vmem:[#allocation3 + $0x58] sm:$0xff]
        %v2241 = vld [vmem:[#allocation3 + $0x60] sm:$0xff]
        %v2242 = vld [vmem:[#allocation3 + $0x68] sm:$0xff]
        %v2243 = vld [vmem:[#allocation3 + $0x70] sm:$0xff]
        %v2244 = vld [vmem:[#allocation3 + $0x78] sm:$0xff]
        %v2245 = vld [vmem:[#allocation3 + $0x80] sm:$0xff]
        %v2246 = vld [vmem:[#allocation3 + $0x88] sm:$0xff]
        %v2247 = vld [vmem:[#allocation3 + $0x90] sm:$0xff]
        %2266 = vrot.lane.b32.xlu0 %v2230, 127
        %v2267 = vpop.permute.xlu0 %2266
        %2268 = vrot.lane.b32.xlu0 %v2231, 127
        %v2269 = vpop.permute.xlu0 %2268
        %2270 = vrot.lane.b32.xlu0 %v2232, 127
        %v2271 = vpop.permute.xlu0 %2270
        %2272 = vrot.lane.b32.xlu0 %v2233, 127
        %v2273 = vpop.permute.xlu0 %2272
        %2274 = vrot.lane.b32.xlu0 %v2234, 127
        %v2275 = vpop.permute.xlu0 %2274
        %2276 = vrot.lane.b32.xlu0 %v2235, 127
        %v2277 = vpop.permute.xlu0 %2276
        %2278 = vrot.lane.b32.xlu0 %v2236, 127
        %v2279 = vpop.permute.xlu0 %2278
        %2280 = vrot.lane.b32.xlu0 %v2237, 127
        %v2281 = vpop.permute.xlu0 %2280
        %2282 = vrot.lane.b32.xlu0 %v2238, 127
        %v2283 = vpop.permute.xlu0 %2282
        %2284 = vrot.lane.b32.xlu0 %v2239, 127
        %v2285 = vpop.permute.xlu0 %2284
        %2286 = vrot.lane.b32.xlu0 %v2240, 127
        %v2287 = vpop.permute.xlu0 %2286
        %2288 = vrot.lane.b32.xlu0 %v2241, 127
        %v2289 = vpop.permute.xlu0 %2288
        %2290 = vrot.lane.b32.xlu0 %v2242, 127
        %v2291 = vpop.permute.xlu0 %2290
        %2292 = vrot.lane.b32.xlu0 %v2243, 127
        %v2293 = vpop.permute.xlu0 %2292
        %2294 = vrot.lane.b32.xlu0 %v2244, 127
        %v2295 = vpop.permute.xlu0 %2294
        %2296 = vrot.lane.b32.xlu0 %v2245, 127
        %v2297 = vpop.permute.xlu0 %2296
        %2298 = vrot.lane.b32.xlu0 %v2246, 127
        %v2299 = vpop.permute.xlu0 %2298
        %2300 = vrot.lane.b32.xlu0 %v2247, 127
        %v2301 = vpop.permute.xlu0 %2300
        %v2302 = vsel %vm592, %v2267, %v2269
        %v2303 = vsel %vm592, %v2269, %v2271
        %v2304 = vsel %vm592, %v2271, %v2273
        %v2305 = vsel %vm592, %v2273, %v2275
        %v2306 = vsel %vm592, %v2275, %v2277
        %v2307 = vsel %vm592, %v2277, %v2279
        %v2308 = vsel %vm592, %v2279, %v2281
        %v2309 = vsel %vm592, %v2281, %v2283
        %v2310 = vsel %vm592, %v2283, %v2285
        %v2311 = vsel %vm592, %v2285, %v2287
        %v2312 = vsel %vm592, %v2287, %v2289
        %v2313 = vsel %vm592, %v2289, %v2291
        %v2314 = vsel %vm592, %v2291, %v2293
        %v2315 = vsel %vm592, %v2293, %v2295
        %v2316 = vsel %vm592, %v2295, %v2297
        %v2317 = vsel %vm592, %v2297, %v2299
        %v2318 = vsel %vm592, %v2299, %v2301
        %2336 = vst [vmem:[#allocation4 + $0x110] sm:$0xff] %v2302
        %2337 = vst [vmem:[#allocation4 + $0x118] sm:$0xff] %v2303
        %2338 = vst [vmem:[#allocation4 + $0x120] sm:$0xff] %v2304
        %2339 = vst [vmem:[#allocation4 + $0x128] sm:$0xff] %v2305
        %2340 = vst [vmem:[#allocation4 + $0x130] sm:$0xff] %v2306
        %2341 = vst [vmem:[#allocation4 + $0x138] sm:$0xff] %v2307
        %2342 = vst [vmem:[#allocation4 + $0x140] sm:$0xff] %v2308
        %2343 = vst [vmem:[#allocation4 + $0x148] sm:$0xff] %v2309
        %2344 = vst [vmem:[#allocation4 + $0x150] sm:$0xff] %v2310
        %2345 = vst [vmem:[#allocation4 + $0x158] sm:$0xff] %v2311
        %2346 = vst [vmem:[#allocation4 + $0x160] sm:$0xff] %v2312
        %2347 = vst [vmem:[#allocation4 + $0x168] sm:$0xff] %v2313
        %2348 = vst [vmem:[#allocation4 + $0x170] sm:$0xff] %v2314
        %2349 = vst [vmem:[#allocation4 + $0x178] sm:$0xff] %v2315
        %2350 = vst [vmem:[#allocation4 + $0x180] sm:$0xff] %v2316
        %2351 = vst [vmem:[#allocation4 + $0x188] sm:$0xff] %v2317
        %2352 = vst [vmem:[#allocation4 + $0x190] sm:$0xff] %v2318
        %v2353 = vld [vmem:[#allocation3 + $0x8] sm:$0xff]
        %v2354 = vld [vmem:[#allocation3 + $0x10] sm:$0xff]
        %v2355 = vld [vmem:[#allocation3 + $0x18] sm:$0xff]
        %v2356 = vld [vmem:[#allocation3 + $0x20] sm:$0xff]
        %v2357 = vld [vmem:[#allocation3 + $0x28] sm:$0xff]
        %v2358 = vld [vmem:[#allocation3 + $0x30] sm:$0xff]
        %v2359 = vld [vmem:[#allocation3 + $0x38] sm:$0xff]
        %v2360 = vld [vmem:[#allocation3 + $0x40] sm:$0xff]
        %v2361 = vld [vmem:[#allocation3 + $0x48] sm:$0xff]
        %v2362 = vld [vmem:[#allocation3 + $0x50] sm:$0xff]
        %v2363 = vld [vmem:[#allocation3 + $0x58] sm:$0xff]
        %v2364 = vld [vmem:[#allocation3 + $0x60] sm:$0xff]
        %v2365 = vld [vmem:[#allocation3 + $0x68] sm:$0xff]
        %v2366 = vld [vmem:[#allocation3 + $0x70] sm:$0xff]
        %v2367 = vld [vmem:[#allocation3 + $0x78] sm:$0xff]
        %v2368 = vld [vmem:[#allocation3 + $0x80] sm:$0xff]
        %v2369 = vld [vmem:[#allocation3 + $0x88] sm:$0xff]
        %v2370 = vld [vmem:[#allocation3 + $0x90] sm:$0xff]
        %2389 = vrot.lane.b32.xlu0 %v2353, 1
        %v2390 = vpop.permute.xlu0 %2389
        %2391 = vrot.lane.b32.xlu0 %v2354, 1
        %v2392 = vpop.permute.xlu0 %2391
        %2393 = vrot.lane.b32.xlu0 %v2355, 1
        %v2394 = vpop.permute.xlu0 %2393
        %2395 = vrot.lane.b32.xlu0 %v2356, 1
        %v2396 = vpop.permute.xlu0 %2395
        %2397 = vrot.lane.b32.xlu0 %v2357, 1
        %v2398 = vpop.permute.xlu0 %2397
        %2399 = vrot.lane.b32.xlu0 %v2358, 1
        %v2400 = vpop.permute.xlu0 %2399
        %2401 = vrot.lane.b32.xlu0 %v2359, 1
        %v2402 = vpop.permute.xlu0 %2401
        %2403 = vrot.lane.b32.xlu0 %v2360, 1
        %v2404 = vpop.permute.xlu0 %2403
        %2405 = vrot.lane.b32.xlu0 %v2361, 1
        %v2406 = vpop.permute.xlu0 %2405
        %2407 = vrot.lane.b32.xlu0 %v2362, 1
        %v2408 = vpop.permute.xlu0 %2407
        %2409 = vrot.lane.b32.xlu0 %v2363, 1
        %v2410 = vpop.permute.xlu0 %2409
        %2411 = vrot.lane.b32.xlu0 %v2364, 1
        %v2412 = vpop.permute.xlu0 %2411
        %2413 = vrot.lane.b32.xlu0 %v2365, 1
        %v2414 = vpop.permute.xlu0 %2413
        %2415 = vrot.lane.b32.xlu0 %v2366, 1
        %v2416 = vpop.permute.xlu0 %2415
        %2417 = vrot.lane.b32.xlu0 %v2367, 1
        %v2418 = vpop.permute.xlu0 %2417
        %2419 = vrot.lane.b32.xlu0 %v2368, 1
        %v2420 = vpop.permute.xlu0 %2419
        %2421 = vrot.lane.b32.xlu0 %v2369, 1
        %v2422 = vpop.permute.xlu0 %2421
        %2423 = vrot.lane.b32.xlu0 %v2370, 1
        %v2424 = vpop.permute.xlu0 %2423
        %v2425 = vsel %vm434, %v2390, %v2392
        %v2426 = vsel %vm434, %v2392, %v2394
        %v2427 = vsel %vm434, %v2394, %v2396
        %v2428 = vsel %vm434, %v2396, %v2398
        %v2429 = vsel %vm434, %v2398, %v2400
        %v2430 = vsel %vm434, %v2400, %v2402
        %v2431 = vsel %vm434, %v2402, %v2404
        %v2432 = vsel %vm434, %v2404, %v2406
        %v2433 = vsel %vm434, %v2406, %v2408
        %v2434 = vsel %vm434, %v2408, %v2410
        %v2435 = vsel %vm434, %v2410, %v2412
        %v2436 = vsel %vm434, %v2412, %v2414
        %v2437 = vsel %vm434, %v2414, %v2416
        %v2438 = vsel %vm434, %v2416, %v2418
        %v2439 = vsel %vm434, %v2418, %v2420
        %v2440 = vsel %vm434, %v2420, %v2422
        %v2441 = vsel %vm434, %v2422, %v2424
        %2459 = vst [vmem:[#allocation4 + $0x198] sm:$0xff] %v2425
        %2460 = vst [vmem:[#allocation4 + $0x1a0] sm:$0xff] %v2426
        %2461 = vst [vmem:[#allocation4 + $0x1a8] sm:$0xff] %v2427
        %2462 = vst [vmem:[#allocation4 + $0x1b0] sm:$0xff] %v2428
        %2463 = vst [vmem:[#allocation4 + $0x1b8] sm:$0xff] %v2429
        %2464 = vst [vmem:[#allocation4 + $0x1c0] sm:$0xff] %v2430
        %2465 = vst [vmem:[#allocation4 + $0x1c8] sm:$0xff] %v2431
        %2466 = vst [vmem:[#allocation4 + $0x1d0] sm:$0xff] %v2432
        %2467 = vst [vmem:[#allocation4 + $0x1d8] sm:$0xff] %v2433
        %2468 = vst [vmem:[#allocation4 + $0x1e0] sm:$0xff] %v2434
        %2469 = vst [vmem:[#allocation4 + $0x1e8] sm:$0xff] %v2435
        %2470 = vst [vmem:[#allocation4 + $0x1f0] sm:$0xff] %v2436
        %2471 = vst [vmem:[#allocation4 + $0x1f8] sm:$0xff] %v2437
        %2472 = vst [vmem:[#allocation4 + $0x200] sm:$0xff] %v2438
        %2473 = vst [vmem:[#allocation4 + $0x208] sm:$0xff] %v2439
        %2474 = vst [vmem:[#allocation4 + $0x210] sm:$0xff] %v2440
        %2475 = vst [vmem:[#allocation4 + $0x218] sm:$0xff] %v2441
        %v2476 = vld [vmem:[#allocation3 + $0x10] sm:$0xff]
        %v2477 = vld [vmem:[#allocation3 + $0x18] sm:$0xff]
        %v2478 = vld [vmem:[#allocation3 + $0x20] sm:$0xff]
        %v2479 = vld [vmem:[#allocation3 + $0x28] sm:$0xff]
        %v2480 = vld [vmem:[#allocation3 + $0x30] sm:$0xff]
        %v2481 = vld [vmem:[#allocation3 + $0x38] sm:$0xff]
        %v2482 = vld [vmem:[#allocation3 + $0x40] sm:$0xff]
        %v2483 = vld [vmem:[#allocation3 + $0x48] sm:$0xff]
        %v2484 = vld [vmem:[#allocation3 + $0x50] sm:$0xff]
        %v2485 = vld [vmem:[#allocation3 + $0x58] sm:$0xff]
        %v2486 = vld [vmem:[#allocation3 + $0x60] sm:$0xff]
        %v2487 = vld [vmem:[#allocation3 + $0x68] sm:$0xff]
        %v2488 = vld [vmem:[#allocation3 + $0x70] sm:$0xff]
        %v2489 = vld [vmem:[#allocation3 + $0x78] sm:$0xff]
        %v2490 = vld [vmem:[#allocation3 + $0x80] sm:$0xff]
        %v2491 = vld [vmem:[#allocation3 + $0x88] sm:$0xff]
        %v2492 = vld [vmem:[#allocation3 + $0x90] sm:$0xff]
        %2493 = vst [vmem:[#allocation4 + $0x220] sm:$0xff] %v2476
        %2494 = vst [vmem:[#allocation4 + $0x228] sm:$0xff] %v2477
        %2495 = vst [vmem:[#allocation4 + $0x230] sm:$0xff] %v2478
        %2496 = vst [vmem:[#allocation4 + $0x238] sm:$0xff] %v2479
        %2497 = vst [vmem:[#allocation4 + $0x240] sm:$0xff] %v2480
        %2498 = vst [vmem:[#allocation4 + $0x248] sm:$0xff] %v2481
        %2499 = vst [vmem:[#allocation4 + $0x250] sm:$0xff] %v2482
        %2500 = vst [vmem:[#allocation4 + $0x258] sm:$0xff] %v2483
        %2501 = vst [vmem:[#allocation4 + $0x260] sm:$0xff] %v2484
        %2502 = vst [vmem:[#allocation4 + $0x268] sm:$0xff] %v2485
        %2503 = vst [vmem:[#allocation4 + $0x270] sm:$0xff] %v2486
        %2504 = vst [vmem:[#allocation4 + $0x278] sm:$0xff] %v2487
        %2505 = vst [vmem:[#allocation4 + $0x280] sm:$0xff] %v2488
        %2506 = vst [vmem:[#allocation4 + $0x288] sm:$0xff] %v2489
        %2507 = vst [vmem:[#allocation4 + $0x290] sm:$0xff] %v2490
        %2508 = vst [vmem:[#allocation4 + $0x298] sm:$0xff] %v2491
        %2509 = vst [vmem:[#allocation4 + $0x2a0] sm:$0xff] %v2492
        %v2510 = vld [vmem:[#allocation3 + $0x10] sm:$0xff]
        %v2511 = vld [vmem:[#allocation3 + $0x18] sm:$0xff]
        %v2512 = vld [vmem:[#allocation3 + $0x20] sm:$0xff]
        %v2513 = vld [vmem:[#allocation3 + $0x28] sm:$0xff]
        %v2514 = vld [vmem:[#allocation3 + $0x30] sm:$0xff]
        %v2515 = vld [vmem:[#allocation3 + $0x38] sm:$0xff]
        %v2516 = vld [vmem:[#allocation3 + $0x40] sm:$0xff]
        %v2517 = vld [vmem:[#allocation3 + $0x48] sm:$0xff]
        %v2518 = vld [vmem:[#allocation3 + $0x50] sm:$0xff]
        %v2519 = vld [vmem:[#allocation3 + $0x58] sm:$0xff]
        %v2520 = vld [vmem:[#allocation3 + $0x60] sm:$0xff]
        %v2521 = vld [vmem:[#allocation3 + $0x68] sm:$0xff]
        %v2522 = vld [vmem:[#allocation3 + $0x70] sm:$0xff]
        %v2523 = vld [vmem:[#allocation3 + $0x78] sm:$0xff]
        %v2524 = vld [vmem:[#allocation3 + $0x80] sm:$0xff]
        %v2525 = vld [vmem:[#allocation3 + $0x88] sm:$0xff]
        %v2526 = vld [vmem:[#allocation3 + $0x90] sm:$0xff]
        %v2527 = vld [vmem:[#allocation3 + $0x98] sm:$0xff]
        %2546 = vrot.lane.b32.xlu0 %v2510, 127
        %v2547 = vpop.permute.xlu0 %2546
        %2548 = vrot.lane.b32.xlu0 %v2511, 127
        %v2549 = vpop.permute.xlu0 %2548
        %2550 = vrot.lane.b32.xlu0 %v2512, 127
        %v2551 = vpop.permute.xlu0 %2550
        %2552 = vrot.lane.b32.xlu0 %v2513, 127
        %v2553 = vpop.permute.xlu0 %2552
        %2554 = vrot.lane.b32.xlu0 %v2514, 127
        %v2555 = vpop.permute.xlu0 %2554
        %2556 = vrot.lane.b32.xlu0 %v2515, 127
        %v2557 = vpop.permute.xlu0 %2556
        %2558 = vrot.lane.b32.xlu0 %v2516, 127
        %v2559 = vpop.permute.xlu0 %2558
        %2560 = vrot.lane.b32.xlu0 %v2517, 127
        %v2561 = vpop.permute.xlu0 %2560
        %2562 = vrot.lane.b32.xlu0 %v2518, 127
        %v2563 = vpop.permute.xlu0 %2562
        %2564 = vrot.lane.b32.xlu0 %v2519, 127
        %v2565 = vpop.permute.xlu0 %2564
        %2566 = vrot.lane.b32.xlu0 %v2520, 127
        %v2567 = vpop.permute.xlu0 %2566
        %2568 = vrot.lane.b32.xlu0 %v2521, 127
        %v2569 = vpop.permute.xlu0 %2568
        %2570 = vrot.lane.b32.xlu0 %v2522, 127
        %v2571 = vpop.permute.xlu0 %2570
        %2572 = vrot.lane.b32.xlu0 %v2523, 127
        %v2573 = vpop.permute.xlu0 %2572
        %2574 = vrot.lane.b32.xlu0 %v2524, 127
        %v2575 = vpop.permute.xlu0 %2574
        %2576 = vrot.lane.b32.xlu0 %v2525, 127
        %v2577 = vpop.permute.xlu0 %2576
        %2578 = vrot.lane.b32.xlu0 %v2526, 127
        %v2579 = vpop.permute.xlu0 %2578
        %2580 = vrot.lane.b32.xlu0 %v2527, 127
        %v2581 = vpop.permute.xlu0 %2580
        %v2582 = vsel %vm592, %v2547, %v2549
        %v2583 = vsel %vm592, %v2549, %v2551
        %v2584 = vsel %vm592, %v2551, %v2553
        %v2585 = vsel %vm592, %v2553, %v2555
        %v2586 = vsel %vm592, %v2555, %v2557
        %v2587 = vsel %vm592, %v2557, %v2559
        %v2588 = vsel %vm592, %v2559, %v2561
        %v2589 = vsel %vm592, %v2561, %v2563
        %v2590 = vsel %vm592, %v2563, %v2565
        %v2591 = vsel %vm592, %v2565, %v2567
        %v2592 = vsel %vm592, %v2567, %v2569
        %v2593 = vsel %vm592, %v2569, %v2571
        %v2594 = vsel %vm592, %v2571, %v2573
        %v2595 = vsel %vm592, %v2573, %v2575
        %v2596 = vsel %vm592, %v2575, %v2577
        %v2597 = vsel %vm592, %v2577, %v2579
        %v2598 = vsel %vm592, %v2579, %v2581
        %2616 = vst [vmem:[#allocation4 + $0x2a8] sm:$0xff] %v2582
        %2617 = vst [vmem:[#allocation4 + $0x2b0] sm:$0xff] %v2583
        %2618 = vst [vmem:[#allocation4 + $0x2b8] sm:$0xff] %v2584
        %2619 = vst [vmem:[#allocation4 + $0x2c0] sm:$0xff] %v2585
        %2620 = vst [vmem:[#allocation4 + $0x2c8] sm:$0xff] %v2586
        %2621 = vst [vmem:[#allocation4 + $0x2d0] sm:$0xff] %v2587
        %2622 = vst [vmem:[#allocation4 + $0x2d8] sm:$0xff] %v2588
        %2623 = vst [vmem:[#allocation4 + $0x2e0] sm:$0xff] %v2589
        %2624 = vst [vmem:[#allocation4 + $0x2e8] sm:$0xff] %v2590
        %2625 = vst [vmem:[#allocation4 + $0x2f0] sm:$0xff] %v2591
        %2626 = vst [vmem:[#allocation4 + $0x2f8] sm:$0xff] %v2592
        %2627 = vst [vmem:[#allocation4 + $0x300] sm:$0xff] %v2593
        %2628 = vst [vmem:[#allocation4 + $0x308] sm:$0xff] %v2594
        %2629 = vst [vmem:[#allocation4 + $0x310] sm:$0xff] %v2595
        %2630 = vst [vmem:[#allocation4 + $0x318] sm:$0xff] %v2596
        %2631 = vst [vmem:[#allocation4 + $0x320] sm:$0xff] %v2597
        %2632 = vst [vmem:[#allocation4 + $0x328] sm:$0xff] %v2598
        %v2633 = vld [vmem:[#allocation3 + $0x10] sm:$0xff]
        %v2634 = vld [vmem:[#allocation3 + $0x18] sm:$0xff]
        %v2635 = vld [vmem:[#allocation3 + $0x20] sm:$0xff]
        %v2636 = vld [vmem:[#allocation3 + $0x28] sm:$0xff]
        %v2637 = vld [vmem:[#allocation3 + $0x30] sm:$0xff]
        %v2638 = vld [vmem:[#allocation3 + $0x38] sm:$0xff]
        %v2639 = vld [vmem:[#allocation3 + $0x40] sm:$0xff]
        %v2640 = vld [vmem:[#allocation3 + $0x48] sm:$0xff]
        %v2641 = vld [vmem:[#allocation3 + $0x50] sm:$0xff]
        %v2642 = vld [vmem:[#allocation3 + $0x58] sm:$0xff]
        %v2643 = vld [vmem:[#allocation3 + $0x60] sm:$0xff]
        %v2644 = vld [vmem:[#allocation3 + $0x68] sm:$0xff]
        %v2645 = vld [vmem:[#allocation3 + $0x70] sm:$0xff]
        %v2646 = vld [vmem:[#allocation3 + $0x78] sm:$0xff]
        %v2647 = vld [vmem:[#allocation3 + $0x80] sm:$0xff]
        %v2648 = vld [vmem:[#allocation3 + $0x88] sm:$0xff]
        %v2649 = vld [vmem:[#allocation3 + $0x90] sm:$0xff]
        %v2650 = vld [vmem:[#allocation3 + $0x98] sm:$0xff]
        %2669 = vrot.lane.b32.xlu0 %v2633, 1
        %v2670 = vpop.permute.xlu0 %2669
        %2671 = vrot.lane.b32.xlu0 %v2634, 1
        %v2672 = vpop.permute.xlu0 %2671
        %2673 = vrot.lane.b32.xlu0 %v2635, 1
        %v2674 = vpop.permute.xlu0 %2673
        %2675 = vrot.lane.b32.xlu0 %v2636, 1
        %v2676 = vpop.permute.xlu0 %2675
        %2677 = vrot.lane.b32.xlu0 %v2637, 1
        %v2678 = vpop.permute.xlu0 %2677
        %2679 = vrot.lane.b32.xlu0 %v2638, 1
        %v2680 = vpop.permute.xlu0 %2679
        %2681 = vrot.lane.b32.xlu0 %v2639, 1
        %v2682 = vpop.permute.xlu0 %2681
        %2683 = vrot.lane.b32.xlu0 %v2640, 1
        %v2684 = vpop.permute.xlu0 %2683
        %2685 = vrot.lane.b32.xlu0 %v2641, 1
        %v2686 = vpop.permute.xlu0 %2685
        %2687 = vrot.lane.b32.xlu0 %v2642, 1
        %v2688 = vpop.permute.xlu0 %2687
        %2689 = vrot.lane.b32.xlu0 %v2643, 1
        %v2690 = vpop.permute.xlu0 %2689
        %2691 = vrot.lane.b32.xlu0 %v2644, 1
        %v2692 = vpop.permute.xlu0 %2691
        %2693 = vrot.lane.b32.xlu0 %v2645, 1
        %v2694 = vpop.permute.xlu0 %2693
        %2695 = vrot.lane.b32.xlu0 %v2646, 1
        %v2696 = vpop.permute.xlu0 %2695
        %2697 = vrot.lane.b32.xlu0 %v2647, 1
        %v2698 = vpop.permute.xlu0 %2697
        %2699 = vrot.lane.b32.xlu0 %v2648, 1
        %v2700 = vpop.permute.xlu0 %2699
        %2701 = vrot.lane.b32.xlu0 %v2649, 1
        %v2702 = vpop.permute.xlu0 %2701
        %2703 = vrot.lane.b32.xlu0 %v2650, 1
        %v2704 = vpop.permute.xlu0 %2703
        %v2705 = vsel %vm434, %v2670, %v2672
        %v2706 = vsel %vm434, %v2672, %v2674
        %v2707 = vsel %vm434, %v2674, %v2676
        %v2708 = vsel %vm434, %v2676, %v2678
        %v2709 = vsel %vm434, %v2678, %v2680
        %v2710 = vsel %vm434, %v2680, %v2682
        %v2711 = vsel %vm434, %v2682, %v2684
        %v2712 = vsel %vm434, %v2684, %v2686
        %v2713 = vsel %vm434, %v2686, %v2688
        %v2714 = vsel %vm434, %v2688, %v2690
        %v2715 = vsel %vm434, %v2690, %v2692
        %v2716 = vsel %vm434, %v2692, %v2694
        %v2717 = vsel %vm434, %v2694, %v2696
        %v2718 = vsel %vm434, %v2696, %v2698
        %v2719 = vsel %vm434, %v2698, %v2700
        %v2720 = vsel %vm434, %v2700, %v2702
        %v2721 = vsel %vm434, %v2702, %v2704
        %2739 = vst [vmem:[#allocation4 + $0x330] sm:$0xff] %v2705
        %2740 = vst [vmem:[#allocation4 + $0x338] sm:$0xff] %v2706
        %2741 = vst [vmem:[#allocation4 + $0x340] sm:$0xff] %v2707
        %2742 = vst [vmem:[#allocation4 + $0x348] sm:$0xff] %v2708
        %2743 = vst [vmem:[#allocation4 + $0x350] sm:$0xff] %v2709
        %2744 = vst [vmem:[#allocation4 + $0x358] sm:$0xff] %v2710
        %2745 = vst [vmem:[#allocation4 + $0x360] sm:$0xff] %v2711
        %2746 = vst [vmem:[#allocation4 + $0x368] sm:$0xff] %v2712
        %2747 = vst [vmem:[#allocation4 + $0x370] sm:$0xff] %v2713
        %2748 = vst [vmem:[#allocation4 + $0x378] sm:$0xff] %v2714
        %2749 = vst [vmem:[#allocation4 + $0x380] sm:$0xff] %v2715
        %2750 = vst [vmem:[#allocation4 + $0x388] sm:$0xff] %v2716
        %2751 = vst [vmem:[#allocation4 + $0x390] sm:$0xff] %v2717
        %2752 = vst [vmem:[#allocation4 + $0x398] sm:$0xff] %v2718
        %2753 = vst [vmem:[#allocation4 + $0x3a0] sm:$0xff] %v2719
        %2754 = vst [vmem:[#allocation4 + $0x3a8] sm:$0xff] %v2720
        %2755 = vst [vmem:[#allocation4 + $0x3b0] sm:$0xff] %v2721
        %v2756 = vld [vmem:[#allocation3 + $0x18] sm:$0xff]
        %v2757 = vld [vmem:[#allocation3 + $0x20] sm:$0xff]
        %v2758 = vld [vmem:[#allocation3 + $0x28] sm:$0xff]
        %v2759 = vld [vmem:[#allocation3 + $0x30] sm:$0xff]
        %v2760 = vld [vmem:[#allocation3 + $0x38] sm:$0xff]
        %v2761 = vld [vmem:[#allocation3 + $0x40] sm:$0xff]
        %v2762 = vld [vmem:[#allocation3 + $0x48] sm:$0xff]
        %v2763 = vld [vmem:[#allocation3 + $0x50] sm:$0xff]
        %v2764 = vld [vmem:[#allocation3 + $0x58] sm:$0xff]
        %v2765 = vld [vmem:[#allocation3 + $0x60] sm:$0xff]
        %v2766 = vld [vmem:[#allocation3 + $0x68] sm:$0xff]
        %v2767 = vld [vmem:[#allocation3 + $0x70] sm:$0xff]
        %v2768 = vld [vmem:[#allocation3 + $0x78] sm:$0xff]
        %v2769 = vld [vmem:[#allocation3 + $0x80] sm:$0xff]
        %v2770 = vld [vmem:[#allocation3 + $0x88] sm:$0xff]
        %v2771 = vld [vmem:[#allocation3 + $0x90] sm:$0xff]
        %v2772 = vld [vmem:[#allocation3 + $0x98] sm:$0xff]
        %2773 = vst [vmem:[#allocation4 + $0x3b8] sm:$0xff] %v2756
        %2774 = vst [vmem:[#allocation4 + $0x3c0] sm:$0xff] %v2757
        %2775 = vst [vmem:[#allocation4 + $0x3c8] sm:$0xff] %v2758
        %2776 = vst [vmem:[#allocation4 + $0x3d0] sm:$0xff] %v2759
        %2777 = vst [vmem:[#allocation4 + $0x3d8] sm:$0xff] %v2760
        %2778 = vst [vmem:[#allocation4 + $0x3e0] sm:$0xff] %v2761
        %2779 = vst [vmem:[#allocation4 + $0x3e8] sm:$0xff] %v2762
        %2780 = vst [vmem:[#allocation4 + $0x3f0] sm:$0xff] %v2763
        %2781 = vst [vmem:[#allocation4 + $0x3f8] sm:$0xff] %v2764
        %2782 = vst [vmem:[#allocation4 + $0x400] sm:$0xff] %v2765
        %2783 = vst [vmem:[#allocation4 + $0x408] sm:$0xff] %v2766
        %2784 = vst [vmem:[#allocation4 + $0x410] sm:$0xff] %v2767
        %2785 = vst [vmem:[#allocation4 + $0x418] sm:$0xff] %v2768
        %2786 = vst [vmem:[#allocation4 + $0x420] sm:$0xff] %v2769
        %2787 = vst [vmem:[#allocation4 + $0x428] sm:$0xff] %v2770
        %2788 = vst [vmem:[#allocation4 + $0x430] sm:$0xff] %v2771
        %2789 = vst [vmem:[#allocation4 + $0x438] sm:$0xff] %v2772
        %v2790 = vld [vmem:[#allocation3 + $0x18] sm:$0xff]
        %v2791 = vld [vmem:[#allocation3 + $0x20] sm:$0xff]
        %v2792 = vld [vmem:[#allocation3 + $0x28] sm:$0xff]
        %v2793 = vld [vmem:[#allocation3 + $0x30] sm:$0xff]
        %v2794 = vld [vmem:[#allocation3 + $0x38] sm:$0xff]
        %v2795 = vld [vmem:[#allocation3 + $0x40] sm:$0xff]
        %v2796 = vld [vmem:[#allocation3 + $0x48] sm:$0xff]
        %v2797 = vld [vmem:[#allocation3 + $0x50] sm:$0xff]
        %v2798 = vld [vmem:[#allocation3 + $0x58] sm:$0xff]
        %v2799 = vld [vmem:[#allocation3 + $0x60] sm:$0xff]
        %v2800 = vld [vmem:[#allocation3 + $0x68] sm:$0xff]
        %v2801 = vld [vmem:[#allocation3 + $0x70] sm:$0xff]
        %v2802 = vld [vmem:[#allocation3 + $0x78] sm:$0xff]
        %v2803 = vld [vmem:[#allocation3 + $0x80] sm:$0xff]
        %v2804 = vld [vmem:[#allocation3 + $0x88] sm:$0xff]
        %v2805 = vld [vmem:[#allocation3 + $0x90] sm:$0xff]
        %v2806 = vld [vmem:[#allocation3 + $0x98] sm:$0xff]
        %v2807 = vld [vmem:[#allocation3 + $0xa0] sm:$0xff]
        %2826 = vrot.lane.b32.xlu0 %v2790, 127
        %v2827 = vpop.permute.xlu0 %2826
        %2828 = vrot.lane.b32.xlu0 %v2791, 127
        %v2829 = vpop.permute.xlu0 %2828
        %2830 = vrot.lane.b32.xlu0 %v2792, 127
        %v2831 = vpop.permute.xlu0 %2830
        %2832 = vrot.lane.b32.xlu0 %v2793, 127
        %v2833 = vpop.permute.xlu0 %2832
        %2834 = vrot.lane.b32.xlu0 %v2794, 127
        %v2835 = vpop.permute.xlu0 %2834
        %2836 = vrot.lane.b32.xlu0 %v2795, 127
        %v2837 = vpop.permute.xlu0 %2836
        %2838 = vrot.lane.b32.xlu0 %v2796, 127
        %v2839 = vpop.permute.xlu0 %2838
        %2840 = vrot.lane.b32.xlu0 %v2797, 127
        %v2841 = vpop.permute.xlu0 %2840
        %2842 = vrot.lane.b32.xlu0 %v2798, 127
        %v2843 = vpop.permute.xlu0 %2842
        %2844 = vrot.lane.b32.xlu0 %v2799, 127
        %v2845 = vpop.permute.xlu0 %2844
        %2846 = vrot.lane.b32.xlu0 %v2800, 127
        %v2847 = vpop.permute.xlu0 %2846
        %2848 = vrot.lane.b32.xlu0 %v2801, 127
        %v2849 = vpop.permute.xlu0 %2848
        %2850 = vrot.lane.b32.xlu0 %v2802, 127
        %v2851 = vpop.permute.xlu0 %2850
        %2852 = vrot.lane.b32.xlu0 %v2803, 127
        %v2853 = vpop.permute.xlu0 %2852
        %2854 = vrot.lane.b32.xlu0 %v2804, 127
        %v2855 = vpop.permute.xlu0 %2854
        %2856 = vrot.lane.b32.xlu0 %v2805, 127
        %v2857 = vpop.permute.xlu0 %2856
        %2858 = vrot.lane.b32.xlu0 %v2806, 127
        %v2859 = vpop.permute.xlu0 %2858
        %2860 = vrot.lane.b32.xlu0 %v2807, 127
        %v2861 = vpop.permute.xlu0 %2860
        %v2862 = vsel %vm592, %v2827, %v2829
        %v2863 = vsel %vm592, %v2829, %v2831
        %v2864 = vsel %vm592, %v2831, %v2833
        %v2865 = vsel %vm592, %v2833, %v2835
        %v2866 = vsel %vm592, %v2835, %v2837
        %v2867 = vsel %vm592, %v2837, %v2839
        %v2868 = vsel %vm592, %v2839, %v2841
        %v2869 = vsel %vm592, %v2841, %v2843
        %v2870 = vsel %vm592, %v2843, %v2845
        %v2871 = vsel %vm592, %v2845, %v2847
        %v2872 = vsel %vm592, %v2847, %v2849
        %v2873 = vsel %vm592, %v2849, %v2851
        %v2874 = vsel %vm592, %v2851, %v2853
        %v2875 = vsel %vm592, %v2853, %v2855
        %v2876 = vsel %vm592, %v2855, %v2857
        %v2877 = vsel %vm592, %v2857, %v2859
        %v2878 = vsel %vm592, %v2859, %v2861
        %2896 = vst [vmem:[#allocation4 + $0x440] sm:$0xff] %v2862
        %2897 = vst [vmem:[#allocation4 + $0x448] sm:$0xff] %v2863
        %2898 = vst [vmem:[#allocation4 + $0x450] sm:$0xff] %v2864
        %2899 = vst [vmem:[#allocation4 + $0x458] sm:$0xff] %v2865
        %2900 = vst [vmem:[#allocation4 + $0x460] sm:$0xff] %v2866
        %2901 = vst [vmem:[#allocation4 + $0x468] sm:$0xff] %v2867
        %2902 = vst [vmem:[#allocation4 + $0x470] sm:$0xff] %v2868
        %2903 = vst [vmem:[#allocation4 + $0x478] sm:$0xff] %v2869
        %2904 = vst [vmem:[#allocation4 + $0x480] sm:$0xff] %v2870
        %2905 = vst [vmem:[#allocation4 + $0x488] sm:$0xff] %v2871
        %2906 = vst [vmem:[#allocation4 + $0x490] sm:$0xff] %v2872
        %2907 = vst [vmem:[#allocation4 + $0x498] sm:$0xff] %v2873
        %2908 = vst [vmem:[#allocation4 + $0x4a0] sm:$0xff] %v2874
        %2909 = vst [vmem:[#allocation4 + $0x4a8] sm:$0xff] %v2875
        %2910 = vst [vmem:[#allocation4 + $0x4b0] sm:$0xff] %v2876
        %2911 = vst [vmem:[#allocation4 + $0x4b8] sm:$0xff] %v2877
        %2912 = vst [vmem:[#allocation4 + $0x4c0] sm:$0xff] %v2878
        %v2913 = vld [vmem:[%s5] sm:$0xff]
        %v2914 = vld [vmem:[#allocation4] sm:$0xff]
        %v2915 = vld [vmem:[#allocation4 + $0x8] sm:$0xff]
        %v2916 = vld [vmem:[#allocation4 + $0x10] sm:$0xff]
        %v2917 = vld [vmem:[#allocation4 + $0x18] sm:$0xff]
        %v2918 = vld [vmem:[#allocation4 + $0x20] sm:$0xff]
        %v2919 = vld [vmem:[#allocation4 + $0x28] sm:$0xff]
        %v2920 = vld [vmem:[#allocation4 + $0x30] sm:$0xff]
        %v2921 = vld [vmem:[#allocation4 + $0x38] sm:$0xff]
        %v2922 = vld [vmem:[#allocation4 + $0x40] sm:$0xff]
        %v2923 = vld [vmem:[#allocation4 + $0x48] sm:$0xff]
        %v2924 = vld [vmem:[#allocation4 + $0x50] sm:$0xff]
        %v2925 = vld [vmem:[#allocation4 + $0x58] sm:$0xff]
        %v2926 = vld [vmem:[#allocation4 + $0x60] sm:$0xff]
        %v2927 = vld [vmem:[#allocation4 + $0x68] sm:$0xff]
        %v2928 = vld [vmem:[#allocation4 + $0x70] sm:$0xff]
        %v2929 = vld [vmem:[#allocation4 + $0x78] sm:$0xff]
        %v2930 = vld [vmem:[#allocation4 + $0x88] sm:$0xff]
        %v2931 = vld [vmem:[#allocation4 + $0x90] sm:$0xff]
        %v2932 = vld [vmem:[#allocation4 + $0x98] sm:$0xff]
        %v2933 = vld [vmem:[#allocation4 + $0xa0] sm:$0xff]
        %v2934 = vld [vmem:[#allocation4 + $0xa8] sm:$0xff]
        %v2935 = vld [vmem:[#allocation4 + $0xb0] sm:$0xff]
        %v2936 = vld [vmem:[#allocation4 + $0xb8] sm:$0xff]
        %v2937 = vld [vmem:[#allocation4 + $0xc0] sm:$0xff]
        %v2938 = vld [vmem:[#allocation4 + $0xc8] sm:$0xff]
        %v2939 = vld [vmem:[#allocation4 + $0xd0] sm:$0xff]
        %v2940 = vld [vmem:[#allocation4 + $0xd8] sm:$0xff]
        %v2941 = vld [vmem:[#allocation4 + $0xe0] sm:$0xff]
        %v2942 = vld [vmem:[#allocation4 + $0xe8] sm:$0xff]
        %v2943 = vld [vmem:[#allocation4 + $0xf0] sm:$0xff]
        %v2944 = vld [vmem:[#allocation4 + $0xf8] sm:$0xff]
        %v2945 = vld [vmem:[#allocation4 + $0x100] sm:$0xff]
        %v2946 = vld [vmem:[#allocation4 + $0x110] sm:$0xff]
        %v2947 = vld [vmem:[#allocation4 + $0x118] sm:$0xff]
        %v2948 = vld [vmem:[#allocation4 + $0x120] sm:$0xff]
        %v2949 = vld [vmem:[#allocation4 + $0x128] sm:$0xff]
        %v2950 = vld [vmem:[#allocation4 + $0x130] sm:$0xff]
        %v2951 = vld [vmem:[#allocation4 + $0x138] sm:$0xff]
        %v2952 = vld [vmem:[#allocation4 + $0x140] sm:$0xff]
        %v2953 = vld [vmem:[#allocation4 + $0x148] sm:$0xff]
        %v2954 = vld [vmem:[#allocation4 + $0x150] sm:$0xff]
        %v2955 = vld [vmem:[#allocation4 + $0x158] sm:$0xff]
        %v2956 = vld [vmem:[#allocation4 + $0x160] sm:$0xff]
        %v2957 = vld [vmem:[#allocation4 + $0x168] sm:$0xff]
        %v2958 = vld [vmem:[#allocation4 + $0x170] sm:$0xff]
        %v2959 = vld [vmem:[#allocation4 + $0x178] sm:$0xff]
        %v2960 = vld [vmem:[#allocation4 + $0x180] sm:$0xff]
        %v2961 = vld [vmem:[#allocation4 + $0x188] sm:$0xff]
        %v2962 = vld [vmem:[#allocation4 + $0x198] sm:$0xff]
        %v2963 = vld [vmem:[#allocation4 + $0x1a0] sm:$0xff]
        %v2964 = vld [vmem:[#allocation4 + $0x1a8] sm:$0xff]
        %v2965 = vld [vmem:[#allocation4 + $0x1b0] sm:$0xff]
        %v2966 = vld [vmem:[#allocation4 + $0x1b8] sm:$0xff]
        %v2967 = vld [vmem:[#allocation4 + $0x1c0] sm:$0xff]
        %v2968 = vld [vmem:[#allocation4 + $0x1c8] sm:$0xff]
        %v2969 = vld [vmem:[#allocation4 + $0x1d0] sm:$0xff]
        %v2970 = vld [vmem:[#allocation4 + $0x1d8] sm:$0xff]
        %v2971 = vld [vmem:[#allocation4 + $0x1e0] sm:$0xff]
        %v2972 = vld [vmem:[#allocation4 + $0x1e8] sm:$0xff]
        %v2973 = vld [vmem:[#allocation4 + $0x1f0] sm:$0xff]
        %v2974 = vld [vmem:[#allocation4 + $0x1f8] sm:$0xff]
        %v2975 = vld [vmem:[#allocation4 + $0x200] sm:$0xff]
        %v2976 = vld [vmem:[#allocation4 + $0x208] sm:$0xff]
        %v2977 = vld [vmem:[#allocation4 + $0x210] sm:$0xff]
        %v2978 = vld [vmem:[#allocation4 + $0x220] sm:$0xff]
        %v2979 = vld [vmem:[#allocation4 + $0x228] sm:$0xff]
        %v2980 = vld [vmem:[#allocation4 + $0x230] sm:$0xff]
        %v2981 = vld [vmem:[#allocation4 + $0x238] sm:$0xff]
        %v2982 = vld [vmem:[#allocation4 + $0x240] sm:$0xff]
        %v2983 = vld [vmem:[#allocation4 + $0x248] sm:$0xff]
        %v2984 = vld [vmem:[#allocation4 + $0x250] sm:$0xff]
        %v2985 = vld [vmem:[#allocation4 + $0x258] sm:$0xff]
        %v2986 = vld [vmem:[#allocation4 + $0x260] sm:$0xff]
        %v2987 = vld [vmem:[#allocation4 + $0x268] sm:$0xff]
        %v2988 = vld [vmem:[#allocation4 + $0x270] sm:$0xff]
        %v2989 = vld [vmem:[#allocation4 + $0x278] sm:$0xff]
        %v2990 = vld [vmem:[#allocation4 + $0x280] sm:$0xff]
        %v2991 = vld [vmem:[#allocation4 + $0x288] sm:$0xff]
        %v2992 = vld [vmem:[#allocation4 + $0x290] sm:$0xff]
        %v2993 = vld [vmem:[#allocation4 + $0x298] sm:$0xff]
        %v2994 = vld [vmem:[#allocation4 + $0x2a8] sm:$0xff]
        %v2995 = vld [vmem:[#allocation4 + $0x2b0] sm:$0xff]
        %v2996 = vld [vmem:[#allocation4 + $0x2b8] sm:$0xff]
        %v2997 = vld [vmem:[#allocation4 + $0x2c0] sm:$0xff]
        %v2998 = vld [vmem:[#allocation4 + $0x2c8] sm:$0xff]
        %v2999 = vld [vmem:[#allocation4 + $0x2d0] sm:$0xff]
        %v3000 = vld [vmem:[#allocation4 + $0x2d8] sm:$0xff]
        %v3001 = vld [vmem:[#allocation4 + $0x2e0] sm:$0xff]
        %v3002 = vld [vmem:[#allocation4 + $0x2e8] sm:$0xff]
        %v3003 = vld [vmem:[#allocation4 + $0x2f0] sm:$0xff]
        %v3004 = vld [vmem:[#allocation4 + $0x2f8] sm:$0xff]
        %v3005 = vld [vmem:[#allocation4 + $0x300] sm:$0xff]
        %v3006 = vld [vmem:[#allocation4 + $0x308] sm:$0xff]
        %v3007 = vld [vmem:[#allocation4 + $0x310] sm:$0xff]
        %v3008 = vld [vmem:[#allocation4 + $0x318] sm:$0xff]
        %v3009 = vld [vmem:[#allocation4 + $0x320] sm:$0xff]
        %v3010 = vld [vmem:[#allocation4 + $0x330] sm:$0xff]
        %v3011 = vld [vmem:[#allocation4 + $0x338] sm:$0xff]
        %v3012 = vld [vmem:[#allocation4 + $0x340] sm:$0xff]
        %v3013 = vld [vmem:[#allocation4 + $0x348] sm:$0xff]
        %v3014 = vld [vmem:[#allocation4 + $0x350] sm:$0xff]
        %v3015 = vld [vmem:[#allocation4 + $0x358] sm:$0xff]
        %v3016 = vld [vmem:[#allocation4 + $0x360] sm:$0xff]
        %v3017 = vld [vmem:[#allocation4 + $0x368] sm:$0xff]
        %v3018 = vld [vmem:[#allocation4 + $0x370] sm:$0xff]
        %v3019 = vld [vmem:[#allocation4 + $0x378] sm:$0xff]
        %v3020 = vld [vmem:[#allocation4 + $0x380] sm:$0xff]
        %v3021 = vld [vmem:[#allocation4 + $0x388] sm:$0xff]
        %v3022 = vld [vmem:[#allocation4 + $0x390] sm:$0xff]
        %v3023 = vld [vmem:[#allocation4 + $0x398] sm:$0xff]
        %v3024 = vld [vmem:[#allocation4 + $0x3a0] sm:$0xff]
        %v3025 = vld [vmem:[#allocation4 + $0x3a8] sm:$0xff]
        %v3026 = vld [vmem:[#allocation4 + $0x3b8] sm:$0xff]
        %v3027 = vld [vmem:[#allocation4 + $0x3c0] sm:$0xff]
        %v3028 = vld [vmem:[#allocation4 + $0x3c8] sm:$0xff]
        %v3029 = vld [vmem:[#allocation4 + $0x3d0] sm:$0xff]
        %v3030 = vld [vmem:[#allocation4 + $0x3d8] sm:$0xff]
        %v3031 = vld [vmem:[#allocation4 + $0x3e0] sm:$0xff]
        %v3032 = vld [vmem:[#allocation4 + $0x3e8] sm:$0xff]
        %v3033 = vld [vmem:[#allocation4 + $0x3f0] sm:$0xff]
        %v3034 = vld [vmem:[#allocation4 + $0x3f8] sm:$0xff]
        %v3035 = vld [vmem:[#allocation4 + $0x400] sm:$0xff]
        %v3036 = vld [vmem:[#allocation4 + $0x408] sm:$0xff]
        %v3037 = vld [vmem:[#allocation4 + $0x410] sm:$0xff]
        %v3038 = vld [vmem:[#allocation4 + $0x418] sm:$0xff]
        %v3039 = vld [vmem:[#allocation4 + $0x420] sm:$0xff]
        %v3040 = vld [vmem:[#allocation4 + $0x428] sm:$0xff]
        %v3041 = vld [vmem:[#allocation4 + $0x430] sm:$0xff]
        %v3042 = vld [vmem:[#allocation4 + $0x440] sm:$0xff]
        %v3043 = vld [vmem:[#allocation4 + $0x448] sm:$0xff]
        %v3044 = vld [vmem:[#allocation4 + $0x450] sm:$0xff]
        %v3045 = vld [vmem:[#allocation4 + $0x458] sm:$0xff]
        %v3046 = vld [vmem:[#allocation4 + $0x460] sm:$0xff]
        %v3047 = vld [vmem:[#allocation4 + $0x468] sm:$0xff]
        %v3048 = vld [vmem:[#allocation4 + $0x470] sm:$0xff]
        %v3049 = vld [vmem:[#allocation4 + $0x478] sm:$0xff]
        %v3050 = vld [vmem:[#allocation4 + $0x480] sm:$0xff]
        %v3051 = vld [vmem:[#allocation4 + $0x488] sm:$0xff]
        %v3052 = vld [vmem:[#allocation4 + $0x490] sm:$0xff]
        %v3053 = vld [vmem:[#allocation4 + $0x498] sm:$0xff]
        %v3054 = vld [vmem:[#allocation4 + $0x4a0] sm:$0xff]
        %v3055 = vld [vmem:[#allocation4 + $0x4a8] sm:$0xff]
        %v3056 = vld [vmem:[#allocation4 + $0x4b0] sm:$0xff]
        %v3057 = vld [vmem:[#allocation4 + $0x4b8] sm:$0xff]
        %v3058 = vld [vmem:[%s6] sm:$0xff]
        %3060 = vset.pattern.permute.xlu0 0
        %3061 = vperm.xlu0 %3060, %v3058
        %v3062 = vpop.permute.xlu0 %3061
        %v3065 = vsel %vm1355, %v2913, 0
        %3067 = vmatprep.subr.mxu0 %v2915
        %3068 = vmatpush1.msra.mxu0 %v2914
        %3069 = vmatprep.subr.mxu0 %v2931
        %3070 = vmatpush1.msra.mxu0 %v2930
        %3071 = vmatprep.subr.mxu0 %v2947
        %3072 = vmatpush1.msra.mxu0 %v2946
        %3073 = vmatprep.subr.mxu0 %v2963
        %3074 = vmatpush1.msra.mxu0 %v2962
        %3075 = vmatprep.subr.mxu0 %v2979
        %3076 = vmatpush1.msra.mxu0 %v2978
        %3077 = vmatprep.subr.mxu0 %v2995
        %3078 = vmatpush1.msra.mxu0 %v2994
        %3079 = vmatprep.subr.mxu0 %v3011
        %3080 = vmatpush1.msra.mxu0 %v3010
        %3081 = vmatprep.subr.mxu0 %v3027
        %3082 = vmatpush1.msra.mxu0 %v3026
        %3083 = vmatprep.subr.mxu0 %v3043
        %3084 = vmatpush1.msra.mxu0 %v3042
        %3085 = vmatprep.subr.mxu0 0.0
        %3086 = vmatpush1.msra.mxu0 0.0
        %3087 = vmatprep.subr.mxu0 0.0
        %3088 = vmatpush1.msra.mxu0 0.0
        %3089 = vmatprep.subr.mxu0 0.0
        %3090 = vmatpush1.msra.mxu0 0.0
        %3091 = vmatprep.subr.mxu0 0.0
        %3092 = vmatpush1.msra.mxu0 0.0
        %3093 = vmatprep.subr.mxu0 0.0
        %3094 = vmatpush1.msra.mxu0 0.0
        %3095 = vmatprep.subr.mxu0 0.0
        %3096 = vmatpush1.msra.mxu0 0.0
        %3097 = vmatprep.subr.mxu0 0.0
        %3098 = vmatpush1.msra.mxu0 0.0
        %3099 = vmatprep.subr.mxu0 0.0
        %3100 = vmatpush1.msra.mxu0 0.0
        %3101 = vmatprep.subr.mxu0 0.0
        %3102 = vmatpush1.msra.mxu0 0.0
        %3103 = vmatprep.subr.mxu0 0.0
        %3104 = vmatpush1.msra.mxu0 0.0
        %3105 = vmatprep.subr.mxu0 0.0
        %3106 = vmatpush1.msra.mxu0 0.0
        %3107 = vmatprep.subr.mxu0 0.0
        %3108 = vmatpush1.msra.mxu0 0.0
        %3109 = vmatprep.subr.mxu0 0.0
        %3110 = vmatpush1.msra.mxu0 0.0
        %3111 = vmatprep.subr.mxu0 0.0
        %3112 = vmatpush1.msra.mxu0 0.0
        %3113 = vmatprep.subr.mxu0 0.0
        %3114 = vmatpush1.msra.mxu0 0.0
        %3115 = vmatprep.subr.mxu0 0.0
        %3116 = vmatpush1.msra.mxu0 0.0
        %3117 = vmatprep.subr.mxu0 0.0
        %3118 = vmatpush1.msra.mxu0 0.0
        %3119 = vmatprep.subr.mxu0 0.0
        %3120 = vmatpush1.msra.mxu0 0.0
        %3121 = vmatprep.subr.mxu0 0.0
        %3122 = vmatpush1.msra.mxu0 0.0
        %3123 = vmatprep.subr.mxu0 0.0
        %3124 = vmatpush1.msra.mxu0 0.0
        %3125 = vmatprep.subr.mxu0 0.0
        %3126 = vmatpush1.msra.mxu0 0.0
        %3127 = vmatprep.subr.mxu0 0.0
        %3128 = vmatpush1.msra.mxu0 0.0
        %3129 = vmatprep.subr.mxu0 0.0
        %3130 = vmatpush1.msra.mxu0 0.0
        %3131 = vmatprep.mubr.f32.mxu0 0.0
        %3132 = vmatmul.mubr.f32.gmra.mrb[0].mxu0 %v3065
        %v3133 = vpop.f32.mrb[0].mxu0
        %v3134 = vadd.f32 %v3062, %v3133
        %v3135 = vpop.f32.mrb[0].mxu0
        %v3136 = vadd.f32 %v3062, %v3135
        %3137 = vdwg.mxu0
        %3138 = vmatprep.subr.mxu0 %v2917
        %3139 = vmatpush1.msra.mxu0 %v2916
        %3140 = vmatprep.subr.mxu0 %v2933
        %3141 = vmatpush1.msra.mxu0 %v2932
        %3142 = vmatprep.subr.mxu0 %v2949
        %3143 = vmatpush1.msra.mxu0 %v2948
        %3144 = vmatprep.subr.mxu0 %v2965
        %3145 = vmatpush1.msra.mxu0 %v2964
        %3146 = vmatprep.subr.mxu0 %v2981
        %3147 = vmatpush1.msra.mxu0 %v2980
        %3148 = vmatprep.subr.mxu0 %v2997
        %3149 = vmatpush1.msra.mxu0 %v2996
        %3150 = vmatprep.subr.mxu0 %v3013
        %3151 = vmatpush1.msra.mxu0 %v3012
        %3152 = vmatprep.subr.mxu0 %v3029
        %3153 = vmatpush1.msra.mxu0 %v3028
        %3154 = vmatprep.subr.mxu0 %v3045
        %3155 = vmatpush1.msra.mxu0 %v3044
        %3156 = vmatprep.subr.mxu0 0.0
        %3157 = vmatpush1.msra.mxu0 0.0
        %3158 = vmatprep.subr.mxu0 0.0
        %3159 = vmatpush1.msra.mxu0 0.0
        %3160 = vmatprep.subr.mxu0 0.0
        %3161 = vmatpush1.msra.mxu0 0.0
        %3162 = vmatprep.subr.mxu0 0.0
        %3163 = vmatpush1.msra.mxu0 0.0
        %3164 = vmatprep.subr.mxu0 0.0
        %3165 = vmatpush1.msra.mxu0 0.0
        %3166 = vmatprep.subr.mxu0 0.0
        %3167 = vmatpush1.msra.mxu0 0.0
        %3168 = vmatprep.subr.mxu0 0.0
        %3169 = vmatpush1.msra.mxu0 0.0
        %3170 = vmatprep.subr.mxu0 0.0
        %3171 = vmatpush1.msra.mxu0 0.0
        %3172 = vmatprep.subr.mxu0 0.0
        %3173 = vmatpush1.msra.mxu0 0.0
        %3174 = vmatprep.subr.mxu0 0.0
        %3175 = vmatpush1.msra.mxu0 0.0
        %3176 = vmatprep.subr.mxu0 0.0
        %3177 = vmatpush1.msra.mxu0 0.0
        %3178 = vmatprep.subr.mxu0 0.0
        %3179 = vmatpush1.msra.mxu0 0.0
        %3180 = vmatprep.subr.mxu0 0.0
        %3181 = vmatpush1.msra.mxu0 0.0
        %3182 = vmatprep.subr.mxu0 0.0
        %3183 = vmatpush1.msra.mxu0 0.0
        %3184 = vmatprep.subr.mxu0 0.0
        %3185 = vmatpush1.msra.mxu0 0.0
        %3186 = vmatprep.subr.mxu0 0.0
        %3187 = vmatpush1.msra.mxu0 0.0
        %3188 = vmatprep.subr.mxu0 0.0
        %3189 = vmatpush1.msra.mxu0 0.0
        %3190 = vmatprep.subr.mxu0 0.0
        %3191 = vmatpush1.msra.mxu0 0.0
        %3192 = vmatprep.subr.mxu0 0.0
        %3193 = vmatpush1.msra.mxu0 0.0
        %3194 = vmatprep.subr.mxu0 0.0
        %3195 = vmatpush1.msra.mxu0 0.0
        %3196 = vmatprep.subr.mxu0 0.0
        %3197 = vmatpush1.msra.mxu0 0.0
        %3198 = vmatprep.subr.mxu0 0.0
        %3199 = vmatpush1.msra.mxu0 0.0
        %3200 = vmatprep.subr.mxu0 0.0
        %3201 = vmatpush1.msra.mxu0 0.0
        %3202 = vmatprep.mubr.f32.mxu0 0.0
        %3203 = vmatmul.mubr.f32.gmra.mrb[0].mxu0 %v3065
        %v3204 = vpop.f32.mrb[0].mxu0
        %v3205 = vadd.f32 %v3062, %v3204
        %v3206 = vpop.f32.mrb[0].mxu0
        %v3207 = vadd.f32 %v3062, %v3206
        %3208 = vdwg.mxu0
        %3209 = vmatprep.subr.mxu0 %v2919
        %3210 = vmatpush1.msra.mxu0 %v2918
        %3211 = vmatprep.subr.mxu0 %v2935
        %3212 = vmatpush1.msra.mxu0 %v2934
        %3213 = vmatprep.subr.mxu0 %v2951
        %3214 = vmatpush1.msra.mxu0 %v2950
        %3215 = vmatprep.subr.mxu0 %v2967
        %3216 = vmatpush1.msra.mxu0 %v2966
        %3217 = vmatprep.subr.mxu0 %v2983
        %3218 = vmatpush1.msra.mxu0 %v2982
        %3219 = vmatprep.subr.mxu0 %v2999
        %3220 = vmatpush1.msra.mxu0 %v2998
        %3221 = vmatprep.subr.mxu0 %v3015
        %3222 = vmatpush1.msra.mxu0 %v3014
        %3223 = vmatprep.subr.mxu0 %v3031
        %3224 = vmatpush1.msra.mxu0 %v3030
        %3225 = vmatprep.subr.mxu0 %v3047
        %3226 = vmatpush1.msra.mxu0 %v3046
        %3227 = vmatprep.subr.mxu0 0.0
        %3228 = vmatpush1.msra.mxu0 0.0
        %3229 = vmatprep.subr.mxu0 0.0
        %3230 = vmatpush1.msra.mxu0 0.0
        %3231 = vmatprep.subr.mxu0 0.0
        %3232 = vmatpush1.msra.mxu0 0.0
        %3233 = vmatprep.subr.mxu0 0.0
        %3234 = vmatpush1.msra.mxu0 0.0
        %3235 = vmatprep.subr.mxu0 0.0
        %3236 = vmatpush1.msra.mxu0 0.0
        %3237 = vmatprep.subr.mxu0 0.0
        %3238 = vmatpush1.msra.mxu0 0.0
        %3239 = vmatprep.subr.mxu0 0.0
        %3240 = vmatpush1.msra.mxu0 0.0
        %3241 = vmatprep.subr.mxu0 0.0
        %3242 = vmatpush1.msra.mxu0 0.0
        %3243 = vmatprep.subr.mxu0 0.0
        %3244 = vmatpush1.msra.mxu0 0.0
        %3245 = vmatprep.subr.mxu0 0.0
        %3246 = vmatpush1.msra.mxu0 0.0
        %3247 = vmatprep.subr.mxu0 0.0
        %3248 = vmatpush1.msra.mxu0 0.0
        %3249 = vmatprep.subr.mxu0 0.0
        %3250 = vmatpush1.msra.mxu0 0.0
        %3251 = vmatprep.subr.mxu0 0.0
        %3252 = vmatpush1.msra.mxu0 0.0
        %3253 = vmatprep.subr.mxu0 0.0
        %3254 = vmatpush1.msra.mxu0 0.0
        %3255 = vmatprep.subr.mxu0 0.0
        %3256 = vmatpush1.msra.mxu0 0.0
        %3257 = vmatprep.subr.mxu0 0.0
        %3258 = vmatpush1.msra.mxu0 0.0
        %3259 = vmatprep.subr.mxu0 0.0
        %3260 = vmatpush1.msra.mxu0 0.0
        %3261 = vmatprep.subr.mxu0 0.0
        %3262 = vmatpush1.msra.mxu0 0.0
        %3263 = vmatprep.subr.mxu0 0.0
        %3264 = vmatpush1.msra.mxu0 0.0
        %3265 = vmatprep.subr.mxu0 0.0
        %3266 = vmatpush1.msra.mxu0 0.0
        %3267 = vmatprep.subr.mxu0 0.0
        %3268 = vmatpush1.msra.mxu0 0.0
        %3269 = vmatprep.subr.mxu0 0.0
        %3270 = vmatpush1.msra.mxu0 0.0
        %3271 = vmatprep.subr.mxu0 0.0
        %3272 = vmatpush1.msra.mxu0 0.0
        %3273 = vmatprep.mubr.f32.mxu0 0.0
        %3274 = vmatmul.mubr.f32.gmra.mrb[0].mxu0 %v3065
        %v3275 = vpop.f32.mrb[0].mxu0
        %v3276 = vadd.f32 %v3062, %v3275
        %v3277 = vpop.f32.mrb[0].mxu0
        %v3278 = vadd.f32 %v3062, %v3277
        %3279 = vdwg.mxu0
        %3280 = vmatprep.subr.mxu0 %v2921
        %3281 = vmatpush1.msra.mxu0 %v2920
        %3282 = vmatprep.subr.mxu0 %v2937
        %3283 = vmatpush1.msra.mxu0 %v2936
        %3284 = vmatprep.subr.mxu0 %v2953
        %3285 = vmatpush1.msra.mxu0 %v2952
        %3286 = vmatprep.subr.mxu0 %v2969
        %3287 = vmatpush1.msra.mxu0 %v2968
        %3288 = vmatprep.subr.mxu0 %v2985
        %3289 = vmatpush1.msra.mxu0 %v2984
        %3290 = vmatprep.subr.mxu0 %v3001
        %3291 = vmatpush1.msra.mxu0 %v3000
        %3292 = vmatprep.subr.mxu0 %v3017
        %3293 = vmatpush1.msra.mxu0 %v3016
        %3294 = vmatprep.subr.mxu0 %v3033
        %3295 = vmatpush1.msra.mxu0 %v3032
        %3296 = vmatprep.subr.mxu0 %v3049
        %3297 = vmatpush1.msra.mxu0 %v3048
        %3298 = vmatprep.subr.mxu0 0.0
        %3299 = vmatpush1.msra.mxu0 0.0
        %3300 = vmatprep.subr.mxu0 0.0
        %3301 = vmatpush1.msra.mxu0 0.0
        %3302 = vmatprep.subr.mxu0 0.0
        %3303 = vmatpush1.msra.mxu0 0.0
        %3304 = vmatprep.subr.mxu0 0.0
        %3305 = vmatpush1.msra.mxu0 0.0
        %3306 = vmatprep.subr.mxu0 0.0
        %3307 = vmatpush1.msra.mxu0 0.0
        %3308 = vmatprep.subr.mxu0 0.0
        %3309 = vmatpush1.msra.mxu0 0.0
        %3310 = vmatprep.subr.mxu0 0.0
        %3311 = vmatpush1.msra.mxu0 0.0
        %3312 = vmatprep.subr.mxu0 0.0
        %3313 = vmatpush1.msra.mxu0 0.0
        %3314 = vmatprep.subr.mxu0 0.0
        %3315 = vmatpush1.msra.mxu0 0.0
        %3316 = vmatprep.subr.mxu0 0.0
        %3317 = vmatpush1.msra.mxu0 0.0
        %3318 = vmatprep.subr.mxu0 0.0
        %3319 = vmatpush1.msra.mxu0 0.0
        %3320 = vmatprep.subr.mxu0 0.0
        %3321 = vmatpush1.msra.mxu0 0.0
        %3322 = vmatprep.subr.mxu0 0.0
        %3323 = vmatpush1.msra.mxu0 0.0
        %3324 = vmatprep.subr.mxu0 0.0
        %3325 = vmatpush1.msra.mxu0 0.0
        %3326 = vmatprep.subr.mxu0 0.0
        %3327 = vmatpush1.msra.mxu0 0.0
        %3328 = vmatprep.subr.mxu0 0.0
        %3329 = vmatpush1.msra.mxu0 0.0
        %3330 = vmatprep.subr.mxu0 0.0
        %3331 = vmatpush1.msra.mxu0 0.0
        %3332 = vmatprep.subr.mxu0 0.0
        %3333 = vmatpush1.msra.mxu0 0.0
        %3334 = vmatprep.subr.mxu0 0.0
        %3335 = vmatpush1.msra.mxu0 0.0
        %3336 = vmatprep.subr.mxu0 0.0
        %3337 = vmatpush1.msra.mxu0 0.0
        %3338 = vmatprep.subr.mxu0 0.0
        %3339 = vmatpush1.msra.mxu0 0.0
        %3340 = vmatprep.subr.mxu0 0.0
        %3341 = vmatpush1.msra.mxu0 0.0
        %3342 = vmatprep.subr.mxu0 0.0
        %3343 = vmatpush1.msra.mxu0 0.0
        %3344 = vmatprep.mubr.f32.mxu0 0.0
        %3345 = vmatmul.mubr.f32.gmra.mrb[0].mxu0 %v3065
        %v3346 = vpop.f32.mrb[0].mxu0
        %v3347 = vadd.f32 %v3062, %v3346
        %v3348 = vpop.f32.mrb[0].mxu0
        %v3349 = vadd.f32 %v3062, %v3348
        %3350 = vdwg.mxu0
        %3351 = vmatprep.subr.mxu0 %v2923
        %3352 = vmatpush1.msra.mxu0 %v2922
        %3353 = vmatprep.subr.mxu0 %v2939
        %3354 = vmatpush1.msra.mxu0 %v2938
        %3355 = vmatprep.subr.mxu0 %v2955
        %3356 = vmatpush1.msra.mxu0 %v2954
        %3357 = vmatprep.subr.mxu0 %v2971
        %3358 = vmatpush1.msra.mxu0 %v2970
        %3359 = vmatprep.subr.mxu0 %v2987
        %3360 = vmatpush1.msra.mxu0 %v2986
        %3361 = vmatprep.subr.mxu0 %v3003
        %3362 = vmatpush1.msra.mxu0 %v3002
        %3363 = vmatprep.subr.mxu0 %v3019
        %3364 = vmatpush1.msra.mxu0 %v3018
        %3365 = vmatprep.subr.mxu0 %v3035
        %3366 = vmatpush1.msra.mxu0 %v3034
        %3367 = vmatprep.subr.mxu0 %v3051
        %3368 = vmatpush1.msra.mxu0 %v3050
        %3369 = vmatprep.subr.mxu0 0.0
        %3370 = vmatpush1.msra.mxu0 0.0
        %3371 = vmatprep.subr.mxu0 0.0
        %3372 = vmatpush1.msra.mxu0 0.0
        %3373 = vmatprep.subr.mxu0 0.0
        %3374 = vmatpush1.msra.mxu0 0.0
        %3375 = vmatprep.subr.mxu0 0.0
        %3376 = vmatpush1.msra.mxu0 0.0
        %3377 = vmatprep.subr.mxu0 0.0
        %3378 = vmatpush1.msra.mxu0 0.0
        %3379 = vmatprep.subr.mxu0 0.0
        %3380 = vmatpush1.msra.mxu0 0.0
        %3381 = vmatprep.subr.mxu0 0.0
        %3382 = vmatpush1.msra.mxu0 0.0
        %3383 = vmatprep.subr.mxu0 0.0
        %3384 = vmatpush1.msra.mxu0 0.0
        %3385 = vmatprep.subr.mxu0 0.0
        %3386 = vmatpush1.msra.mxu0 0.0
        %3387 = vmatprep.subr.mxu0 0.0
        %3388 = vmatpush1.msra.mxu0 0.0
        %3389 = vmatprep.subr.mxu0 0.0
        %3390 = vmatpush1.msra.mxu0 0.0
        %3391 = vmatprep.subr.mxu0 0.0
        %3392 = vmatpush1.msra.mxu0 0.0
        %3393 = vmatprep.subr.mxu0 0.0
        %3394 = vmatpush1.msra.mxu0 0.0
        %3395 = vmatprep.subr.mxu0 0.0
        %3396 = vmatpush1.msra.mxu0 0.0
        %3397 = vmatprep.subr.mxu0 0.0
        %3398 = vmatpush1.msra.mxu0 0.0
        %3399 = vmatprep.subr.mxu0 0.0
        %3400 = vmatpush1.msra.mxu0 0.0
        %3401 = vmatprep.subr.mxu0 0.0
        %3402 = vmatpush1.msra.mxu0 0.0
        %3403 = vmatprep.subr.mxu0 0.0
        %3404 = vmatpush1.msra.mxu0 0.0
        %3405 = vmatprep.subr.mxu0 0.0
        %3406 = vmatpush1.msra.mxu0 0.0
        %3407 = vmatprep.subr.mxu0 0.0
        %3408 = vmatpush1.msra.mxu0 0.0
        %3409 = vmatprep.subr.mxu0 0.0
        %3410 = vmatpush1.msra.mxu0 0.0
        %3411 = vmatprep.subr.mxu0 0.0
        %3412 = vmatpush1.msra.mxu0 0.0
        %3413 = vmatprep.subr.mxu0 0.0
        %3414 = vmatpush1.msra.mxu0 0.0
        %3415 = vmatprep.mubr.f32.mxu0 0.0
        %3416 = vmatmul.mubr.f32.gmra.mrb[0].mxu0 %v3065
        %v3417 = vpop.f32.mrb[0].mxu0
        %v3418 = vadd.f32 %v3062, %v3417
        %v3419 = vpop.f32.mrb[0].mxu0
        %v3420 = vadd.f32 %v3062, %v3419
        %3421 = vdwg.mxu0
        %3422 = vmatprep.subr.mxu0 %v2925
        %3423 = vmatpush1.msra.mxu0 %v2924
        %3424 = vmatprep.subr.mxu0 %v2941
        %3425 = vmatpush1.msra.mxu0 %v2940
        %3426 = vmatprep.subr.mxu0 %v2957
        %3427 = vmatpush1.msra.mxu0 %v2956
        %3428 = vmatprep.subr.mxu0 %v2973
        %3429 = vmatpush1.msra.mxu0 %v2972
        %3430 = vmatprep.subr.mxu0 %v2989
        %3431 = vmatpush1.msra.mxu0 %v2988
        %3432 = vmatprep.subr.mxu0 %v3005
        %3433 = vmatpush1.msra.mxu0 %v3004
        %3434 = vmatprep.subr.mxu0 %v3021
        %3435 = vmatpush1.msra.mxu0 %v3020
        %3436 = vmatprep.subr.mxu0 %v3037
        %3437 = vmatpush1.msra.mxu0 %v3036
        %3438 = vmatprep.subr.mxu0 %v3053
        %3439 = vmatpush1.msra.mxu0 %v3052
        %3440 = vmatprep.subr.mxu0 0.0
        %3441 = vmatpush1.msra.mxu0 0.0
        %3442 = vmatprep.subr.mxu0 0.0
        %3443 = vmatpush1.msra.mxu0 0.0
        %3444 = vmatprep.subr.mxu0 0.0
        %3445 = vmatpush1.msra.mxu0 0.0
        %3446 = vmatprep.subr.mxu0 0.0
        %3447 = vmatpush1.msra.mxu0 0.0
        %3448 = vmatprep.subr.mxu0 0.0
        %3449 = vmatpush1.msra.mxu0 0.0
        %3450 = vmatprep.subr.mxu0 0.0
        %3451 = vmatpush1.msra.mxu0 0.0
        %3452 = vmatprep.subr.mxu0 0.0
        %3453 = vmatpush1.msra.mxu0 0.0
        %3454 = vmatprep.subr.mxu0 0.0
        %3455 = vmatpush1.msra.mxu0 0.0
        %3456 = vmatprep.subr.mxu0 0.0
        %3457 = vmatpush1.msra.mxu0 0.0
        %3458 = vmatprep.subr.mxu0 0.0
        %3459 = vmatpush1.msra.mxu0 0.0
        %3460 = vmatprep.subr.mxu0 0.0
        %3461 = vmatpush1.msra.mxu0 0.0
        %3462 = vmatprep.subr.mxu0 0.0
        %3463 = vmatpush1.msra.mxu0 0.0
        %3464 = vmatprep.subr.mxu0 0.0
        %3465 = vmatpush1.msra.mxu0 0.0
        %3466 = vmatprep.subr.mxu0 0.0
        %3467 = vmatpush1.msra.mxu0 0.0
        %3468 = vmatprep.subr.mxu0 0.0
        %3469 = vmatpush1.msra.mxu0 0.0
        %3470 = vmatprep.subr.mxu0 0.0
        %3471 = vmatpush1.msra.mxu0 0.0
        %3472 = vmatprep.subr.mxu0 0.0
        %3473 = vmatpush1.msra.mxu0 0.0
        %3474 = vmatprep.subr.mxu0 0.0
        %3475 = vmatpush1.msra.mxu0 0.0
        %3476 = vmatprep.subr.mxu0 0.0
        %3477 = vmatpush1.msra.mxu0 0.0
        %3478 = vmatprep.subr.mxu0 0.0
        %3479 = vmatpush1.msra.mxu0 0.0
        %3480 = vmatprep.subr.mxu0 0.0
        %3481 = vmatpush1.msra.mxu0 0.0
        %3482 = vmatprep.subr.mxu0 0.0
        %3483 = vmatpush1.msra.mxu0 0.0
        %3484 = vmatprep.subr.mxu0 0.0
        %3485 = vmatpush1.msra.mxu0 0.0
        %3486 = vmatprep.mubr.f32.mxu0 0.0
        %3487 = vmatmul.mubr.f32.gmra.mrb[0].mxu0 %v3065
        %v3488 = vpop.f32.mrb[0].mxu0
        %v3489 = vadd.f32 %v3062, %v3488
        %v3490 = vpop.f32.mrb[0].mxu0
        %v3491 = vadd.f32 %v3062, %v3490
        %3492 = vdwg.mxu0
        %3493 = vmatprep.subr.mxu0 %v2927
        %3494 = vmatpush1.msra.mxu0 %v2926
        %3495 = vmatprep.subr.mxu0 %v2943
        %3496 = vmatpush1.msra.mxu0 %v2942
        %3497 = vmatprep.subr.mxu0 %v2959
        %3498 = vmatpush1.msra.mxu0 %v2958
        %3499 = vmatprep.subr.mxu0 %v2975
        %3500 = vmatpush1.msra.mxu0 %v2974
        %3501 = vmatprep.subr.mxu0 %v2991
        %3502 = vmatpush1.msra.mxu0 %v2990
        %3503 = vmatprep.subr.mxu0 %v3007
        %3504 = vmatpush1.msra.mxu0 %v3006
        %3505 = vmatprep.subr.mxu0 %v3023
        %3506 = vmatpush1.msra.mxu0 %v3022
        %3507 = vmatprep.subr.mxu0 %v3039
        %3508 = vmatpush1.msra.mxu0 %v3038
        %3509 = vmatprep.subr.mxu0 %v3055
        %3510 = vmatpush1.msra.mxu0 %v3054
        %3511 = vmatprep.subr.mxu0 0.0
        %3512 = vmatpush1.msra.mxu0 0.0
        %3513 = vmatprep.subr.mxu0 0.0
        %3514 = vmatpush1.msra.mxu0 0.0
        %3515 = vmatprep.subr.mxu0 0.0
        %3516 = vmatpush1.msra.mxu0 0.0
        %3517 = vmatprep.subr.mxu0 0.0
        %3518 = vmatpush1.msra.mxu0 0.0
        %3519 = vmatprep.subr.mxu0 0.0
        %3520 = vmatpush1.msra.mxu0 0.0
        %3521 = vmatprep.subr.mxu0 0.0
        %3522 = vmatpush1.msra.mxu0 0.0
        %3523 = vmatprep.subr.mxu0 0.0
        %3524 = vmatpush1.msra.mxu0 0.0
        %3525 = vmatprep.subr.mxu0 0.0
        %3526 = vmatpush1.msra.mxu0 0.0
        %3527 = vmatprep.subr.mxu0 0.0
        %3528 = vmatpush1.msra.mxu0 0.0
        %3529 = vmatprep.subr.mxu0 0.0
        %3530 = vmatpush1.msra.mxu0 0.0
        %3531 = vmatprep.subr.mxu0 0.0
        %3532 = vmatpush1.msra.mxu0 0.0
        %3533 = vmatprep.subr.mxu0 0.0
        %3534 = vmatpush1.msra.mxu0 0.0
        %3535 = vmatprep.subr.mxu0 0.0
        %3536 = vmatpush1.msra.mxu0 0.0
        %3537 = vmatprep.subr.mxu0 0.0
        %3538 = vmatpush1.msra.mxu0 0.0
        %3539 = vmatprep.subr.mxu0 0.0
        %3540 = vmatpush1.msra.mxu0 0.0
        %3541 = vmatprep.subr.mxu0 0.0
        %3542 = vmatpush1.msra.mxu0 0.0
        %3543 = vmatprep.subr.mxu0 0.0
        %3544 = vmatpush1.msra.mxu0 0.0
        %3545 = vmatprep.subr.mxu0 0.0
        %3546 = vmatpush1.msra.mxu0 0.0
        %3547 = vmatprep.subr.mxu0 0.0
        %3548 = vmatpush1.msra.mxu0 0.0
        %3549 = vmatprep.subr.mxu0 0.0
        %3550 = vmatpush1.msra.mxu0 0.0
        %3551 = vmatprep.subr.mxu0 0.0
        %3552 = vmatpush1.msra.mxu0 0.0
        %3553 = vmatprep.subr.mxu0 0.0
        %3554 = vmatpush1.msra.mxu0 0.0
        %3555 = vmatprep.subr.mxu0 0.0
        %3556 = vmatpush1.msra.mxu0 0.0
        %3557 = vmatprep.mubr.f32.mxu0 0.0
        %3558 = vmatmul.mubr.f32.gmra.mrb[0].mxu0 %v3065
        %v3559 = vpop.f32.mrb[0].mxu0
        %v3560 = vadd.f32 %v3062, %v3559
        %v3561 = vpop.f32.mrb[0].mxu0
        %v3562 = vadd.f32 %v3062, %v3561
        %3563 = vdwg.mxu0
        %3564 = vmatprep.subr.mxu0 %v2929
        %3565 = vmatpush1.msra.mxu0 %v2928
        %3566 = vmatprep.subr.mxu0 %v2945
        %3567 = vmatpush1.msra.mxu0 %v2944
        %3568 = vmatprep.subr.mxu0 %v2961
        %3569 = vmatpush1.msra.mxu0 %v2960
        %3570 = vmatprep.subr.mxu0 %v2977
        %3571 = vmatpush1.msra.mxu0 %v2976
        %3572 = vmatprep.subr.mxu0 %v2993
        %3573 = vmatpush1.msra.mxu0 %v2992
        %3574 = vmatprep.subr.mxu0 %v3009
        %3575 = vmatpush1.msra.mxu0 %v3008
        %3576 = vmatprep.subr.mxu0 %v3025
        %3577 = vmatpush1.msra.mxu0 %v3024
        %3578 = vmatprep.subr.mxu0 %v3041
        %3579 = vmatpush1.msra.mxu0 %v3040
        %3580 = vmatprep.subr.mxu0 %v3057
        %3581 = vmatpush1.msra.mxu0 %v3056
        %3582 = vmatprep.subr.mxu0 0.0
        %3583 = vmatpush1.msra.mxu0 0.0
        %3584 = vmatprep.subr.mxu0 0.0
        %3585 = vmatpush1.msra.mxu0 0.0
        %3586 = vmatprep.subr.mxu0 0.0
        %3587 = vmatpush1.msra.mxu0 0.0
        %3588 = vmatprep.subr.mxu0 0.0
        %3589 = vmatpush1.msra.mxu0 0.0
        %3590 = vmatprep.subr.mxu0 0.0
        %3591 = vmatpush1.msra.mxu0 0.0
        %3592 = vmatprep.subr.mxu0 0.0
        %3593 = vmatpush1.msra.mxu0 0.0
        %3594 = vmatprep.subr.mxu0 0.0
        %3595 = vmatpush1.msra.mxu0 0.0
        %3596 = vmatprep.subr.mxu0 0.0
        %3597 = vmatpush1.msra.mxu0 0.0
        %3598 = vmatprep.subr.mxu0 0.0
        %3599 = vmatpush1.msra.mxu0 0.0
        %3600 = vmatprep.subr.mxu0 0.0
        %3601 = vmatpush1.msra.mxu0 0.0
        %3602 = vmatprep.subr.mxu0 0.0
        %3603 = vmatpush1.msra.mxu0 0.0
        %3604 = vmatprep.subr.mxu0 0.0
        %3605 = vmatpush1.msra.mxu0 0.0
        %3606 = vmatprep.subr.mxu0 0.0
        %3607 = vmatpush1.msra.mxu0 0.0
        %3608 = vmatprep.subr.mxu0 0.0
        %3609 = vmatpush1.msra.mxu0 0.0
        %3610 = vmatprep.subr.mxu0 0.0
        %3611 = vmatpush1.msra.mxu0 0.0
        %3612 = vmatprep.subr.mxu0 0.0
        %3613 = vmatpush1.msra.mxu0 0.0
        %3614 = vmatprep.subr.mxu0 0.0
        %3615 = vmatpush1.msra.mxu0 0.0
        %3616 = vmatprep.subr.mxu0 0.0
        %3617 = vmatpush1.msra.mxu0 0.0
        %3618 = vmatprep.subr.mxu0 0.0
        %3619 = vmatpush1.msra.mxu0 0.0
        %3620 = vmatprep.subr.mxu0 0.0
        %3621 = vmatpush1.msra.mxu0 0.0
        %3622 = vmatprep.subr.mxu0 0.0
        %3623 = vmatpush1.msra.mxu0 0.0
        %3624 = vmatprep.subr.mxu0 0.0
        %3625 = vmatpush1.msra.mxu0 0.0
        %3626 = vmatprep.subr.mxu0 0.0
        %3627 = vmatpush1.msra.mxu0 0.0
        %3628 = vmatprep.mubr.f32.mxu0 0.0
        %3629 = vmatmul.mubr.f32.gmra.mrb[0].mxu0 %v3065
        %v3630 = vpop.f32.mrb[0].mxu0
        %v3631 = vadd.f32 %v3062, %v3630
        %v3632 = vpop.f32.mrb[0].mxu0
        %v3633 = vadd.f32 %v3062, %v3632
        %3634 = vdwg.mxu0
        %v3635 = vmax.f32 %v3134, 0.0
        %v3636 = vmax.f32 %v3136, 0.0
        %v3637 = vmax.f32 %v3205, 0.0
        %v3638 = vmax.f32 %v3207, 0.0
        %v3639 = vmax.f32 %v3276, 0.0
        %v3640 = vmax.f32 %v3278, 0.0
        %v3641 = vmax.f32 %v3347, 0.0
        %v3642 = vmax.f32 %v3349, 0.0
        %v3643 = vmax.f32 %v3418, 0.0
        %v3644 = vmax.f32 %v3420, 0.0
        %v3645 = vmax.f32 %v3489, 0.0
        %v3646 = vmax.f32 %v3491, 0.0
        %v3647 = vmax.f32 %v3560, 0.0
        %v3648 = vmax.f32 %v3562, 0.0
        %v3649 = vmax.f32 %v3631, 0.0
        %v3650 = vmax.f32 %v3633, 0.0
        %v3651 = vmin.f32 %v3635, 20.0
        %v3652 = vmin.f32 %v3636, 20.0
        %v3653 = vmin.f32 %v3637, 20.0
        %v3654 = vmin.f32 %v3638, 20.0
        %v3655 = vmin.f32 %v3639, 20.0
        %v3656 = vmin.f32 %v3640, 20.0
        %v3657 = vmin.f32 %v3641, 20.0
        %v3658 = vmin.f32 %v3642, 20.0
        %v3659 = vmin.f32 %v3643, 20.0
        %v3660 = vmin.f32 %v3644, 20.0
        %v3661 = vmin.f32 %v3645, 20.0
        %v3662 = vmin.f32 %v3646, 20.0
        %v3663 = vmin.f32 %v3647, 20.0
        %v3664 = vmin.f32 %v3648, 20.0
        %v3665 = vmin.f32 %v3649, 20.0
        %v3666 = vmin.f32 %v3650, 20.0
        %v3667 = vsel %vm2025, %v3651, 0.0
        %v3668 = vsel %vm2026, %v3652, 0.0
        %v3669 = vsel %vm2027, %v3653, 0.0
        %v3670 = vsel %vm2028, %v3654, 0.0
        %v3671 = vsel %vm2029, %v3655, 0.0
        %v3672 = vsel %vm2030, %v3656, 0.0
        %v3673 = vsel %vm2031, %v3657, 0.0
        %v3674 = vsel %vm2032, %v3658, 0.0
        %v3675 = vsel %vm2033, %v3659, 0.0
        %v3676 = vsel %vm2034, %v3660, 0.0
        %v3677 = vsel %vm2035, %v3661, 0.0
        %v3678 = vsel %vm2036, %v3662, 0.0
        %v3679 = vsel %vm2037, %v3663, 0.0
        %v3680 = vsel %vm2038, %v3664, 0.0
        %v3681 = vsel %vm2039, %v3665, 0.0
        %v3682 = vsel %vm2040, %v3666, 0.0
        %3683 = vst [vmem:[%s274] sm:$0xff] %v3667
        %3684 = vst [vmem:[%s274 + $0x8] sm:$0xff] %v3668
        %3685 = vst [vmem:[%s274 + $0x10] sm:$0xff] %v3669
        %3686 = vst [vmem:[%s274 + $0x18] sm:$0xff] %v3670
        %3687 = vst [vmem:[%s274 + $0x20] sm:$0xff] %v3671
        %3688 = vst [vmem:[%s274 + $0x28] sm:$0xff] %v3672
        %3689 = vst [vmem:[%s274 + $0x30] sm:$0xff] %v3673
        %3690 = vst [vmem:[%s274 + $0x38] sm:$0xff] %v3674
        %3691 = vst [vmem:[%s274 + $0x40] sm:$0xff] %v3675
        %3692 = vst [vmem:[%s274 + $0x48] sm:$0xff] %v3676
        %3693 = vst [vmem:[%s274 + $0x50] sm:$0xff] %v3677
        %3694 = vst [vmem:[%s274 + $0x58] sm:$0xff] %v3678
        %3695 = vst [vmem:[%s274 + $0x60] sm:$0xff] %v3679
        %3696 = vst [vmem:[%s274 + $0x68] sm:$0xff] %v3680
        %3697 = vst [vmem:[%s274 + $0x70] sm:$0xff] %v3681
        %3698 = vst [vmem:[%s274 + $0x78] sm:$0xff] %v3682
        %s3699 = sand.u32 %s169, 1
        %s3700 = scalar_lea.sflag [#allocation9], %s3699
        %s3701 = sand.u32 %s169, 1
        %s3702 = smul.addr %s3701, 128
        %s3703 = scalar_lea.vmem [#allocation10], %s3702
        // Predicated region
        $region49: #{tpu_custom_call.1} parent=43 // pred_check
          %p3704 = pneg %p179
        $region50: #{tpu_custom_call.1} parent=43 // pred_check_branch
          %3706 = sbr.rel (%p3704) target = $region52
        $region51: #{tpu_custom_call.1} parent=43 // pred_region
          %s3708 = ssub.s32 2048, 2048
          %3709 = vsyncadd %s3700, %s3708
          %s3710 = smul.addr %s30, 16
          %s3711 = smul.addr %s3710, 128
          %s3712 = scalar_lea.hbm %s7, %s3711
          %s3714 = sshll.u32 %s3703, 4
          %s3715 = int_to_ptr.vmem [resolvable:$true] %s3714
          %3717 = dma.vmem_to_hbm [thread:$0]  %s3715, 2048, %s3712, %s3700
        $region52: #{tpu_custom_call.1} parent=43 // pred_fallthru
          _
      $region44: #{tpu_custom_call.1} parent=5 // pred_fallthru
        _
      %p3718 = scmp.le.s32.totalorder 2, %s25
      // Predicated region
      $region53: #{tpu_custom_call.1} parent=5 // pred_check
        %p3719 = pneg %p3718
      $region54: #{tpu_custom_call.1} parent=5 // pred_check_branch
        %3721 = sbr.rel (%p3719) target = $region56
      $region55: #{tpu_custom_call.1} parent=5 // pred_region
        %s3722 = ssub.s32 %s25, 2
        // Predicated region
        $region57: #{tpu_custom_call.1} parent=55 // pred_check
          %p3723 = pneg %p185
        $region58: #{tpu_custom_call.1} parent=55 // pred_check_branch
          %3725 = sbr.rel (%p3723) target = $region60
        $region59: #{tpu_custom_call.1} parent=55 // pred_region
          %s3726 = sand.u32 %s170, 1
          %s3727 = scalar_lea.sflag [#allocation9], %s3726
          %s3728 = sand.u32 %s170, 1
          %s3729 = smul.addr %s3728, 128
          %s3730 = scalar_lea.vmem [#allocation10], %s3729
          %3731 = dma.done %s3727, 2048
        $region60: #{tpu_custom_call.1} parent=55 // pred_fallthru
          _
      $region56: #{tpu_custom_call.1} parent=5 // pred_fallthru
        _
    $region6: #{tpu_custom_call.1} parent=1 // loop_footer
      %s29 = sadd.s32 1, %s25
    $region7: #{tpu_custom_call.1} parent=1 // loop_footer_branch
      %24 = sbr.rel target = $region3
    $region8: #{tpu_custom_call.1} parent=1 // loop_exit
      _
    %3732 = vsyncpa [#allocation8], 1
    %s3733 = scalar_lea.sflag [#allocation8], 1
    %3734 = vsyncpa %s3733, 1
    %3735 = vsyncpa [#allocation9], 1
    %s3736 = scalar_lea.sflag [#allocation9], 1
    %3737 = vsyncpa %s3736, 1

</llo_original>
